<compile_context>
chip_gen: v6e
topology: v6e:2x2x1
jax: 0.10.0
libtpu: 0.0.40
codegen_flags: <defaults>
</compile_context>

<pallas_src>
import functools

import jax
import jax.numpy as jnp
import numpy as np
from jax import lax
from jax.experimental import pallas as pl
from jax.experimental.pallas import tpu as pltpu


def simclr_loss_kernel(x_ref, out_ref, *, temperature, dim, block_b, lane_dense):
    """x_ref: [b, 2*dim] resident (row i = [view0_i | view1_i]).

    out_ref: [1, block_b] (lane-dense) or [block_b, 1] per-anchor losses for this tile.
    """
    i = pl.program_id(0)
    row0 = pl.multiple_of(i * block_b, block_b)
    inv_t = jnp.float32(1.0 / temperature)

    # Native-dtype operands for the MXU (no f32 up-cast of the full contrast).
    a_tile = x_ref[pl.ds(row0, block_b), pl.ds(0, dim)]      # anchors of this tile
    v1_tile = x_ref[pl.ds(row0, block_b), pl.ds(dim, dim)]   # their positives (view 1)
    a_all = x_ref[:, pl.ds(0, dim)]                          # all view-0 rows  [b, dim]
    v1_all = x_ref[:, pl.ds(dim, dim)]                       # all view-1 rows  [b, dim]
    b = a_all.shape[0]

    # Temperature folded into the anchor operand in its native dtype (no promotion).
    a_scaled = a_tile * jnp.asarray(1.0 / temperature, dtype=a_tile.dtype)

    # A @ B.T via dot_general contracting the last dims (no RHS transpose / relayout).
    dn = (((1,), (1,)), ((), ()))
    s0 = lax.dot_general(a_scaled, a_all, dn, preferred_element_type=jnp.float32)   # cols 0..b-1
    s1 = lax.dot_general(a_scaled, v1_all, dn, preferred_element_type=jnp.float32)  # cols b..2b-1

    # Row max over the FULL row including the self column (matches torch exactly).
    # Fused into a single XLU reduce over max(s0, s1).
    row_max = jnp.max(jnp.maximum(s0, s1), axis=1, keepdims=True)

    # Per-row f32 dots on the small tile slices (post-matmul math stays f32: v5e-safe).
    a_f32 = a_tile.astype(jnp.float32)
    v1_f32 = v1_tile.astype(jnp.float32)
    pos = inv_t * jnp.sum(a_f32 * v1_f32, axis=1, keepdims=True)         # <a_i, v1_i>/T
    self_logit = inv_t * jnp.sum(a_f32 * a_f32, axis=1, keepdims=True)   # <a_i, a_i>/T

    # Denominator over all 2b columns (one fused XLU sum), then subtract the self
    # column as a [block_b,1] scalar correction instead of a [block_b,b] iota/where mask.
    denom = (jnp.sum(jnp.exp(s0 - row_max) + jnp.exp(s1 - row_max), axis=1, keepdims=True)
             - jnp.exp(self_logit - row_max))

    # Positive log-prob; the reference's divide by mask.sum(1) is identically 1.
    loss_rows = -((pos - row_max) - jnp.log(denom))                      # [block_b, 1]

    if lane_dense:
        out_ref[...] = loss_rows.reshape(1, block_b)
    else:
        out_ref[...] = loss_rows


def _tpu_params():
    """(vmem_capacity_bytes, block_b_cap) for the current backend, with safe fallbacks."""
    vmem_cap = 64 << 20  # conservative default = v7x per-TC VMEM
    try:
        vmem_cap = int(pltpu.get_tpu_info().vmem_capacity_bytes)
    except Exception:
        pass
    kind = ""
    try:
        kind = jax.devices()[0].device_kind.lower()
    except Exception:
        pass
    # v6e / v7x MXUs are 256-wide in M; v5e (and unknown) stay at 128.
    block_cap = 256 if ("v6" in kind or "v7" in kind or "7x" in kind) else 128
    return vmem_cap, block_cap


def _pick_block_b(b, cap):
    """Largest multiple-of-8 divisor of b that is <= cap; among candidates within 2x of
    the best, prefer one giving an EVEN grid length (v7x shards 'parallel' over 2 TCs)."""
    divisors = [t for t in range(8, min(b, cap) + 1, 8) if b % t == 0]
    if not divisors:
        return b
    best = max(divisors)
    even = [t for t in divisors if (b // t) % 2 == 0 and 2 * t >= best]
    return max(even) if even else best


def simclr_loss(features, temperature, block_b=None):
    """features: [b, 2, dim] float array. Returns scalar SimCLR loss (torch semantics)."""
    b, n, dim = features.shape
    assert n == 2
    # Lane-align the feature dim: zero padding changes no dot product and keeps the
    # in-kernel view-1 slice on a 128-lane boundary (free static slice).
    pad = (-dim) % 128
    if pad:
        features = jnp.pad(features, ((0, 0), (0, 0), (0, pad)))
        dim = dim + pad
    # Free, contiguous reshape: row i = [view0_i | view1_i]. No concat, no anchor copy.
    x = features.reshape(b, 2 * dim)

    vmem_cap, block_cap = _tpu_params()
    if block_b is None:
        block_b = _pick_block_b(b, block_cap)
    assert b % block_b == 0, "block_b must divide b"
    num_tiles = b // block_b
    lane_dense = (block_b % 128 == 0) or (block_b == b)

    kernel = functools.partial(
        simclr_loss_kernel,
        temperature=float(temperature), dim=int(dim), block_b=int(block_b),
        lane_dense=lane_dense,
    )

    if lane_dense:
        out_shape = jax.ShapeDtypeStruct((1, b), jnp.float32)
        out_spec = pl.BlockSpec((1, block_b), lambda i: (0, i))   # lane-dense row per tile
    else:
        out_shape = jax.ShapeDtypeStruct((b, 1), jnp.float32)
        out_spec = pl.BlockSpec((block_b, 1), lambda i: (i, 0))

    # VMEM budget: resident x (<= 2 pipeline buffers) + ~[block_b, 2b]-scale f32
    # intermediates (s0, s1, max, exps), capped below the chip's actual VMEM.
    x_bytes = x.size * x.dtype.itemsize
    est = 2 * x_bytes + 8 * block_b * (2 * b) * 4 + (2 << 20)
    vmem_limit = int(min(vmem_cap - (8 << 20), max(est, 32 << 20)))
    # TODO(synk): for batches where `est` exceeds VMEM (esp. v7x's 64 MiB), add an inner
    # "arbitrary" grid axis over contrast columns with an online-softmax accumulator so
    # intermediates shrink to [block_b, col_tile] and x need not stay resident.

    def build(single_buffer):
        if single_buffer:
            # Constant index_map -> the block never changes; one buffer is enough.
            in_spec = pl.BlockSpec((b, 2 * dim), lambda i: (0, 0),
                                   pipeline_mode=pl.Buffered(1))
        else:
            in_spec = pl.BlockSpec((b, 2 * dim), lambda i: (0, 0))
        return pl.pallas_call(
            kernel,
            out_shape=out_shape,
            grid=(num_tiles,),
            in_specs=[in_spec],
            out_specs=out_spec,
            compiler_params=pltpu.CompilerParams(
                dimension_semantics=("parallel",),   # independent row tiles (v7x: 2 TCs)
                vmem_limit_bytes=vmem_limit,
            ),
        )

    try:
        per_anchor = build(True)(x)
    except Exception:
        # Backend rejected single-buffering; default double-buffering is still correct.
        per_anchor = build(False)(x)

    return jnp.mean(per_anchor)


def simclr_loss_ref(features, temperature):
    """Pure-JAX reference mirroring the PyTorch forward exactly."""
    b, n, dim = features.shape
    anchor = features[:, 0, :]
    contrast = jnp.concatenate([features[:, 0, :], features[:, 1, :]], axis=0)
    dot = (anchor @ contrast.T) / temperature
    logits = dot - jnp.max(dot, axis=1, keepdims=True)
    mask = jnp.tile(jnp.eye(b, dtype=jnp.float32), (1, 2))
    logits_mask = jnp.ones((b, 2 * b), jnp.float32).at[
        jnp.arange(b), jnp.arange(b)
    ].set(0.0)
    mask = mask * logits_mask
    exp_logits = jnp.exp(logits) * logits_mask
    log_prob = logits - jnp.log(jnp.sum(exp_logits, axis=1, keepdims=True))
    return -jnp.mean(jnp.sum(mask * log_prob, axis=1) / jnp.sum(mask, axis=1))


if __name__ == "__main__":
    key = jax.random.PRNGKey(0)
    b, dim = 256, 256          # lane-aligned dim; auto block_b=128 -> even 2-step grid
    temperature = 0.5
    feats = jax.random.normal(key, (b, 2, dim), dtype=jnp.float32)
    # SimCLR features are L2-normalized in practice; the module's max-stabilization
    # includes the self-similarity column, which only stays well-conditioned for
    # normalized inputs, so the demo normalizes.
    feats = feats / jnp.linalg.norm(feats, axis=-1, keepdims=True)

    loss = simclr_loss(feats, temperature)
    loss = jax.block_until_ready(loss)

    ref = jax.block_until_ready(simclr_loss_ref(feats, temperature))
    np.testing.assert_allclose(np.asarray(loss), np.asarray(ref), rtol=5e-5, atol=5e-5)

    print("KERNEL_OK")
</pallas_src>

<mosaic_0001>
module attributes {stable_mosaic.version = 11 : i64} {
  func.func @simclr_loss_kernel(%arg0: i32, %arg1: memref<256x512xf32, #tpu.memory_space<vmem>>, %arg2: memref<1x128xf32, #tpu.memory_space<vmem>>) attributes {dimension_semantics = [#tpu.dimension_semantics<parallel>], iteration_bounds = array<i64: 2>, scalar_prefetch = 0 : i64, scratch_operands = 0 : i64, tpu.core_type = #tpu.core_type<tc>, window_params = [{pipeline_mode = #tpu.pipeline_mode<synchronous>, transform_indices = @transform_0, window_bounds = array<i64: 256, 512>}, {transform_indices = @transform_1, window_bounds = array<i64: 1, 128>}]} {
    %c128_i32 = arith.constant 128 : i32
    %0 = arith.muli %arg0, %c128_i32 : i32
    %1 = tpu.assume_multiple %0, 128 : i32
    %2 = arith.index_cast %1 : i32 to index
    %c0 = arith.constant 0 : index
    %3 = vector.load %arg1[%2, %c0] : memref<256x512xf32, #tpu.memory_space<vmem>>, vector<128x256xf32>
    %4 = arith.index_cast %1 : i32 to index
    %c256 = arith.constant 256 : index
    %5 = vector.load %arg1[%4, %c256] : memref<256x512xf32, #tpu.memory_space<vmem>>, vector<128x256xf32>
    %c0_0 = arith.constant 0 : index
    %c0_1 = arith.constant 0 : index
    %6 = vector.load %arg1[%c0_0, %c0_1] : memref<256x512xf32, #tpu.memory_space<vmem>>, vector<256x256xf32>
    %c0_2 = arith.constant 0 : index
    %c256_3 = arith.constant 256 : index
    %7 = vector.load %arg1[%c0_2, %c256_3] : memref<256x512xf32, #tpu.memory_space<vmem>>, vector<256x256xf32>
    %cst = arith.constant 2.000000e+00 : f32
    %8 = vector.broadcast %cst : f32 to vector<128x256xf32>
    %9 = arith.mulf %3, %8 : vector<128x256xf32>
    %cst_4 = arith.constant dense<0.000000e+00> : vector<128x256xf32>
    %10 = tpu.matmul %9, %6, %cst_4 {dimension_numbers = #tpu.dot_dimension_numbers<[1], [1], [0], [0], [0, 0, 1, 0], [], []>} : vector<128x256xf32>, vector<256x256xf32>, vector<128x256xf32> -> vector<128x256xf32>
    %cst_5 = arith.constant dense<0.000000e+00> : vector<128x256xf32>
    %11 = tpu.matmul %9, %7, %cst_5 {dimension_numbers = #tpu.dot_dimension_numbers<[1], [1], [0], [0], [0, 0, 1, 0], [], []>} : vector<128x256xf32>, vector<256x256xf32>, vector<128x256xf32> -> vector<128x256xf32>
    %12 = arith.maximumf %10, %11 : vector<128x256xf32>
    %cst_6 = arith.constant dense<0xFF800000> : vector<128xf32>
    %13 = vector.multi_reduction <maximumf>, %12, %cst_6 [1] : vector<128x256xf32> to vector<128xf32>
    %14 = vector.shape_cast %13 : vector<128xf32> to vector<128x1xf32>
    %15 = arith.mulf %3, %5 : vector<128x256xf32>
    %cst_7 = arith.constant dense<0.000000e+00> : vector<128xf32>
    %16 = vector.multi_reduction <add>, %15, %cst_7 [1] : vector<128x256xf32> to vector<128xf32>
    %17 = vector.shape_cast %16 : vector<128xf32> to vector<128x1xf32>
    %cst_8 = arith.constant 2.000000e+00 : f32
    %18 = vector.broadcast %cst_8 : f32 to vector<128x1xf32>
    %19 = arith.mulf %18, %17 : vector<128x1xf32>
    %20 = arith.mulf %3, %3 : vector<128x256xf32>
    %cst_9 = arith.constant dense<0.000000e+00> : vector<128xf32>
    %21 = vector.multi_reduction <add>, %20, %cst_9 [1] : vector<128x256xf32> to vector<128xf32>
    %22 = vector.shape_cast %21 : vector<128xf32> to vector<128x1xf32>
    %cst_10 = arith.constant 2.000000e+00 : f32
    %23 = vector.broadcast %cst_10 : f32 to vector<128x1xf32>
    %24 = arith.mulf %23, %22 : vector<128x1xf32>
    %25 = vector.broadcast %14 : vector<128x1xf32> to vector<128x256xf32>
    %26 = arith.subf %10, %25 : vector<128x256xf32>
    %27 = math.exp %26 : vector<128x256xf32>
    %28 = vector.broadcast %14 : vector<128x1xf32> to vector<128x256xf32>
    %29 = arith.subf %11, %28 : vector<128x256xf32>
    %30 = math.exp %29 : vector<128x256xf32>
    %31 = arith.addf %27, %30 : vector<128x256xf32>
    %cst_11 = arith.constant dense<0.000000e+00> : vector<128xf32>
    %32 = vector.multi_reduction <add>, %31, %cst_11 [1] : vector<128x256xf32> to vector<128xf32>
    %33 = vector.shape_cast %32 : vector<128xf32> to vector<128x1xf32>
    %34 = arith.subf %24, %14 : vector<128x1xf32>
    %35 = math.exp %34 : vector<128x1xf32>
    %36 = arith.subf %33, %35 : vector<128x1xf32>
    %37 = arith.subf %19, %14 : vector<128x1xf32>
    %38 = math.log %36 : vector<128x1xf32>
    %39 = arith.subf %37, %38 : vector<128x1xf32>
    %cst_12 = arith.constant 0.000000e+00 : f32
    %40 = vector.broadcast %cst_12 : f32 to vector<128x1xf32>
    %41 = arith.subf %40, %39 : vector<128x1xf32>
    %42 = vector.shape_cast %41 : vector<128x1xf32> to vector<1x128xf32>
    %c0_13 = arith.constant 0 : index
    %c0_14 = arith.constant 0 : index
    %43 = vector.load %arg2[%c0_13, %c0_14] : memref<1x128xf32, #tpu.memory_space<vmem>>, vector<1x128xf32>
    tpu.vector_store %arg2[%c0_13, %c0_14], %42 {strides = array<i32>} : memref<1x128xf32, #tpu.memory_space<vmem>>, vector<1x128xf32>,
    return
  }
  func.func @transform_0(%arg0: i32) -> (i32, i32) {
    %c0_i32 = arith.constant 0 : i32
    %c0_i32_0 = arith.constant 0 : i32
    %c0_i32_1 = arith.constant 0 : i32
    return %c0_i32, %c0_i32_0 : i32, i32
  }
  func.func @transform_1(%arg0: i32) -> (i32, i32) {
    %c0_i32 = arith.constant 0 : i32
    %c0_i32_0 = arith.constant 0 : i32
    return %c0_i32, %arg0 : i32, i32
  }
}

module attributes {stable_mosaic.version = 11 : i64} {
  func.func @simclr_loss_kernel(%arg0: i32, %arg1: memref<256x512xf32, #tpu.memory_space<vmem>>, %arg2: memref<1x128xf32, #tpu.memory_space<vmem>>) attributes {dimension_semantics = [#tpu.dimension_semantics<parallel>], iteration_bounds = array<i64: 2>, scalar_prefetch = 0 : i64, scratch_operands = 0 : i64, tpu.core_type = #tpu.core_type<tc>, window_params = [{pipeline_mode = #tpu.pipeline_mode<synchronous>, transform_indices = @transform_0, window_bounds = array<i64: 256, 512>}, {transform_indices = @transform_1, window_bounds = array<i64: 1, 128>}]} {
    %c128_i32 = arith.constant 128 : i32
    %0 = arith.muli %arg0, %c128_i32 : i32
    %1 = tpu.assume_multiple %0, 128 : i32
    %2 = arith.index_cast %1 : i32 to index
    %c0 = arith.constant 0 : index
    %3 = vector.load %arg1[%2, %c0] : memref<256x512xf32, #tpu.memory_space<vmem>>, vector<128x256xf32>
    %4 = arith.index_cast %1 : i32 to index
    %c256 = arith.constant 256 : index
    %5 = vector.load %arg1[%4, %c256] : memref<256x512xf32, #tpu.memory_space<vmem>>, vector<128x256xf32>
    %c0_0 = arith.constant 0 : index
    %c0_1 = arith.constant 0 : index
    %6 = vector.load %arg1[%c0_0, %c0_1] : memref<256x512xf32, #tpu.memory_space<vmem>>, vector<256x256xf32>
    %c0_2 = arith.constant 0 : index
    %c256_3 = arith.constant 256 : index
    %7 = vector.load %arg1[%c0_2, %c256_3] : memref<256x512xf32, #tpu.memory_space<vmem>>, vector<256x256xf32>
    %cst = arith.constant 2.000000e+00 : f32
    %8 = vector.broadcast %cst : f32 to vector<128x256xf32>
    %9 = arith.mulf %3, %8 : vector<128x256xf32>
    %cst_4 = arith.constant dense<0.000000e+00> : vector<128x256xf32>
    %10 = tpu.matmul %9, %6, %cst_4 {dimension_numbers = #tpu.dot_dimension_numbers<[1], [1], [0], [0], [0, 0, 1, 0], [], []>} : vector<128x256xf32>, vector<256x256xf32>, vector<128x256xf32> -> vector<128x256xf32>
    %cst_5 = arith.constant dense<0.000000e+00> : vector<128x256xf32>
    %11 = tpu.matmul %9, %7, %cst_5 {dimension_numbers = #tpu.dot_dimension_numbers<[1], [1], [0], [0], [0, 0, 1, 0], [], []>} : vector<128x256xf32>, vector<256x256xf32>, vector<128x256xf32> -> vector<128x256xf32>
    %12 = arith.maximumf %10, %11 : vector<128x256xf32>
    %cst_6 = arith.constant dense<0xFF800000> : vector<128xf32>
    %13 = vector.multi_reduction <maximumf>, %12, %cst_6 [1] : vector<128x256xf32> to vector<128xf32>
    %14 = vector.shape_cast %13 : vector<128xf32> to vector<128x1xf32>
    %15 = arith.mulf %3, %5 : vector<128x256xf32>
    %cst_7 = arith.constant dense<0.000000e+00> : vector<128xf32>
    %16 = vector.multi_reduction <add>, %15, %cst_7 [1] : vector<128x256xf32> to vector<128xf32>
    %17 = vector.shape_cast %16 : vector<128xf32> to vector<128x1xf32>
    %cst_8 = arith.constant 2.000000e+00 : f32
    %18 = vector.broadcast %cst_8 : f32 to vector<128x1xf32>
    %19 = arith.mulf %18, %17 : vector<128x1xf32>
    %20 = arith.mulf %3, %3 : vector<128x256xf32>
    %cst_9 = arith.constant dense<0.000000e+00> : vector<128xf32>
    %21 = vector.multi_reduction <add>, %20, %cst_9 [1] : vector<128x256xf32> to vector<128xf32>
    %22 = vector.shape_cast %21 : vector<128xf32> to vector<128x1xf32>
    %cst_10 = arith.constant 2.000000e+00 : f32
    %23 = vector.broadcast %cst_10 : f32 to vector<128x1xf32>
    %24 = arith.mulf %23, %22 : vector<128x1xf32>
    %25 = vector.broadcast %14 : vector<128x1xf32> to vector<128x256xf32>
    %26 = arith.subf %10, %25 : vector<128x256xf32>
    %27 = math.exp %26 : vector<128x256xf32>
    %28 = vector.broadcast %14 : vector<128x1xf32> to vector<128x256xf32>
    %29 = arith.subf %11, %28 : vector<128x256xf32>
    %30 = math.exp %29 : vector<128x256xf32>
    %31 = arith.addf %27, %30 : vector<128x256xf32>
    %cst_11 = arith.constant dense<0.000000e+00> : vector<128xf32>
    %32 = vector.multi_reduction <add>, %31, %cst_11 [1] : vector<128x256xf32> to vector<128xf32>
    %33 = vector.shape_cast %32 : vector<128xf32> to vector<128x1xf32>
    %34 = arith.subf %24, %14 : vector<128x1xf32>
    %35 = math.exp %34 : vector<128x1xf32>
    %36 = arith.subf %33, %35 : vector<128x1xf32>
    %37 = arith.subf %19, %14 : vector<128x1xf32>
    %38 = math.log %36 : vector<128x1xf32>
    %39 = arith.subf %37, %38 : vector<128x1xf32>
    %cst_12 = arith.constant 0.000000e+00 : f32
    %40 = vector.broadcast %cst_12 : f32 to vector<128x1xf32>
    %41 = arith.subf %40, %39 : vector<128x1xf32>
    %42 = vector.shape_cast %41 : vector<128x1xf32> to vector<1x128xf32>
    %c0_13 = arith.constant 0 : index
    %c0_14 = arith.constant 0 : index
    %43 = vector.load %arg2[%c0_13, %c0_14] : memref<1x128xf32, #tpu.memory_space<vmem>>, vector<1x128xf32>
    tpu.vector_store %arg2[%c0_13, %c0_14], %42 {strides = array<i32>} : memref<1x128xf32, #tpu.memory_space<vmem>>, vector<1x128xf32>,
    return
  }
  func.func @transform_0(%arg0: i32) -> (i32, i32) {
    %c0_i32 = arith.constant 0 : i32
    %c0_i32_0 = arith.constant 0 : i32
    %c0_i32_1 = arith.constant 0 : i32
    return %c0_i32, %c0_i32_0 : i32, i32
  }
  func.func @transform_1(%arg0: i32) -> (i32, i32) {
    %c0_i32 = arith.constant 0 : i32
    %c0_i32_0 = arith.constant 0 : i32
    return %c0_i32, %arg0 : i32, i32
  }
}

</mosaic_0001>

<llo_original>
// kernel: tpu_custom_call.1
$region0: #{tpu_custom_call.1}
  #allocation0 [shape = 'u32[]', space=smem, size = 0x4, offset = 0x4, fixed_abs, tag = 'smem constant byte address 0x4 - core index']
  #allocation1 [shape = 'u32[144,128]{1,0:T(1,128)}', space=vmem, size = 0x12000, scoped, tag = 'internal scratch']
  %s0 = inlined_call_operand.hbm [shape: f32[256,512], index: 0, kind: input, shape index: {}]
  %s1 = inlined_call_operand.hbm [shape: f32[1,256], index: 1, kind: output, shape index: {}]
  %s2 = sld [smem:[#allocation0]]
  $region41: #{tpu_custom_call.1} parent=0
    _
  %s4 = ssub.s32 1, %s2
  %s5 = scalar_select 0, %s4, %s2
  $region1: #{tpu_custom_call.1} parent=0
    #allocation2 [shape = 'u8[524288]{0}', space=vmem, size = 0x80000, scoped, tag = 'input window, operand 0, single buffered']
    #allocation3 [shape = 's32[2]{0}', space=sflag, size = 0x8, scoped, tag = 'scoped memory for tpu_custom_call.1']
    #allocation4 [shape = 's32[2]{0}', space=sflag, size = 0x8, scoped, tag = 'scoped memory for tpu_custom_call.1']
    #allocation5 [shape = 'u8[1024]{0}', space=vmem, size = 0x400, scoped, tag = 'output window, operand 0']
    %6 = vsyncpa [#allocation3], 0
    %7 = vsyncpa [#allocation4], 0
    %s8 = scalar_lea.sflag [#allocation4], 1
    %9 = vsyncpa %s8, 0
    loop: start=0, step=1, limit=4
    $region2: #{tpu_custom_call.1} parent=1 // loop_pre_header
      _
    $region3: #{tpu_custom_call.1} parent=1 // loop_header
      %s11 = sphi 0, %s15
      %p12 = scmp.ge.s32.totalorder %s11, 4
      %s19 = sphi 0, %s19
      %s21 = sphi 0, %s19
      %s22 = sphi 0, %s21
      %s36 = sphi 0, %s22
      %s42 = sphi 0, %s44
      %s45 = sphi 0, %s42
      %s46 = sphi 0, %s45
      %s62 = sphi 0, %s46
    $region4: #{tpu_custom_call.1} parent=1 // loop_header_branch
      %14 = sbr.rel (%p12) target = $region8
    $region5: #{tpu_custom_call.1} parent=1 // loop_body
      %s16 = ssub.s32 %s11, 1
      %s17 = ssub.s32 %s11, 2
      %s18 = sadd.s32 %s11, 1
      %s20 = sadd.s32 %s19, 1
      %p23 = scmp.eq.s32.totalorder %s11, 1
      %p24 = scmp.ne.s32.totalorder %s19, %s21
      %p25 = scmp.eq.s32.totalorder %s11, 0
      %p26 = por %p24, %p25
      %p27 = scmp.ne.s32.totalorder %s19, %s21
      %p28 = scmp.eq.s32.totalorder %s16, 1
      %p29 = por %p27, %p28
      %p30 = scmp.ne.s32.totalorder %s21, %s22
      %p31 = scmp.eq.s32.totalorder %s16, 0
      %p32 = por %p30, %p31
      %p33 = scmp.ne.s32.totalorder %s21, %s22
      %p34 = scmp.eq.s32.totalorder %s17, 1
      %p35 = por %p33, %p34
      %p37 = scmp.ne.s32.totalorder %s22, %s36
      %p38 = scmp.eq.s32.totalorder %s17, 0
      %p39 = por %p37, %p38
      %s40 = ssub.s32 %s11, %s18
      %p41 = scmp.eq.s32.totalorder %s40, 0
      %s43 = sadd.s32 %s42, 1
      %s44 = scalar_select %p41, %s42, %s43
      %p47 = pneg %p41
      %p48 = scmp.eq.s32.totalorder %s11, 1
      %p49 = por %p47, %p48
      %p50 = scmp.ne.s32.totalorder %s42, %s45
      %p51 = scmp.eq.s32.totalorder %s11, 0
      %p52 = por %p50, %p51
      %p53 = scmp.ne.s32.totalorder %s42, %s45
      %p54 = scmp.eq.s32.totalorder %s16, 1
      %p55 = por %p53, %p54
      %p56 = scmp.ne.s32.totalorder %s45, %s46
      %p57 = scmp.eq.s32.totalorder %s16, 0
      %p58 = por %p56, %p57
      %p59 = scmp.ne.s32.totalorder %s45, %s46
      %p60 = scmp.eq.s32.totalorder %s17, 1
      %p61 = por %p59, %p60
      %p63 = scmp.ne.s32.totalorder %s46, %s62
      %p64 = scmp.eq.s32.totalorder %s17, 0
      %p65 = por %p63, %p64
      %p66 = scmp.le.s32.totalorder 1, %s11
      %p67 = scmp.lt.s32.totalorder %s11, 3
      %p68 = pnand %p66, %p67
      %p69 = pneg %p68
      // Predicated region
      $region9: #{tpu_custom_call.1} parent=5 // pred_check
        _
      $region10: #{tpu_custom_call.1} parent=5 // pred_check_branch
        %71 = sbr.rel (%p68) target = $region12
      $region11: #{tpu_custom_call.1} parent=5 // pred_region
        %s72 = ssub.s32 %s11, 1
        // Predicated region
        $region13: #{tpu_custom_call.1} parent=11 // pred_check
          %p73 = pneg %p32
        $region14: #{tpu_custom_call.1} parent=11 // pred_check_branch
          %75 = sbr.rel (%p73) target = $region16
        $region15: #{tpu_custom_call.1} parent=11 // pred_region
          %s77 = ssub.s32 16384, 16384
          %78 = vsyncadd [#allocation3], %s77
          %s79 = sshll.u32 [#allocation2], 4
          %s80 = int_to_ptr.vmem [resolvable:$true] %s79
          %85 = dma.hbm_to_vmem [thread:$0]  %s0, 16384, %s80, [#allocation3], 512, 512, 32
        $region16: #{tpu_custom_call.1} parent=11 // pred_fallthru
          _
      $region12: #{tpu_custom_call.1} parent=5 // pred_fallthru
        _
      %p86 = scmp.lt.s32.totalorder %s11, 2
      // Predicated region
      $region17: #{tpu_custom_call.1} parent=5 // pred_check
        %p87 = pneg %p86
      $region18: #{tpu_custom_call.1} parent=5 // pred_check_branch
        %89 = sbr.rel (%p87) target = $region20
      $region19: #{tpu_custom_call.1} parent=5 // pred_region
        _
      $region20: #{tpu_custom_call.1} parent=5 // pred_fallthru
        _
      %p90 = scmp.le.s32.totalorder 1, %s11
      %p91 = scmp.lt.s32.totalorder %s11, 3
      %p92 = pnand %p90, %p91
      %p93 = pneg %p92
      // Predicated region
      $region21: #{tpu_custom_call.1} parent=5 // pred_check
        _
      $region22: #{tpu_custom_call.1} parent=5 // pred_check_branch
        %95 = sbr.rel (%p92) target = $region24
      $region23: #{tpu_custom_call.1} parent=5 // pred_region
        %s96 = ssub.s32 %s11, 1
        // Predicated region
        $region25: #{tpu_custom_call.1} parent=23 // pred_check
          %p97 = pneg %p32
        $region26: #{tpu_custom_call.1} parent=23 // pred_check_branch
          %99 = sbr.rel (%p97) target = $region28
        $region27: #{tpu_custom_call.1} parent=23 // pred_region
          %100 = dma.done [#allocation3], 16384
        $region28: #{tpu_custom_call.1} parent=23 // pred_fallthru
          _
        %p101 = pneg %p32
        %p102 = pneg %p29
        %p103 = pneg %p58
        %p104 = pneg %p55
        %s105 = sand.u32 %s45, 1
        %s106 = scalar_lea.sflag [#allocation4], %s105
        %s107 = sand.u32 %s45, 1
        %s108 = scalar_lea.vmem [#allocation5], %s107
        %s109 = smul.u32 %s16, 128
        %s110 = sshra.s32 %s109, 3
        %s111 = sand.u32 %s109, 7
        %s112 = smul.u32 %s110, 4
        %s113 = smul.addr %s112, 8
        %s114 = scalar_lea.vmem [#allocation2], %s113
        %v115 = vld [vmem:[%s114] sm:$0xff]
        %v116 = vld [vmem:[%s114 + $0x8] sm:$0xff]
        %v117 = vld [vmem:[%s114 + $0x20] sm:$0xff]
        %v118 = vld [vmem:[%s114 + $0x28] sm:$0xff]
        %v119 = vld [vmem:[%s114 + $0x40] sm:$0xff]
        %v120 = vld [vmem:[%s114 + $0x48] sm:$0xff]
        %v121 = vld [vmem:[%s114 + $0x60] sm:$0xff]
        %v122 = vld [vmem:[%s114 + $0x68] sm:$0xff]
        %v123 = vld [vmem:[%s114 + $0x80] sm:$0xff]
        %v124 = vld [vmem:[%s114 + $0x88] sm:$0xff]
        %v125 = vld [vmem:[%s114 + $0xa0] sm:$0xff]
        %v126 = vld [vmem:[%s114 + $0xa8] sm:$0xff]
        %v127 = vld [vmem:[%s114 + $0xc0] sm:$0xff]
        %v128 = vld [vmem:[%s114 + $0xc8] sm:$0xff]
        %v129 = vld [vmem:[%s114 + $0xe0] sm:$0xff]
        %v130 = vld [vmem:[%s114 + $0xe8] sm:$0xff]
        %v131 = vld [vmem:[%s114 + $0x100] sm:$0xff]
        %v132 = vld [vmem:[%s114 + $0x108] sm:$0xff]
        %v133 = vld [vmem:[%s114 + $0x120] sm:$0xff]
        %v134 = vld [vmem:[%s114 + $0x128] sm:$0xff]
        %v135 = vld [vmem:[%s114 + $0x140] sm:$0xff]
        %v136 = vld [vmem:[%s114 + $0x148] sm:$0xff]
        %v137 = vld [vmem:[%s114 + $0x160] sm:$0xff]
        %v138 = vld [vmem:[%s114 + $0x168] sm:$0xff]
        %v139 = vld [vmem:[%s114 + $0x180] sm:$0xff]
        %v140 = vld [vmem:[%s114 + $0x188] sm:$0xff]
        %v141 = vld [vmem:[%s114 + $0x1a0] sm:$0xff]
        %v142 = vld [vmem:[%s114 + $0x1a8] sm:$0xff]
        %v143 = vld [vmem:[%s114 + $0x1c0] sm:$0xff]
        %v144 = vld [vmem:[%s114 + $0x1c8] sm:$0xff]
        %v145 = vld [vmem:[%s114 + $0x1e0] sm:$0xff]
        %v146 = vld [vmem:[%s114 + $0x1e8] sm:$0xff]
        %v147 = vld [vmem:[%s114 + $0x10] sm:$0xff]
        %v148 = vld [vmem:[%s114 + $0x18] sm:$0xff]
        %v149 = vld [vmem:[%s114 + $0x30] sm:$0xff]
        %v150 = vld [vmem:[%s114 + $0x38] sm:$0xff]
        %v151 = vld [vmem:[%s114 + $0x50] sm:$0xff]
        %v152 = vld [vmem:[%s114 + $0x58] sm:$0xff]
        %v153 = vld [vmem:[%s114 + $0x70] sm:$0xff]
        %v154 = vld [vmem:[%s114 + $0x78] sm:$0xff]
        %v155 = vld [vmem:[%s114 + $0x90] sm:$0xff]
        %v156 = vld [vmem:[%s114 + $0x98] sm:$0xff]
        %v157 = vld [vmem:[%s114 + $0xb0] sm:$0xff]
        %v158 = vld [vmem:[%s114 + $0xb8] sm:$0xff]
        %v159 = vld [vmem:[%s114 + $0xd0] sm:$0xff]
        %v160 = vld [vmem:[%s114 + $0xd8] sm:$0xff]
        %v161 = vld [vmem:[%s114 + $0xf0] sm:$0xff]
        %v162 = vld [vmem:[%s114 + $0xf8] sm:$0xff]
        %v163 = vld [vmem:[%s114 + $0x110] sm:$0xff]
        %v164 = vld [vmem:[%s114 + $0x118] sm:$0xff]
        %v165 = vld [vmem:[%s114 + $0x130] sm:$0xff]
        %v166 = vld [vmem:[%s114 + $0x138] sm:$0xff]
        %v167 = vld [vmem:[%s114 + $0x150] sm:$0xff]
        %v168 = vld [vmem:[%s114 + $0x158] sm:$0xff]
        %v169 = vld [vmem:[%s114 + $0x170] sm:$0xff]
        %v170 = vld [vmem:[%s114 + $0x178] sm:$0xff]
        %v171 = vld [vmem:[%s114 + $0x190] sm:$0xff]
        %v172 = vld [vmem:[%s114 + $0x198] sm:$0xff]
        %v173 = vld [vmem:[%s114 + $0x1b0] sm:$0xff]
        %v174 = vld [vmem:[%s114 + $0x1b8] sm:$0xff]
        %v175 = vld [vmem:[%s114 + $0x1d0] sm:$0xff]
        %v176 = vld [vmem:[%s114 + $0x1d8] sm:$0xff]
        %v177 = vld [vmem:[%s114 + $0x1f0] sm:$0xff]
        %v178 = vld [vmem:[%s114 + $0x1f8] sm:$0xff]
        %v179 = vld [vmem:[#allocation2] sm:$0xff]
        %v180 = vld [vmem:[#allocation2 + $0x8] sm:$0xff]
        %v181 = vld [vmem:[#allocation2 + $0x20] sm:$0xff]
        %v182 = vld [vmem:[#allocation2 + $0x28] sm:$0xff]
        %v183 = vld [vmem:[#allocation2 + $0x40] sm:$0xff]
        %v184 = vld [vmem:[#allocation2 + $0x48] sm:$0xff]
        %v185 = vld [vmem:[#allocation2 + $0x60] sm:$0xff]
        %v186 = vld [vmem:[#allocation2 + $0x68] sm:$0xff]
        %v187 = vld [vmem:[#allocation2 + $0x80] sm:$0xff]
        %v188 = vld [vmem:[#allocation2 + $0x88] sm:$0xff]
        %v189 = vld [vmem:[#allocation2 + $0xa0] sm:$0xff]
        %v190 = vld [vmem:[#allocation2 + $0xa8] sm:$0xff]
        %v191 = vld [vmem:[#allocation2 + $0xc0] sm:$0xff]
        %v192 = vld [vmem:[#allocation2 + $0xc8] sm:$0xff]
        %v193 = vld [vmem:[#allocation2 + $0xe0] sm:$0xff]
        %v194 = vld [vmem:[#allocation2 + $0xe8] sm:$0xff]
        %v195 = vld [vmem:[#allocation2 + $0x100] sm:$0xff]
        %v196 = vld [vmem:[#allocation2 + $0x108] sm:$0xff]
        %v197 = vld [vmem:[#allocation2 + $0x120] sm:$0xff]
        %v198 = vld [vmem:[#allocation2 + $0x128] sm:$0xff]
        %v199 = vld [vmem:[#allocation2 + $0x140] sm:$0xff]
        %v200 = vld [vmem:[#allocation2 + $0x148] sm:$0xff]
        %v201 = vld [vmem:[#allocation2 + $0x160] sm:$0xff]
        %v202 = vld [vmem:[#allocation2 + $0x168] sm:$0xff]
        %v203 = vld [vmem:[#allocation2 + $0x180] sm:$0xff]
        %v204 = vld [vmem:[#allocation2 + $0x188] sm:$0xff]
        %v205 = vld [vmem:[#allocation2 + $0x1a0] sm:$0xff]
        %v206 = vld [vmem:[#allocation2 + $0x1a8] sm:$0xff]
        %v207 = vld [vmem:[#allocation2 + $0x1c0] sm:$0xff]
        %v208 = vld [vmem:[#allocation2 + $0x1c8] sm:$0xff]
        %v209 = vld [vmem:[#allocation2 + $0x1e0] sm:$0xff]
        %v210 = vld [vmem:[#allocation2 + $0x1e8] sm:$0xff]
        %v211 = vld [vmem:[#allocation2 + $0x200] sm:$0xff]
        %v212 = vld [vmem:[#allocation2 + $0x208] sm:$0xff]
        %v213 = vld [vmem:[#allocation2 + $0x220] sm:$0xff]
        %v214 = vld [vmem:[#allocation2 + $0x228] sm:$0xff]
        %v215 = vld [vmem:[#allocation2 + $0x240] sm:$0xff]
        %v216 = vld [vmem:[#allocation2 + $0x248] sm:$0xff]
        %v217 = vld [vmem:[#allocation2 + $0x260] sm:$0xff]
        %v218 = vld [vmem:[#allocation2 + $0x268] sm:$0xff]
        %v219 = vld [vmem:[#allocation2 + $0x280] sm:$0xff]
        %v220 = vld [vmem:[#allocation2 + $0x288] sm:$0xff]
        %v221 = vld [vmem:[#allocation2 + $0x2a0] sm:$0xff]
        %v222 = vld [vmem:[#allocation2 + $0x2a8] sm:$0xff]
        %v223 = vld [vmem:[#allocation2 + $0x2c0] sm:$0xff]
        %v224 = vld [vmem:[#allocation2 + $0x2c8] sm:$0xff]
        %v225 = vld [vmem:[#allocation2 + $0x2e0] sm:$0xff]
        %v226 = vld [vmem:[#allocation2 + $0x2e8] sm:$0xff]
        %v227 = vld [vmem:[#allocation2 + $0x300] sm:$0xff]
        %v228 = vld [vmem:[#allocation2 + $0x308] sm:$0xff]
        %v229 = vld [vmem:[#allocation2 + $0x320] sm:$0xff]
        %v230 = vld [vmem:[#allocation2 + $0x328] sm:$0xff]
        %v231 = vld [vmem:[#allocation2 + $0x340] sm:$0xff]
        %v232 = vld [vmem:[#allocation2 + $0x348] sm:$0xff]
        %v233 = vld [vmem:[#allocation2 + $0x360] sm:$0xff]
        %v234 = vld [vmem:[#allocation2 + $0x368] sm:$0xff]
        %v235 = vld [vmem:[#allocation2 + $0x380] sm:$0xff]
        %v236 = vld [vmem:[#allocation2 + $0x388] sm:$0xff]
        %v237 = vld [vmem:[#allocation2 + $0x3a0] sm:$0xff]
        %v238 = vld [vmem:[#allocation2 + $0x3a8] sm:$0xff]
        %v239 = vld [vmem:[#allocation2 + $0x3c0] sm:$0xff]
        %v240 = vld [vmem:[#allocation2 + $0x3c8] sm:$0xff]
        %v241 = vld [vmem:[#allocation2 + $0x3e0] sm:$0xff]
        %v242 = vld [vmem:[#allocation2 + $0x3e8] sm:$0xff]
        %v243 = vld [vmem:[#allocation2 + $0x10] sm:$0xff]
        %v244 = vld [vmem:[#allocation2 + $0x18] sm:$0xff]
        %v245 = vld [vmem:[#allocation2 + $0x30] sm:$0xff]
        %v246 = vld [vmem:[#allocation2 + $0x38] sm:$0xff]
        %v247 = vld [vmem:[#allocation2 + $0x50] sm:$0xff]
        %v248 = vld [vmem:[#allocation2 + $0x58] sm:$0xff]
        %v249 = vld [vmem:[#allocation2 + $0x70] sm:$0xff]
        %v250 = vld [vmem:[#allocation2 + $0x78] sm:$0xff]
        %v251 = vld [vmem:[#allocation2 + $0x90] sm:$0xff]
        %v252 = vld [vmem:[#allocation2 + $0x98] sm:$0xff]
        %v253 = vld [vmem:[#allocation2 + $0xb0] sm:$0xff]
        %v254 = vld [vmem:[#allocation2 + $0xb8] sm:$0xff]
        %v255 = vld [vmem:[#allocation2 + $0xd0] sm:$0xff]
        %v256 = vld [vmem:[#allocation2 + $0xd8] sm:$0xff]
        %v257 = vld [vmem:[#allocation2 + $0xf0] sm:$0xff]
        %v258 = vld [vmem:[#allocation2 + $0xf8] sm:$0xff]
        %v259 = vld [vmem:[#allocation2 + $0x110] sm:$0xff]
        %v260 = vld [vmem:[#allocation2 + $0x118] sm:$0xff]
        %v261 = vld [vmem:[#allocation2 + $0x130] sm:$0xff]
        %v262 = vld [vmem:[#allocation2 + $0x138] sm:$0xff]
        %v263 = vld [vmem:[#allocation2 + $0x150] sm:$0xff]
        %v264 = vld [vmem:[#allocation2 + $0x158] sm:$0xff]
        %v265 = vld [vmem:[#allocation2 + $0x170] sm:$0xff]
        %v266 = vld [vmem:[#allocation2 + $0x178] sm:$0xff]
        %v267 = vld [vmem:[#allocation2 + $0x190] sm:$0xff]
        %v268 = vld [vmem:[#allocation2 + $0x198] sm:$0xff]
        %v269 = vld [vmem:[#allocation2 + $0x1b0] sm:$0xff]
        %v270 = vld [vmem:[#allocation2 + $0x1b8] sm:$0xff]
        %v271 = vld [vmem:[#allocation2 + $0x1d0] sm:$0xff]
        %v272 = vld [vmem:[#allocation2 + $0x1d8] sm:$0xff]
        %v273 = vld [vmem:[#allocation2 + $0x1f0] sm:$0xff]
        %v274 = vld [vmem:[#allocation2 + $0x1f8] sm:$0xff]
        %v275 = vld [vmem:[#allocation2 + $0x210] sm:$0xff]
        %v276 = vld [vmem:[#allocation2 + $0x218] sm:$0xff]
        %v277 = vld [vmem:[#allocation2 + $0x230] sm:$0xff]
        %v278 = vld [vmem:[#allocation2 + $0x238] sm:$0xff]
        %v279 = vld [vmem:[#allocation2 + $0x250] sm:$0xff]
        %v280 = vld [vmem:[#allocation2 + $0x258] sm:$0xff]
        %v281 = vld [vmem:[#allocation2 + $0x270] sm:$0xff]
        %v282 = vld [vmem:[#allocation2 + $0x278] sm:$0xff]
        %v283 = vld [vmem:[#allocation2 + $0x290] sm:$0xff]
        %v284 = vld [vmem:[#allocation2 + $0x298] sm:$0xff]
        %v285 = vld [vmem:[#allocation2 + $0x2b0] sm:$0xff]
        %v286 = vld [vmem:[#allocation2 + $0x2b8] sm:$0xff]
        %v287 = vld [vmem:[#allocation2 + $0x2d0] sm:$0xff]
        %v288 = vld [vmem:[#allocation2 + $0x2d8] sm:$0xff]
        %v289 = vld [vmem:[#allocation2 + $0x2f0] sm:$0xff]
        %v290 = vld [vmem:[#allocation2 + $0x2f8] sm:$0xff]
        %v291 = vld [vmem:[#allocation2 + $0x310] sm:$0xff]
        %v292 = vld [vmem:[#allocation2 + $0x318] sm:$0xff]
        %v293 = vld [vmem:[#allocation2 + $0x330] sm:$0xff]
        %v294 = vld [vmem:[#allocation2 + $0x338] sm:$0xff]
        %v295 = vld [vmem:[#allocation2 + $0x350] sm:$0xff]
        %v296 = vld [vmem:[#allocation2 + $0x358] sm:$0xff]
        %v297 = vld [vmem:[#allocation2 + $0x370] sm:$0xff]
        %v298 = vld [vmem:[#allocation2 + $0x378] sm:$0xff]
        %v299 = vld [vmem:[#allocation2 + $0x390] sm:$0xff]
        %v300 = vld [vmem:[#allocation2 + $0x398] sm:$0xff]
        %v301 = vld [vmem:[#allocation2 + $0x3b0] sm:$0xff]
        %v302 = vld [vmem:[#allocation2 + $0x3b8] sm:$0xff]
        %v303 = vld [vmem:[#allocation2 + $0x3d0] sm:$0xff]
        %v304 = vld [vmem:[#allocation2 + $0x3d8] sm:$0xff]
        %v305 = vld [vmem:[#allocation2 + $0x3f0] sm:$0xff]
        %v306 = vld [vmem:[#allocation2 + $0x3f8] sm:$0xff]
        %v307 = vmul.f32 %v115, 2.0
        %v308 = vmul.f32 %v116, 2.0
        %v309 = vmul.f32 %v117, 2.0
        %v310 = vmul.f32 %v118, 2.0
        %v311 = vmul.f32 %v119, 2.0
        %v312 = vmul.f32 %v120, 2.0
        %v313 = vmul.f32 %v121, 2.0
        %v314 = vmul.f32 %v122, 2.0
        %v315 = vmul.f32 %v123, 2.0
        %v316 = vmul.f32 %v124, 2.0
        %v317 = vmul.f32 %v125, 2.0
        %v318 = vmul.f32 %v126, 2.0
        %v319 = vmul.f32 %v127, 2.0
        %v320 = vmul.f32 %v128, 2.0
        %v321 = vmul.f32 %v129, 2.0
        %v322 = vmul.f32 %v130, 2.0
        %v323 = vmul.f32 %v131, 2.0
        %v324 = vmul.f32 %v132, 2.0
        %v325 = vmul.f32 %v133, 2.0
        %v326 = vmul.f32 %v134, 2.0
        %v327 = vmul.f32 %v135, 2.0
        %v328 = vmul.f32 %v136, 2.0
        %v329 = vmul.f32 %v137, 2.0
        %v330 = vmul.f32 %v138, 2.0
        %v331 = vmul.f32 %v139, 2.0
        %v332 = vmul.f32 %v140, 2.0
        %v333 = vmul.f32 %v141, 2.0
        %v334 = vmul.f32 %v142, 2.0
        %v335 = vmul.f32 %v143, 2.0
        %v336 = vmul.f32 %v144, 2.0
        %v337 = vmul.f32 %v145, 2.0
        %v338 = vmul.f32 %v146, 2.0
        %339 = vmatprep.subr.mxu0 %v210
        %340 = vmatpush1.xpose.msra.mxu0 %v209
        %341 = vmatprep.subr.mxu0 %v208
        %342 = vmatpush1.xpose.msra.mxu0 %v207
        %343 = vmatprep.subr.mxu0 %v206
        %344 = vmatpush1.xpose.msra.mxu0 %v205
        %345 = vmatprep.subr.mxu0 %v204
        %346 = vmatpush1.xpose.msra.mxu0 %v203
        %347 = vmatprep.subr.mxu0 %v202
        %348 = vmatpush1.xpose.msra.mxu0 %v201
        %349 = vmatprep.subr.mxu0 %v200
        %350 = vmatpush1.xpose.msra.mxu0 %v199
        %351 = vmatprep.subr.mxu0 %v198
        %352 = vmatpush1.xpose.msra.mxu0 %v197
        %353 = vmatprep.subr.mxu0 %v196
        %354 = vmatpush1.xpose.msra.mxu0 %v195
        %355 = vmatprep.subr.mxu0 %v194
        %356 = vmatpush1.xpose.msra.mxu0 %v193
        %357 = vmatprep.subr.mxu0 %v192
        %358 = vmatpush1.xpose.msra.mxu0 %v191
        %359 = vmatprep.subr.mxu0 %v190
        %360 = vmatpush1.xpose.msra.mxu0 %v189
        %361 = vmatprep.subr.mxu0 %v188
        %362 = vmatpush1.xpose.msra.mxu0 %v187
        %363 = vmatprep.subr.mxu0 %v186
        %364 = vmatpush1.xpose.msra.mxu0 %v185
        %365 = vmatprep.subr.mxu0 %v184
        %366 = vmatpush1.xpose.msra.mxu0 %v183
        %367 = vmatprep.subr.mxu0 %v182
        %368 = vmatpush1.xpose.msra.mxu0 %v181
        %369 = vmatprep.subr.mxu0 %v180
        %370 = vmatpush1.xpose.msra.mxu0 %v179
        %371 = vmatprep.subr.mxu0 %v242
        %372 = vmatpush2.xpose.msra.mxu0 %v241
        %373 = vmatprep.subr.mxu0 %v240
        %374 = vmatpush2.xpose.msra.mxu0 %v239
        %375 = vmatprep.subr.mxu0 %v238
        %376 = vmatpush2.xpose.msra.mxu0 %v237
        %377 = vmatprep.subr.mxu0 %v236
        %378 = vmatpush2.xpose.msra.mxu0 %v235
        %379 = vmatprep.subr.mxu0 %v234
        %380 = vmatpush2.xpose.msra.mxu0 %v233
        %381 = vmatprep.subr.mxu0 %v232
        %382 = vmatpush2.xpose.msra.mxu0 %v231
        %383 = vmatprep.subr.mxu0 %v230
        %384 = vmatpush2.xpose.msra.mxu0 %v229
        %385 = vmatprep.subr.mxu0 %v228
        %386 = vmatpush2.xpose.msra.mxu0 %v227
        %387 = vmatprep.subr.mxu0 %v226
        %388 = vmatpush2.xpose.msra.mxu0 %v225
        %389 = vmatprep.subr.mxu0 %v224
        %390 = vmatpush2.xpose.msra.mxu0 %v223
        %391 = vmatprep.subr.mxu0 %v222
        %392 = vmatpush2.xpose.msra.mxu0 %v221
        %393 = vmatprep.subr.mxu0 %v220
        %394 = vmatpush2.xpose.msra.mxu0 %v219
        %395 = vmatprep.subr.mxu0 %v218
        %396 = vmatpush2.xpose.msra.mxu0 %v217
        %397 = vmatprep.subr.mxu0 %v216
        %398 = vmatpush2.xpose.msra.mxu0 %v215
        %399 = vmatprep.subr.mxu0 %v214
        %400 = vmatpush2.xpose.msra.mxu0 %v213
        %401 = vmatprep.subr.mxu0 %v212
        %402 = vmatpush2.xpose.msra.mxu0 %v211
        %403 = vmatprep.mubr.f32.mxu0 %v308
        %404 = vmatmul.mubr.f32.gmra.mxu0 %v307
        %v405 = vpop.f32.mrf.mxu0
        %v406 = vadd.f32 0.0, %v405
        %v407 = vpop.f32.mrf.mxu0
        %v408 = vadd.f32 0.0, %v407
        %409 = vmatprep.mubr.f32.mxu0 %v310
        %410 = vmatmul.mubr.f32.gmra.mxu0 %v309
        %v411 = vpop.f32.mrf.mxu0
        %v412 = vadd.f32 0.0, %v411
        %v413 = vpop.f32.mrf.mxu0
        %v414 = vadd.f32 0.0, %v413
        %415 = vmatprep.mubr.f32.mxu0 %v312
        %416 = vmatmul.mubr.f32.gmra.mxu0 %v311
        %v417 = vpop.f32.mrf.mxu0
        %v418 = vadd.f32 0.0, %v417
        %v419 = vpop.f32.mrf.mxu0
        %v420 = vadd.f32 0.0, %v419
        %421 = vmatprep.mubr.f32.mxu0 %v314
        %422 = vmatmul.mubr.f32.gmra.mxu0 %v313
        %v423 = vpop.f32.mrf.mxu0
        %v424 = vadd.f32 0.0, %v423
        %v425 = vpop.f32.mrf.mxu0
        %v426 = vadd.f32 0.0, %v425
        %427 = vmatprep.mubr.f32.mxu0 %v316
        %428 = vmatmul.mubr.f32.gmra.mxu0 %v315
        %v429 = vpop.f32.mrf.mxu0
        %v430 = vadd.f32 0.0, %v429
        %v431 = vpop.f32.mrf.mxu0
        %v432 = vadd.f32 0.0, %v431
        %433 = vmatprep.mubr.f32.mxu0 %v318
        %434 = vmatmul.mubr.f32.gmra.mxu0 %v317
        %v435 = vpop.f32.mrf.mxu0
        %v436 = vadd.f32 0.0, %v435
        %v437 = vpop.f32.mrf.mxu0
        %v438 = vadd.f32 0.0, %v437
        %439 = vmatprep.mubr.f32.mxu0 %v320
        %440 = vmatmul.mubr.f32.gmra.mxu0 %v319
        %v441 = vpop.f32.mrf.mxu0
        %v442 = vadd.f32 0.0, %v441
        %v443 = vpop.f32.mrf.mxu0
        %v444 = vadd.f32 0.0, %v443
        %445 = vmatprep.mubr.f32.mxu0 %v322
        %446 = vmatmul.mubr.f32.gmra.mxu0 %v321
        %v447 = vpop.f32.mrf.mxu0
        %v448 = vadd.f32 0.0, %v447
        %v449 = vpop.f32.mrf.mxu0
        %v450 = vadd.f32 0.0, %v449
        %451 = vmatprep.mubr.f32.mxu0 %v324
        %452 = vmatmul.mubr.f32.gmra.mxu0 %v323
        %v453 = vpop.f32.mrf.mxu0
        %v454 = vadd.f32 0.0, %v453
        %v455 = vpop.f32.mrf.mxu0
        %v456 = vadd.f32 0.0, %v455
        %457 = vmatprep.mubr.f32.mxu0 %v326
        %458 = vmatmul.mubr.f32.gmra.mxu0 %v325
        %v459 = vpop.f32.mrf.mxu0
        %v460 = vadd.f32 0.0, %v459
        %v461 = vpop.f32.mrf.mxu0
        %v462 = vadd.f32 0.0, %v461
        %463 = vmatprep.mubr.f32.mxu0 %v328
        %464 = vmatmul.mubr.f32.gmra.mxu0 %v327
        %v465 = vpop.f32.mrf.mxu0
        %v466 = vadd.f32 0.0, %v465
        %v467 = vpop.f32.mrf.mxu0
        %v468 = vadd.f32 0.0, %v467
        %469 = vmatprep.mubr.f32.mxu0 %v330
        %470 = vmatmul.mubr.f32.gmra.mxu0 %v329
        %v471 = vpop.f32.mrf.mxu0
        %v472 = vadd.f32 0.0, %v471
        %v473 = vpop.f32.mrf.mxu0
        %v474 = vadd.f32 0.0, %v473
        %475 = vmatprep.mubr.f32.mxu0 %v332
        %476 = vmatmul.mubr.f32.gmra.mxu0 %v331
        %v477 = vpop.f32.mrf.mxu0
        %v478 = vadd.f32 0.0, %v477
        %v479 = vpop.f32.mrf.mxu0
        %v480 = vadd.f32 0.0, %v479
        %481 = vmatprep.mubr.f32.mxu0 %v334
        %482 = vmatmul.mubr.f32.gmra.mxu0 %v333
        %v483 = vpop.f32.mrf.mxu0
        %v484 = vadd.f32 0.0, %v483
        %v485 = vpop.f32.mrf.mxu0
        %v486 = vadd.f32 0.0, %v485
        %487 = vmatprep.mubr.f32.mxu0 %v336
        %488 = vmatmul.mubr.f32.gmra.mxu0 %v335
        %v489 = vpop.f32.mrf.mxu0
        %v490 = vadd.f32 0.0, %v489
        %v491 = vpop.f32.mrf.mxu0
        %v492 = vadd.f32 0.0, %v491
        %493 = vmatprep.mubr.f32.mxu0 %v338
        %494 = vmatmul.mubr.f32.gmra.mxu0 %v337
        %v495 = vpop.f32.mrf.mxu0
        %v496 = vadd.f32 0.0, %v495
        %v497 = vpop.f32.mrf.mxu0
        %v498 = vadd.f32 0.0, %v497
        %499 = vdwg.mxu0
        %500 = vmatprep.subr.mxu0 %v274
        %501 = vmatpush1.xpose.msra.mxu0 %v273
        %502 = vmatprep.subr.mxu0 %v272
        %503 = vmatpush1.xpose.msra.mxu0 %v271
        %504 = vmatprep.subr.mxu0 %v270
        %505 = vmatpush1.xpose.msra.mxu0 %v269
        %506 = vmatprep.subr.mxu0 %v268
        %507 = vmatpush1.xpose.msra.mxu0 %v267
        %508 = vmatprep.subr.mxu0 %v266
        %509 = vmatpush1.xpose.msra.mxu0 %v265
        %510 = vmatprep.subr.mxu0 %v264
        %511 = vmatpush1.xpose.msra.mxu0 %v263
        %512 = vmatprep.subr.mxu0 %v262
        %513 = vmatpush1.xpose.msra.mxu0 %v261
        %514 = vmatprep.subr.mxu0 %v260
        %515 = vmatpush1.xpose.msra.mxu0 %v259
        %516 = vmatprep.subr.mxu0 %v258
        %517 = vmatpush1.xpose.msra.mxu0 %v257
        %518 = vmatprep.subr.mxu0 %v256
        %519 = vmatpush1.xpose.msra.mxu0 %v255
        %520 = vmatprep.subr.mxu0 %v254
        %521 = vmatpush1.xpose.msra.mxu0 %v253
        %522 = vmatprep.subr.mxu0 %v252
        %523 = vmatpush1.xpose.msra.mxu0 %v251
        %524 = vmatprep.subr.mxu0 %v250
        %525 = vmatpush1.xpose.msra.mxu0 %v249
        %526 = vmatprep.subr.mxu0 %v248
        %527 = vmatpush1.xpose.msra.mxu0 %v247
        %528 = vmatprep.subr.mxu0 %v246
        %529 = vmatpush1.xpose.msra.mxu0 %v245
        %530 = vmatprep.subr.mxu0 %v244
        %531 = vmatpush1.xpose.msra.mxu0 %v243
        %532 = vmatprep.subr.mxu0 %v306
        %533 = vmatpush2.xpose.msra.mxu0 %v305
        %534 = vmatprep.subr.mxu0 %v304
        %535 = vmatpush2.xpose.msra.mxu0 %v303
        %536 = vmatprep.subr.mxu0 %v302
        %537 = vmatpush2.xpose.msra.mxu0 %v301
        %538 = vmatprep.subr.mxu0 %v300
        %539 = vmatpush2.xpose.msra.mxu0 %v299
        %540 = vmatprep.subr.mxu0 %v298
        %541 = vmatpush2.xpose.msra.mxu0 %v297
        %542 = vmatprep.subr.mxu0 %v296
        %543 = vmatpush2.xpose.msra.mxu0 %v295
        %544 = vmatprep.subr.mxu0 %v294
        %545 = vmatpush2.xpose.msra.mxu0 %v293
        %546 = vmatprep.subr.mxu0 %v292
        %547 = vmatpush2.xpose.msra.mxu0 %v291
        %548 = vmatprep.subr.mxu0 %v290
        %549 = vmatpush2.xpose.msra.mxu0 %v289
        %550 = vmatprep.subr.mxu0 %v288
        %551 = vmatpush2.xpose.msra.mxu0 %v287
        %552 = vmatprep.subr.mxu0 %v286
        %553 = vmatpush2.xpose.msra.mxu0 %v285
        %554 = vmatprep.subr.mxu0 %v284
        %555 = vmatpush2.xpose.msra.mxu0 %v283
        %556 = vmatprep.subr.mxu0 %v282
        %557 = vmatpush2.xpose.msra.mxu0 %v281
        %558 = vmatprep.subr.mxu0 %v280
        %559 = vmatpush2.xpose.msra.mxu0 %v279
        %560 = vmatprep.subr.mxu0 %v278
        %561 = vmatpush2.xpose.msra.mxu0 %v277
        %562 = vmatprep.subr.mxu0 %v276
        %563 = vmatpush2.xpose.msra.mxu0 %v275
        %564 = vmatprep.mubr.f32.mxu0 %v308
        %565 = vmatmul.mubr.f32.gmra.mxu0 %v307
        %v566 = vpop.f32.mrf.mxu0
        %v567 = vadd.f32 0.0, %v566
        %v568 = vpop.f32.mrf.mxu0
        %v569 = vadd.f32 0.0, %v568
        %570 = vmatprep.mubr.f32.mxu0 %v310
        %571 = vmatmul.mubr.f32.gmra.mxu0 %v309
        %v572 = vpop.f32.mrf.mxu0
        %v573 = vadd.f32 0.0, %v572
        %v574 = vpop.f32.mrf.mxu0
        %v575 = vadd.f32 0.0, %v574
        %576 = vmatprep.mubr.f32.mxu0 %v312
        %577 = vmatmul.mubr.f32.gmra.mxu0 %v311
        %v578 = vpop.f32.mrf.mxu0
        %v579 = vadd.f32 0.0, %v578
        %v580 = vpop.f32.mrf.mxu0
        %v581 = vadd.f32 0.0, %v580
        %582 = vmatprep.mubr.f32.mxu0 %v314
        %583 = vmatmul.mubr.f32.gmra.mxu0 %v313
        %v584 = vpop.f32.mrf.mxu0
        %v585 = vadd.f32 0.0, %v584
        %v586 = vpop.f32.mrf.mxu0
        %v587 = vadd.f32 0.0, %v586
        %588 = vmatprep.mubr.f32.mxu0 %v316
        %589 = vmatmul.mubr.f32.gmra.mxu0 %v315
        %v590 = vpop.f32.mrf.mxu0
        %v591 = vadd.f32 0.0, %v590
        %v592 = vpop.f32.mrf.mxu0
        %v593 = vadd.f32 0.0, %v592
        %594 = vmatprep.mubr.f32.mxu0 %v318
        %595 = vmatmul.mubr.f32.gmra.mxu0 %v317
        %v596 = vpop.f32.mrf.mxu0
        %v597 = vadd.f32 0.0, %v596
        %v598 = vpop.f32.mrf.mxu0
        %v599 = vadd.f32 0.0, %v598
        %600 = vmatprep.mubr.f32.mxu0 %v320
        %601 = vmatmul.mubr.f32.gmra.mxu0 %v319
        %v602 = vpop.f32.mrf.mxu0
        %v603 = vadd.f32 0.0, %v602
        %v604 = vpop.f32.mrf.mxu0
        %v605 = vadd.f32 0.0, %v604
        %606 = vmatprep.mubr.f32.mxu0 %v322
        %607 = vmatmul.mubr.f32.gmra.mxu0 %v321
        %v608 = vpop.f32.mrf.mxu0
        %v609 = vadd.f32 0.0, %v608
        %v610 = vpop.f32.mrf.mxu0
        %v611 = vadd.f32 0.0, %v610
        %612 = vmatprep.mubr.f32.mxu0 %v324
        %613 = vmatmul.mubr.f32.gmra.mxu0 %v323
        %v614 = vpop.f32.mrf.mxu0
        %v615 = vadd.f32 0.0, %v614
        %v616 = vpop.f32.mrf.mxu0
        %v617 = vadd.f32 0.0, %v616
        %618 = vmatprep.mubr.f32.mxu0 %v326
        %619 = vmatmul.mubr.f32.gmra.mxu0 %v325
        %v620 = vpop.f32.mrf.mxu0
        %v621 = vadd.f32 0.0, %v620
        %v622 = vpop.f32.mrf.mxu0
        %v623 = vadd.f32 0.0, %v622
        %624 = vmatprep.mubr.f32.mxu0 %v328
        %625 = vmatmul.mubr.f32.gmra.mxu0 %v327
        %v626 = vpop.f32.mrf.mxu0
        %v627 = vadd.f32 0.0, %v626
        %v628 = vpop.f32.mrf.mxu0
        %v629 = vadd.f32 0.0, %v628
        %630 = vmatprep.mubr.f32.mxu0 %v330
        %631 = vmatmul.mubr.f32.gmra.mxu0 %v329
        %v632 = vpop.f32.mrf.mxu0
        %v633 = vadd.f32 0.0, %v632
        %v634 = vpop.f32.mrf.mxu0
        %v635 = vadd.f32 0.0, %v634
        %636 = vmatprep.mubr.f32.mxu0 %v332
        %637 = vmatmul.mubr.f32.gmra.mxu0 %v331
        %v638 = vpop.f32.mrf.mxu0
        %v639 = vadd.f32 0.0, %v638
        %v640 = vpop.f32.mrf.mxu0
        %v641 = vadd.f32 0.0, %v640
        %642 = vmatprep.mubr.f32.mxu0 %v334
        %643 = vmatmul.mubr.f32.gmra.mxu0 %v333
        %v644 = vpop.f32.mrf.mxu0
        %v645 = vadd.f32 0.0, %v644
        %v646 = vpop.f32.mrf.mxu0
        %v647 = vadd.f32 0.0, %v646
        %648 = vmatprep.mubr.f32.mxu0 %v336
        %649 = vmatmul.mubr.f32.gmra.mxu0 %v335
        %v650 = vpop.f32.mrf.mxu0
        %v651 = vadd.f32 0.0, %v650
        %v652 = vpop.f32.mrf.mxu0
        %v653 = vadd.f32 0.0, %v652
        %654 = vmatprep.mubr.f32.mxu0 %v338
        %655 = vmatmul.mubr.f32.gmra.mxu0 %v337
        %v656 = vpop.f32.mrf.mxu0
        %v657 = vadd.f32 0.0, %v656
        %v658 = vpop.f32.mrf.mxu0
        %v659 = vadd.f32 0.0, %v658
        %660 = vdwg.mxu0
        %v661 = vmax.f32 %v406, %v567
        %v662 = vmax.f32 %v408, %v569
        %v663 = vmax.f32 %v412, %v573
        %v664 = vmax.f32 %v414, %v575
        %v665 = vmax.f32 %v418, %v579
        %v666 = vmax.f32 %v420, %v581
        %v667 = vmax.f32 %v424, %v585
        %v668 = vmax.f32 %v426, %v587
        %v669 = vmax.f32 %v430, %v591
        %v670 = vmax.f32 %v432, %v593
        %v671 = vmax.f32 %v436, %v597
        %v672 = vmax.f32 %v438, %v599
        %v673 = vmax.f32 %v442, %v603
        %v674 = vmax.f32 %v444, %v605
        %v675 = vmax.f32 %v448, %v609
        %v676 = vmax.f32 %v450, %v611
        %v677 = vmax.f32 %v454, %v615
        %v678 = vmax.f32 %v456, %v617
        %v679 = vmax.f32 %v460, %v621
        %v680 = vmax.f32 %v462, %v623
        %v681 = vmax.f32 %v466, %v627
        %v682 = vmax.f32 %v468, %v629
        %v683 = vmax.f32 %v472, %v633
        %v684 = vmax.f32 %v474, %v635
        %v685 = vmax.f32 %v478, %v639
        %v686 = vmax.f32 %v480, %v641
        %v687 = vmax.f32 %v484, %v645
        %v688 = vmax.f32 %v486, %v647
        %v689 = vmax.f32 %v490, %v651
        %v690 = vmax.f32 %v492, %v653
        %v691 = vmax.f32 %v496, %v657
        %v692 = vmax.f32 %v498, %v659
        %v693 = vmax.f32 %v661, %v662
        %694 = vmax.xlane.f32.xlu0 %v693
        %v695 = vpop.xlane.xlu0 %694
        %v696 = vmax.f32 %v663, %v664
        %697 = vmax.xlane.f32.xlu0 %v696
        %v698 = vpop.xlane.xlu0 %697
        %v699 = vmax.f32 %v665, %v666
        %700 = vmax.xlane.f32.xlu0 %v699
        %v701 = vpop.xlane.xlu0 %700
        %v702 = vmax.f32 %v667, %v668
        %703 = vmax.xlane.f32.xlu0 %v702
        %v704 = vpop.xlane.xlu0 %703
        %v705 = vmax.f32 %v669, %v670
        %706 = vmax.xlane.f32.xlu0 %v705
        %v707 = vpop.xlane.xlu0 %706
        %v708 = vmax.f32 %v671, %v672
        %709 = vmax.xlane.f32.xlu0 %v708
        %v710 = vpop.xlane.xlu0 %709
        %v711 = vmax.f32 %v673, %v674
        %712 = vmax.xlane.f32.xlu0 %v711
        %v713 = vpop.xlane.xlu0 %712
        %v714 = vmax.f32 %v675, %v676
        %715 = vmax.xlane.f32.xlu0 %v714
        %v716 = vpop.xlane.xlu0 %715
        %v717 = vmax.f32 %v677, %v678
        %718 = vmax.xlane.f32.xlu0 %v717
        %v719 = vpop.xlane.xlu0 %718
        %v720 = vmax.f32 %v679, %v680
        %721 = vmax.xlane.f32.xlu0 %v720
        %v722 = vpop.xlane.xlu0 %721
        %v723 = vmax.f32 %v681, %v682
        %724 = vmax.xlane.f32.xlu0 %v723
        %v725 = vpop.xlane.xlu0 %724
        %v726 = vmax.f32 %v683, %v684
        %727 = vmax.xlane.f32.xlu0 %v726
        %v728 = vpop.xlane.xlu0 %727
        %v729 = vmax.f32 %v685, %v686
        %730 = vmax.xlane.f32.xlu0 %v729
        %v731 = vpop.xlane.xlu0 %730
        %v732 = vmax.f32 %v687, %v688
        %733 = vmax.xlane.f32.xlu0 %v732
        %v734 = vpop.xlane.xlu0 %733
        %v735 = vmax.f32 %v689, %v690
        %736 = vmax.xlane.f32.xlu0 %v735
        %v737 = vpop.xlane.xlu0 %736
        %v738 = vmax.f32 %v691, %v692
        %739 = vmax.xlane.f32.xlu0 %v738
        %v740 = vpop.xlane.xlu0 %739
        %v741 = vmul.f32 %v115, %v147
        %v742 = vmul.f32 %v116, %v148
        %v743 = vmul.f32 %v117, %v149
        %v744 = vmul.f32 %v118, %v150
        %v745 = vmul.f32 %v119, %v151
        %v746 = vmul.f32 %v120, %v152
        %v747 = vmul.f32 %v121, %v153
        %v748 = vmul.f32 %v122, %v154
        %v749 = vmul.f32 %v123, %v155
        %v750 = vmul.f32 %v124, %v156
        %v751 = vmul.f32 %v125, %v157
        %v752 = vmul.f32 %v126, %v158
        %v753 = vmul.f32 %v127, %v159
        %v754 = vmul.f32 %v128, %v160
        %v755 = vmul.f32 %v129, %v161
        %v756 = vmul.f32 %v130, %v162
        %v757 = vmul.f32 %v131, %v163
        %v758 = vmul.f32 %v132, %v164
        %v759 = vmul.f32 %v133, %v165
        %v760 = vmul.f32 %v134, %v166
        %v761 = vmul.f32 %v135, %v167
        %v762 = vmul.f32 %v136, %v168
        %v763 = vmul.f32 %v137, %v169
        %v764 = vmul.f32 %v138, %v170
        %v765 = vmul.f32 %v139, %v171
        %v766 = vmul.f32 %v140, %v172
        %v767 = vmul.f32 %v141, %v173
        %v768 = vmul.f32 %v142, %v174
        %v769 = vmul.f32 %v143, %v175
        %v770 = vmul.f32 %v144, %v176
        %v771 = vmul.f32 %v145, %v177
        %v772 = vmul.f32 %v146, %v178
        %v773 = vadd.f32 %v741, %v742
        %774 = vadd.xlane.f32.xlu0 %v773
        %v775 = vpop.xlane.xlu0 %774
        %v776 = vadd.f32 %v743, %v744
        %777 = vadd.xlane.f32.xlu0 %v776
        %v778 = vpop.xlane.xlu0 %777
        %v779 = vadd.f32 %v745, %v746
        %780 = vadd.xlane.f32.xlu0 %v779
        %v781 = vpop.xlane.xlu0 %780
        %v782 = vadd.f32 %v747, %v748
        %783 = vadd.xlane.f32.xlu0 %v782
        %v784 = vpop.xlane.xlu0 %783
        %v785 = vadd.f32 %v749, %v750
        %786 = vadd.xlane.f32.xlu0 %v785
        %v787 = vpop.xlane.xlu0 %786
        %v788 = vadd.f32 %v751, %v752
        %789 = vadd.xlane.f32.xlu0 %v788
        %v790 = vpop.xlane.xlu0 %789
        %v791 = vadd.f32 %v753, %v754
        %792 = vadd.xlane.f32.xlu0 %v791
        %v793 = vpop.xlane.xlu0 %792
        %v794 = vadd.f32 %v755, %v756
        %795 = vadd.xlane.f32.xlu0 %v794
        %v796 = vpop.xlane.xlu0 %795
        %v797 = vadd.f32 %v757, %v758
        %798 = vadd.xlane.f32.xlu0 %v797
        %v799 = vpop.xlane.xlu0 %798
        %v800 = vadd.f32 %v759, %v760
        %801 = vadd.xlane.f32.xlu0 %v800
        %v802 = vpop.xlane.xlu0 %801
        %v803 = vadd.f32 %v761, %v762
        %804 = vadd.xlane.f32.xlu0 %v803
        %v805 = vpop.xlane.xlu0 %804
        %v806 = vadd.f32 %v763, %v764
        %807 = vadd.xlane.f32.xlu0 %v806
        %v808 = vpop.xlane.xlu0 %807
        %v809 = vadd.f32 %v765, %v766
        %810 = vadd.xlane.f32.xlu0 %v809
        %v811 = vpop.xlane.xlu0 %810
        %v812 = vadd.f32 %v767, %v768
        %813 = vadd.xlane.f32.xlu0 %v812
        %v814 = vpop.xlane.xlu0 %813
        %v815 = vadd.f32 %v769, %v770
        %816 = vadd.xlane.f32.xlu0 %v815
        %v817 = vpop.xlane.xlu0 %816
        %v818 = vadd.f32 %v771, %v772
        %819 = vadd.xlane.f32.xlu0 %v818
        %v820 = vpop.xlane.xlu0 %819
        %v821 = vmul.f32 %v775, 2.0
        %v822 = vmul.f32 %v778, 2.0
        %v823 = vmul.f32 %v781, 2.0
        %v824 = vmul.f32 %v784, 2.0
        %v825 = vmul.f32 %v787, 2.0
        %v826 = vmul.f32 %v790, 2.0
        %v827 = vmul.f32 %v793, 2.0
        %v828 = vmul.f32 %v796, 2.0
        %v829 = vmul.f32 %v799, 2.0
        %v830 = vmul.f32 %v802, 2.0
        %v831 = vmul.f32 %v805, 2.0
        %v832 = vmul.f32 %v808, 2.0
        %v833 = vmul.f32 %v811, 2.0
        %v834 = vmul.f32 %v814, 2.0
        %v835 = vmul.f32 %v817, 2.0
        %v836 = vmul.f32 %v820, 2.0
        %v837 = vmul.f32 %v115, %v115
        %v838 = vmul.f32 %v116, %v116
        %v839 = vmul.f32 %v117, %v117
        %v840 = vmul.f32 %v118, %v118
        %v841 = vmul.f32 %v119, %v119
        %v842 = vmul.f32 %v120, %v120
        %v843 = vmul.f32 %v121, %v121
        %v844 = vmul.f32 %v122, %v122
        %v845 = vmul.f32 %v123, %v123
        %v846 = vmul.f32 %v124, %v124
        %v847 = vmul.f32 %v125, %v125
        %v848 = vmul.f32 %v126, %v126
        %v849 = vmul.f32 %v127, %v127
        %v850 = vmul.f32 %v128, %v128
        %v851 = vmul.f32 %v129, %v129
        %v852 = vmul.f32 %v130, %v130
        %v853 = vmul.f32 %v131, %v131
        %v854 = vmul.f32 %v132, %v132
        %v855 = vmul.f32 %v133, %v133
        %v856 = vmul.f32 %v134, %v134
        %v857 = vmul.f32 %v135, %v135
        %v858 = vmul.f32 %v136, %v136
        %v859 = vmul.f32 %v137, %v137
        %v860 = vmul.f32 %v138, %v138
        %v861 = vmul.f32 %v139, %v139
        %v862 = vmul.f32 %v140, %v140
        %v863 = vmul.f32 %v141, %v141
        %v864 = vmul.f32 %v142, %v142
        %v865 = vmul.f32 %v143, %v143
        %v866 = vmul.f32 %v144, %v144
        %v867 = vmul.f32 %v145, %v145
        %v868 = vmul.f32 %v146, %v146
        %v869 = vadd.f32 %v837, %v838
        %870 = vadd.xlane.f32.xlu0 %v869
        %v871 = vpop.xlane.xlu0 %870
        %v872 = vadd.f32 %v839, %v840
        %873 = vadd.xlane.f32.xlu0 %v872
        %v874 = vpop.xlane.xlu0 %873
        %v875 = vadd.f32 %v841, %v842
        %876 = vadd.xlane.f32.xlu0 %v875
        %v877 = vpop.xlane.xlu0 %876
        %v878 = vadd.f32 %v843, %v844
        %879 = vadd.xlane.f32.xlu0 %v878
        %v880 = vpop.xlane.xlu0 %879
        %v881 = vadd.f32 %v845, %v846
        %882 = vadd.xlane.f32.xlu0 %v881
        %v883 = vpop.xlane.xlu0 %882
        %v884 = vadd.f32 %v847, %v848
        %885 = vadd.xlane.f32.xlu0 %v884
        %v886 = vpop.xlane.xlu0 %885
        %v887 = vadd.f32 %v849, %v850
        %888 = vadd.xlane.f32.xlu0 %v887
        %v889 = vpop.xlane.xlu0 %888
        %v890 = vadd.f32 %v851, %v852
        %891 = vadd.xlane.f32.xlu0 %v890
        %v892 = vpop.xlane.xlu0 %891
        %v893 = vadd.f32 %v853, %v854
        %894 = vadd.xlane.f32.xlu0 %v893
        %v895 = vpop.xlane.xlu0 %894
        %v896 = vadd.f32 %v855, %v856
        %897 = vadd.xlane.f32.xlu0 %v896
        %v898 = vpop.xlane.xlu0 %897
        %v899 = vadd.f32 %v857, %v858
        %900 = vadd.xlane.f32.xlu0 %v899
        %v901 = vpop.xlane.xlu0 %900
        %v902 = vadd.f32 %v859, %v860
        %903 = vadd.xlane.f32.xlu0 %v902
        %v904 = vpop.xlane.xlu0 %903
        %v905 = vadd.f32 %v861, %v862
        %906 = vadd.xlane.f32.xlu0 %v905
        %v907 = vpop.xlane.xlu0 %906
        %v908 = vadd.f32 %v863, %v864
        %909 = vadd.xlane.f32.xlu0 %v908
        %v910 = vpop.xlane.xlu0 %909
        %v911 = vadd.f32 %v865, %v866
        %912 = vadd.xlane.f32.xlu0 %v911
        %v913 = vpop.xlane.xlu0 %912
        %v914 = vadd.f32 %v867, %v868
        %915 = vadd.xlane.f32.xlu0 %v914
        %v916 = vpop.xlane.xlu0 %915
        %v917 = vmul.f32 %v871, 2.0
        %v918 = vmul.f32 %v874, 2.0
        %v919 = vmul.f32 %v877, 2.0
        %v920 = vmul.f32 %v880, 2.0
        %v921 = vmul.f32 %v883, 2.0
        %v922 = vmul.f32 %v886, 2.0
        %v923 = vmul.f32 %v889, 2.0
        %v924 = vmul.f32 %v892, 2.0
        %v925 = vmul.f32 %v895, 2.0
        %v926 = vmul.f32 %v898, 2.0
        %v927 = vmul.f32 %v901, 2.0
        %v928 = vmul.f32 %v904, 2.0
        %v929 = vmul.f32 %v907, 2.0
        %v930 = vmul.f32 %v910, 2.0
        %v931 = vmul.f32 %v913, 2.0
        %v932 = vmul.f32 %v916, 2.0
        %v933 = vsub.f32 %v406, %v695
        %v934 = vsub.f32 %v408, %v695
        %v935 = vsub.f32 %v412, %v698
        %v936 = vsub.f32 %v414, %v698
        %v937 = vsub.f32 %v418, %v701
        %v938 = vsub.f32 %v420, %v701
        %v939 = vsub.f32 %v424, %v704
        %v940 = vsub.f32 %v426, %v704
        %v941 = vsub.f32 %v430, %v707
        %v942 = vsub.f32 %v432, %v707
        %v943 = vsub.f32 %v436, %v710
        %v944 = vsub.f32 %v438, %v710
        %v945 = vsub.f32 %v442, %v713
        %v946 = vsub.f32 %v444, %v713
        %v947 = vsub.f32 %v448, %v716
        %v948 = vsub.f32 %v450, %v716
        %v949 = vsub.f32 %v454, %v719
        %v950 = vsub.f32 %v456, %v719
        %v951 = vsub.f32 %v460, %v722
        %v952 = vsub.f32 %v462, %v722
        %v953 = vsub.f32 %v466, %v725
        %v954 = vsub.f32 %v468, %v725
        %v955 = vsub.f32 %v472, %v728
        %v956 = vsub.f32 %v474, %v728
        %v957 = vsub.f32 %v478, %v731
        %v958 = vsub.f32 %v480, %v731
        %v959 = vsub.f32 %v484, %v734
        %v960 = vsub.f32 %v486, %v734
        %v961 = vsub.f32 %v490, %v737
        %v962 = vsub.f32 %v492, %v737
        %v963 = vsub.f32 %v496, %v740
        %v964 = vsub.f32 %v498, %v740
        %v965 = vmul.f32 %v933, 1.442695
        %v966 = vpow.pop %v965
        %v967 = vmul.f32 %v934, 1.442695
        %v968 = vpow.pop %v967
        %v969 = vmul.f32 %v935, 1.442695
        %v970 = vpow.pop %v969
        %v971 = vmul.f32 %v936, 1.442695
        %v972 = vpow.pop %v971
        %v973 = vmul.f32 %v937, 1.442695
        %v974 = vpow.pop %v973
        %v975 = vmul.f32 %v938, 1.442695
        %v976 = vpow.pop %v975
        %v977 = vmul.f32 %v939, 1.442695
        %v978 = vpow.pop %v977
        %v979 = vmul.f32 %v940, 1.442695
        %v980 = vpow.pop %v979
        %v981 = vmul.f32 %v941, 1.442695
        %v982 = vpow.pop %v981
        %v983 = vmul.f32 %v942, 1.442695
        %v984 = vpow.pop %v983
        %v985 = vmul.f32 %v943, 1.442695
        %v986 = vpow.pop %v985
        %v987 = vmul.f32 %v944, 1.442695
        %v988 = vpow.pop %v987
        %v989 = vmul.f32 %v945, 1.442695
        %v990 = vpow.pop %v989
        %v991 = vmul.f32 %v946, 1.442695
        %v992 = vpow.pop %v991
        %v993 = vmul.f32 %v947, 1.442695
        %v994 = vpow.pop %v993
        %v995 = vmul.f32 %v948, 1.442695
        %v996 = vpow.pop %v995
        %v997 = vmul.f32 %v949, 1.442695
        %v998 = vpow.pop %v997
        %v999 = vmul.f32 %v950, 1.442695
        %v1000 = vpow.pop %v999
        %v1001 = vmul.f32 %v951, 1.442695
        %v1002 = vpow.pop %v1001
        %v1003 = vmul.f32 %v952, 1.442695
        %v1004 = vpow.pop %v1003
        %v1005 = vmul.f32 %v953, 1.442695
        %v1006 = vpow.pop %v1005
        %v1007 = vmul.f32 %v954, 1.442695
        %v1008 = vpow.pop %v1007
        %v1009 = vmul.f32 %v955, 1.442695
        %v1010 = vpow.pop %v1009
        %v1011 = vmul.f32 %v956, 1.442695
        %v1012 = vpow.pop %v1011
        %v1013 = vmul.f32 %v957, 1.442695
        %v1014 = vpow.pop %v1013
        %v1015 = vmul.f32 %v958, 1.442695
        %v1016 = vpow.pop %v1015
        %v1017 = vmul.f32 %v959, 1.442695
        %v1018 = vpow.pop %v1017
        %v1019 = vmul.f32 %v960, 1.442695
        %v1020 = vpow.pop %v1019
        %v1021 = vmul.f32 %v961, 1.442695
        %v1022 = vpow.pop %v1021
        %v1023 = vmul.f32 %v962, 1.442695
        %v1024 = vpow.pop %v1023
        %v1025 = vmul.f32 %v963, 1.442695
        %v1026 = vpow.pop %v1025
        %v1027 = vmul.f32 %v964, 1.442695
        %v1028 = vpow.pop %v1027
        %v1029 = vsub.f32 %v567, %v695
        %v1030 = vsub.f32 %v569, %v695
        %v1031 = vsub.f32 %v573, %v698
        %v1032 = vsub.f32 %v575, %v698
        %v1033 = vsub.f32 %v579, %v701
        %v1034 = vsub.f32 %v581, %v701
        %v1035 = vsub.f32 %v585, %v704
        %v1036 = vsub.f32 %v587, %v704
        %v1037 = vsub.f32 %v591, %v707
        %v1038 = vsub.f32 %v593, %v707
        %v1039 = vsub.f32 %v597, %v710
        %v1040 = vsub.f32 %v599, %v710
        %v1041 = vsub.f32 %v603, %v713
        %v1042 = vsub.f32 %v605, %v713
        %v1043 = vsub.f32 %v609, %v716
        %v1044 = vsub.f32 %v611, %v716
        %v1045 = vsub.f32 %v615, %v719
        %v1046 = vsub.f32 %v617, %v719
        %v1047 = vsub.f32 %v621, %v722
        %v1048 = vsub.f32 %v623, %v722
        %v1049 = vsub.f32 %v627, %v725
        %v1050 = vsub.f32 %v629, %v725
        %v1051 = vsub.f32 %v633, %v728
        %v1052 = vsub.f32 %v635, %v728
        %v1053 = vsub.f32 %v639, %v731
        %v1054 = vsub.f32 %v641, %v731
        %v1055 = vsub.f32 %v645, %v734
        %v1056 = vsub.f32 %v647, %v734
        %v1057 = vsub.f32 %v651, %v737
        %v1058 = vsub.f32 %v653, %v737
        %v1059 = vsub.f32 %v657, %v740
        %v1060 = vsub.f32 %v659, %v740
        %v1061 = vmul.f32 %v1029, 1.442695
        %v1062 = vpow.pop %v1061
        %v1063 = vmul.f32 %v1030, 1.442695
        %v1064 = vpow.pop %v1063
        %v1065 = vmul.f32 %v1031, 1.442695
        %v1066 = vpow.pop %v1065
        %v1067 = vmul.f32 %v1032, 1.442695
        %v1068 = vpow.pop %v1067
        %v1069 = vmul.f32 %v1033, 1.442695
        %v1070 = vpow.pop %v1069
        %v1071 = vmul.f32 %v1034, 1.442695
        %v1072 = vpow.pop %v1071
        %v1073 = vmul.f32 %v1035, 1.442695
        %v1074 = vpow.pop %v1073
        %v1075 = vmul.f32 %v1036, 1.442695
        %v1076 = vpow.pop %v1075
        %v1077 = vmul.f32 %v1037, 1.442695
        %v1078 = vpow.pop %v1077
        %v1079 = vmul.f32 %v1038, 1.442695
        %v1080 = vpow.pop %v1079
        %v1081 = vmul.f32 %v1039, 1.442695
        %v1082 = vpow.pop %v1081
        %v1083 = vmul.f32 %v1040, 1.442695
        %v1084 = vpow.pop %v1083
        %v1085 = vmul.f32 %v1041, 1.442695
        %v1086 = vpow.pop %v1085
        %v1087 = vmul.f32 %v1042, 1.442695
        %v1088 = vpow.pop %v1087
        %v1089 = vmul.f32 %v1043, 1.442695
        %v1090 = vpow.pop %v1089
        %v1091 = vmul.f32 %v1044, 1.442695
        %v1092 = vpow.pop %v1091
        %v1093 = vmul.f32 %v1045, 1.442695
        %v1094 = vpow.pop %v1093
        %v1095 = vmul.f32 %v1046, 1.442695
        %v1096 = vpow.pop %v1095
        %v1097 = vmul.f32 %v1047, 1.442695
        %v1098 = vpow.pop %v1097
        %v1099 = vmul.f32 %v1048, 1.442695
        %v1100 = vpow.pop %v1099
        %v1101 = vmul.f32 %v1049, 1.442695
        %v1102 = vpow.pop %v1101
        %v1103 = vmul.f32 %v1050, 1.442695
        %v1104 = vpow.pop %v1103
        %v1105 = vmul.f32 %v1051, 1.442695
        %v1106 = vpow.pop %v1105
        %v1107 = vmul.f32 %v1052, 1.442695
        %v1108 = vpow.pop %v1107
        %v1109 = vmul.f32 %v1053, 1.442695
        %v1110 = vpow.pop %v1109
        %v1111 = vmul.f32 %v1054, 1.442695
        %v1112 = vpow.pop %v1111
        %v1113 = vmul.f32 %v1055, 1.442695
        %v1114 = vpow.pop %v1113
        %v1115 = vmul.f32 %v1056, 1.442695
        %v1116 = vpow.pop %v1115
        %v1117 = vmul.f32 %v1057, 1.442695
        %v1118 = vpow.pop %v1117
        %v1119 = vmul.f32 %v1058, 1.442695
        %v1120 = vpow.pop %v1119
        %v1121 = vmul.f32 %v1059, 1.442695
        %v1122 = vpow.pop %v1121
        %v1123 = vmul.f32 %v1060, 1.442695
        %v1124 = vpow.pop %v1123
        %v1125 = vadd.f32 %v966, %v1062
        %v1126 = vadd.f32 %v968, %v1064
        %v1127 = vadd.f32 %v970, %v1066
        %v1128 = vadd.f32 %v972, %v1068
        %v1129 = vadd.f32 %v974, %v1070
        %v1130 = vadd.f32 %v976, %v1072
        %v1131 = vadd.f32 %v978, %v1074
        %v1132 = vadd.f32 %v980, %v1076
        %v1133 = vadd.f32 %v982, %v1078
        %v1134 = vadd.f32 %v984, %v1080
        %v1135 = vadd.f32 %v986, %v1082
        %v1136 = vadd.f32 %v988, %v1084
        %v1137 = vadd.f32 %v990, %v1086
        %v1138 = vadd.f32 %v992, %v1088
        %v1139 = vadd.f32 %v994, %v1090
        %v1140 = vadd.f32 %v996, %v1092
        %v1141 = vadd.f32 %v998, %v1094
        %v1142 = vadd.f32 %v1000, %v1096
        %v1143 = vadd.f32 %v1002, %v1098
        %v1144 = vadd.f32 %v1004, %v1100
        %v1145 = vadd.f32 %v1006, %v1102
        %v1146 = vadd.f32 %v1008, %v1104
        %v1147 = vadd.f32 %v1010, %v1106
        %v1148 = vadd.f32 %v1012, %v1108
        %v1149 = vadd.f32 %v1014, %v1110
        %v1150 = vadd.f32 %v1016, %v1112
        %v1151 = vadd.f32 %v1018, %v1114
        %v1152 = vadd.f32 %v1020, %v1116
        %v1153 = vadd.f32 %v1022, %v1118
        %v1154 = vadd.f32 %v1024, %v1120
        %v1155 = vadd.f32 %v1026, %v1122
        %v1156 = vadd.f32 %v1028, %v1124
        %v1157 = vadd.f32 %v1125, %v1126
        %1158 = vadd.xlane.f32.xlu0 %v1157
        %v1159 = vpop.xlane.xlu0 %1158
        %v1160 = vadd.f32 %v1127, %v1128
        %1161 = vadd.xlane.f32.xlu0 %v1160
        %v1162 = vpop.xlane.xlu0 %1161
        %v1163 = vadd.f32 %v1129, %v1130
        %1164 = vadd.xlane.f32.xlu0 %v1163
        %v1165 = vpop.xlane.xlu0 %1164
        %v1166 = vadd.f32 %v1131, %v1132
        %1167 = vadd.xlane.f32.xlu0 %v1166
        %v1168 = vpop.xlane.xlu0 %1167
        %v1169 = vadd.f32 %v1133, %v1134
        %1170 = vadd.xlane.f32.xlu0 %v1169
        %v1171 = vpop.xlane.xlu0 %1170
        %v1172 = vadd.f32 %v1135, %v1136
        %1173 = vadd.xlane.f32.xlu0 %v1172
        %v1174 = vpop.xlane.xlu0 %1173
        %v1175 = vadd.f32 %v1137, %v1138
        %1176 = vadd.xlane.f32.xlu0 %v1175
        %v1177 = vpop.xlane.xlu0 %1176
        %v1178 = vadd.f32 %v1139, %v1140
        %1179 = vadd.xlane.f32.xlu0 %v1178
        %v1180 = vpop.xlane.xlu0 %1179
        %v1181 = vadd.f32 %v1141, %v1142
        %1182 = vadd.xlane.f32.xlu0 %v1181
        %v1183 = vpop.xlane.xlu0 %1182
        %v1184 = vadd.f32 %v1143, %v1144
        %1185 = vadd.xlane.f32.xlu0 %v1184
        %v1186 = vpop.xlane.xlu0 %1185
        %v1187 = vadd.f32 %v1145, %v1146
        %1188 = vadd.xlane.f32.xlu0 %v1187
        %v1189 = vpop.xlane.xlu0 %1188
        %v1190 = vadd.f32 %v1147, %v1148
        %1191 = vadd.xlane.f32.xlu0 %v1190
        %v1192 = vpop.xlane.xlu0 %1191
        %v1193 = vadd.f32 %v1149, %v1150
        %1194 = vadd.xlane.f32.xlu0 %v1193
        %v1195 = vpop.xlane.xlu0 %1194
        %v1196 = vadd.f32 %v1151, %v1152
        %1197 = vadd.xlane.f32.xlu0 %v1196
        %v1198 = vpop.xlane.xlu0 %1197
        %v1199 = vadd.f32 %v1153, %v1154
        %1200 = vadd.xlane.f32.xlu0 %v1199
        %v1201 = vpop.xlane.xlu0 %1200
        %v1202 = vadd.f32 %v1155, %v1156
        %1203 = vadd.xlane.f32.xlu0 %v1202
        %v1204 = vpop.xlane.xlu0 %1203
        %v1205 = vsub.f32 %v917, %v695
        %v1206 = vsub.f32 %v918, %v698
        %v1207 = vsub.f32 %v919, %v701
        %v1208 = vsub.f32 %v920, %v704
        %v1209 = vsub.f32 %v921, %v707
        %v1210 = vsub.f32 %v922, %v710
        %v1211 = vsub.f32 %v923, %v713
        %v1212 = vsub.f32 %v924, %v716
        %v1213 = vsub.f32 %v925, %v719
        %v1214 = vsub.f32 %v926, %v722
        %v1215 = vsub.f32 %v927, %v725
        %v1216 = vsub.f32 %v928, %v728
        %v1217 = vsub.f32 %v929, %v731
        %v1218 = vsub.f32 %v930, %v734
        %v1219 = vsub.f32 %v931, %v737
        %v1220 = vsub.f32 %v932, %v740
        %v1221 = vmul.f32 %v1205, 1.442695
        %v1222 = vpow.pop %v1221
        %v1223 = vmul.f32 %v1206, 1.442695
        %v1224 = vpow.pop %v1223
        %v1225 = vmul.f32 %v1207, 1.442695
        %v1226 = vpow.pop %v1225
        %v1227 = vmul.f32 %v1208, 1.442695
        %v1228 = vpow.pop %v1227
        %v1229 = vmul.f32 %v1209, 1.442695
        %v1230 = vpow.pop %v1229
        %v1231 = vmul.f32 %v1210, 1.442695
        %v1232 = vpow.pop %v1231
        %v1233 = vmul.f32 %v1211, 1.442695
        %v1234 = vpow.pop %v1233
        %v1235 = vmul.f32 %v1212, 1.442695
        %v1236 = vpow.pop %v1235
        %v1237 = vmul.f32 %v1213, 1.442695
        %v1238 = vpow.pop %v1237
        %v1239 = vmul.f32 %v1214, 1.442695
        %v1240 = vpow.pop %v1239
        %v1241 = vmul.f32 %v1215, 1.442695
        %v1242 = vpow.pop %v1241
        %v1243 = vmul.f32 %v1216, 1.442695
        %v1244 = vpow.pop %v1243
        %v1245 = vmul.f32 %v1217, 1.442695
        %v1246 = vpow.pop %v1245
        %v1247 = vmul.f32 %v1218, 1.442695
        %v1248 = vpow.pop %v1247
        %v1249 = vmul.f32 %v1219, 1.442695
        %v1250 = vpow.pop %v1249
        %v1251 = vmul.f32 %v1220, 1.442695
        %v1252 = vpow.pop %v1251
        %v1253 = vsub.f32 %v1159, %v1222
        %v1254 = vsub.f32 %v1162, %v1224
        %v1255 = vsub.f32 %v1165, %v1226
        %v1256 = vsub.f32 %v1168, %v1228
        %v1257 = vsub.f32 %v1171, %v1230
        %v1258 = vsub.f32 %v1174, %v1232
        %v1259 = vsub.f32 %v1177, %v1234
        %v1260 = vsub.f32 %v1180, %v1236
        %v1261 = vsub.f32 %v1183, %v1238
        %v1262 = vsub.f32 %v1186, %v1240
        %v1263 = vsub.f32 %v1189, %v1242
        %v1264 = vsub.f32 %v1192, %v1244
        %v1265 = vsub.f32 %v1195, %v1246
        %v1266 = vsub.f32 %v1198, %v1248
        %v1267 = vsub.f32 %v1201, %v1250
        %v1268 = vsub.f32 %v1204, %v1252
        %v1269 = vsub.f32 %v821, %v695
        %v1270 = vsub.f32 %v822, %v698
        %v1271 = vsub.f32 %v823, %v701
        %v1272 = vsub.f32 %v824, %v704
        %v1273 = vsub.f32 %v825, %v707
        %v1274 = vsub.f32 %v826, %v710
        %v1275 = vsub.f32 %v827, %v713
        %v1276 = vsub.f32 %v828, %v716
        %v1277 = vsub.f32 %v829, %v719
        %v1278 = vsub.f32 %v830, %v722
        %v1279 = vsub.f32 %v831, %v725
        %v1280 = vsub.f32 %v832, %v728
        %v1281 = vsub.f32 %v833, %v731
        %v1282 = vsub.f32 %v834, %v734
        %v1283 = vsub.f32 %v835, %v737
        %v1284 = vsub.f32 %v836, %v740
        %v1285 = vlog2.pop %v1253
        %v1286 = vmul.f32 %v1285, 0.6931472
        %v1287 = vlog2.pop %v1254
        %v1288 = vmul.f32 %v1287, 0.6931472
        %v1289 = vlog2.pop %v1255
        %v1290 = vmul.f32 %v1289, 0.6931472
        %v1291 = vlog2.pop %v1256
        %v1292 = vmul.f32 %v1291, 0.6931472
        %v1293 = vlog2.pop %v1257
        %v1294 = vmul.f32 %v1293, 0.6931472
        %v1295 = vlog2.pop %v1258
        %v1296 = vmul.f32 %v1295, 0.6931472
        %v1297 = vlog2.pop %v1259
        %v1298 = vmul.f32 %v1297, 0.6931472
        %v1299 = vlog2.pop %v1260
        %v1300 = vmul.f32 %v1299, 0.6931472
        %v1301 = vlog2.pop %v1261
        %v1302 = vmul.f32 %v1301, 0.6931472
        %v1303 = vlog2.pop %v1262
        %v1304 = vmul.f32 %v1303, 0.6931472
        %v1305 = vlog2.pop %v1263
        %v1306 = vmul.f32 %v1305, 0.6931472
        %v1307 = vlog2.pop %v1264
        %v1308 = vmul.f32 %v1307, 0.6931472
        %v1309 = vlog2.pop %v1265
        %v1310 = vmul.f32 %v1309, 0.6931472
        %v1311 = vlog2.pop %v1266
        %v1312 = vmul.f32 %v1311, 0.6931472
        %v1313 = vlog2.pop %v1267
        %v1314 = vmul.f32 %v1313, 0.6931472
        %v1315 = vlog2.pop %v1268
        %v1316 = vmul.f32 %v1315, 0.6931472
        %v1317 = vsub.f32 %v1269, %v1286
        %v1318 = vsub.f32 %v1270, %v1288
        %v1319 = vsub.f32 %v1271, %v1290
        %v1320 = vsub.f32 %v1272, %v1292
        %v1321 = vsub.f32 %v1273, %v1294
        %v1322 = vsub.f32 %v1274, %v1296
        %v1323 = vsub.f32 %v1275, %v1298
        %v1324 = vsub.f32 %v1276, %v1300
        %v1325 = vsub.f32 %v1277, %v1302
        %v1326 = vsub.f32 %v1278, %v1304
        %v1327 = vsub.f32 %v1279, %v1306
        %v1328 = vsub.f32 %v1280, %v1308
        %v1329 = vsub.f32 %v1281, %v1310
        %v1330 = vsub.f32 %v1282, %v1312
        %v1331 = vsub.f32 %v1283, %v1314
        %v1332 = vsub.f32 %v1284, %v1316
        %v1333 = vsub.f32 0.0, %v1317
        %v1334 = vsub.f32 0.0, %v1318
        %v1335 = vsub.f32 0.0, %v1319
        %v1336 = vsub.f32 0.0, %v1320
        %v1337 = vsub.f32 0.0, %v1321
        %v1338 = vsub.f32 0.0, %v1322
        %v1339 = vsub.f32 0.0, %v1323
        %v1340 = vsub.f32 0.0, %v1324
        %v1341 = vsub.f32 0.0, %v1325
        %v1342 = vsub.f32 0.0, %v1326
        %v1343 = vsub.f32 0.0, %v1327
        %v1344 = vsub.f32 0.0, %v1328
        %v1345 = vsub.f32 0.0, %v1329
        %v1346 = vsub.f32 0.0, %v1330
        %v1347 = vsub.f32 0.0, %v1331
        %v1348 = vsub.f32 0.0, %v1332
        %v1365 = vlaneseq
        %v1366 = vand.u32 %v1365, 127
        %v1367 = vlaneseq
        %v1368 = vshrl.u32 %v1367, 7
        %v1369 = vsub.s32 %v1366, %v1368
        %v1370 = vrot.slane %v1333, %v1369
        %v1371 = vadd.s32 %v1366, 4294967288
        %v1372 = vlaneseq
        %v1373 = vshrl.u32 %v1372, 7
        %v1374 = vsub.s32 %v1371, %v1373
        %v1375 = vrot.slane %v1334, %v1374
        %vm1376 = vcmask 130112
        %v1377 = vsel %vm1376, %v1375, %v1370
        %v1378 = vadd.s32 %v1366, 4294967280
        %v1379 = vlaneseq
        %v1380 = vshrl.u32 %v1379, 7
        %v1381 = vsub.s32 %v1378, %v1380
        %v1382 = vrot.slane %v1335, %v1381
        %vm1383 = vcmask 195712
        %v1384 = vsel %vm1383, %v1382, %v1377
        %v1385 = vadd.s32 %v1366, 4294967272
        %v1386 = vlaneseq
        %v1387 = vshrl.u32 %v1386, 7
        %v1388 = vsub.s32 %v1385, %v1387
        %v1389 = vrot.slane %v1336, %v1388
        %vm1390 = vcmask 261312
        %v1391 = vsel %vm1390, %v1389, %v1384
        %v1392 = vadd.s32 %v1366, 4294967264
        %v1393 = vlaneseq
        %v1394 = vshrl.u32 %v1393, 7
        %v1395 = vsub.s32 %v1392, %v1394
        %v1396 = vrot.slane %v1337, %v1395
        %vm1397 = vcmask 326912
        %v1398 = vsel %vm1397, %v1396, %v1391
        %v1399 = vadd.s32 %v1366, 4294967256
        %v1400 = vlaneseq
        %v1401 = vshrl.u32 %v1400, 7
        %v1402 = vsub.s32 %v1399, %v1401
        %v1403 = vrot.slane %v1338, %v1402
        %vm1404 = vcmask 392512
        %v1405 = vsel %vm1404, %v1403, %v1398
        %v1406 = vadd.s32 %v1366, 4294967248
        %v1407 = vlaneseq
        %v1408 = vshrl.u32 %v1407, 7
        %v1409 = vsub.s32 %v1406, %v1408
        %v1410 = vrot.slane %v1339, %v1409
        %vm1411 = vcmask 458112
        %v1412 = vsel %vm1411, %v1410, %v1405
        %v1413 = vadd.s32 %v1366, 4294967240
        %v1414 = vlaneseq
        %v1415 = vshrl.u32 %v1414, 7
        %v1416 = vsub.s32 %v1413, %v1415
        %v1417 = vrot.slane %v1340, %v1416
        %vm1418 = vcmask 523712
        %v1419 = vsel %vm1418, %v1417, %v1412
        %v1420 = vadd.s32 %v1366, 4294967232
        %v1421 = vlaneseq
        %v1422 = vshrl.u32 %v1421, 7
        %v1423 = vsub.s32 %v1420, %v1422
        %v1424 = vrot.slane %v1341, %v1423
        %vm1425 = vcmask 589312
        %v1426 = vsel %vm1425, %v1424, %v1419
        %v1427 = vadd.s32 %v1366, 4294967224
        %v1428 = vlaneseq
        %v1429 = vshrl.u32 %v1428, 7
        %v1430 = vsub.s32 %v1427, %v1429
        %v1431 = vrot.slane %v1342, %v1430
        %vm1432 = vcmask 654912
        %v1433 = vsel %vm1432, %v1431, %v1426
        %v1434 = vadd.s32 %v1366, 4294967216
        %v1435 = vlaneseq
        %v1436 = vshrl.u32 %v1435, 7
        %v1437 = vsub.s32 %v1434, %v1436
        %v1438 = vrot.slane %v1343, %v1437
        %vm1439 = vcmask 720512
        %v1440 = vsel %vm1439, %v1438, %v1433
        %v1441 = vadd.s32 %v1366, 4294967208
        %v1442 = vlaneseq
        %v1443 = vshrl.u32 %v1442, 7
        %v1444 = vsub.s32 %v1441, %v1443
        %v1445 = vrot.slane %v1344, %v1444
        %vm1446 = vcmask 786112
        %v1447 = vsel %vm1446, %v1445, %v1440
        %v1448 = vadd.s32 %v1366, 4294967200
        %v1449 = vlaneseq
        %v1450 = vshrl.u32 %v1449, 7
        %v1451 = vsub.s32 %v1448, %v1450
        %v1452 = vrot.slane %v1345, %v1451
        %vm1453 = vcmask 851712
        %v1454 = vsel %vm1453, %v1452, %v1447
        %v1455 = vadd.s32 %v1366, 4294967192
        %v1456 = vlaneseq
        %v1457 = vshrl.u32 %v1456, 7
        %v1458 = vsub.s32 %v1455, %v1457
        %v1459 = vrot.slane %v1346, %v1458
        %vm1460 = vcmask 917312
        %v1461 = vsel %vm1460, %v1459, %v1454
        %v1462 = vadd.s32 %v1366, 4294967184
        %v1463 = vlaneseq
        %v1464 = vshrl.u32 %v1463, 7
        %v1465 = vsub.s32 %v1462, %v1464
        %v1466 = vrot.slane %v1347, %v1465
        %vm1467 = vcmask 982912
        %v1468 = vsel %vm1467, %v1466, %v1461
        %v1469 = vadd.s32 %v1366, 4294967176
        %v1470 = vlaneseq
        %v1471 = vshrl.u32 %v1470, 7
        %v1472 = vsub.s32 %v1469, %v1471
        %v1473 = vrot.slane %v1348, %v1472
        %vm1474 = vcmask 1048512
        %v1475 = vsel %vm1474, %v1473, %v1468
        %1477 = vst [vmem:[%s108] sm:$0x1] %v1475
        %s1478 = sand.u32 %s45, 1
        %s1479 = scalar_lea.sflag [#allocation4], %s1478
        %s1480 = sand.u32 %s45, 1
        %s1481 = scalar_lea.vmem [#allocation5], %s1480
        // Predicated region
        $region29: #{tpu_custom_call.1} parent=23 // pred_check
          %p1482 = pneg %p55
        $region30: #{tpu_custom_call.1} parent=23 // pred_check_branch
          %1484 = sbr.rel (%p1482) target = $region32
        $region31: #{tpu_custom_call.1} parent=23 // pred_region
          %s1486 = ssub.s32 16, 16
          %1487 = vsyncadd %s1479, %s1486
          %s1488 = smul.addr %s16, 16
          %s1489 = scalar_lea.hbm %s1, %s1488
          %s1491 = sshll.u32 %s1481, 4
          %s1492 = int_to_ptr.vmem [resolvable:$true] %s1491
          %1494 = dma.vmem_to_hbm [thread:$0]  %s1492, 16, %s1489, %s1479
        $region32: #{tpu_custom_call.1} parent=23 // pred_fallthru
          _
      $region24: #{tpu_custom_call.1} parent=5 // pred_fallthru
        _
      %p1495 = scmp.le.s32.totalorder 2, %s11
      // Predicated region
      $region33: #{tpu_custom_call.1} parent=5 // pred_check
        %p1496 = pneg %p1495
      $region34: #{tpu_custom_call.1} parent=5 // pred_check_branch
        %1498 = sbr.rel (%p1496) target = $region36
      $region35: #{tpu_custom_call.1} parent=5 // pred_region
        %s1499 = ssub.s32 %s11, 2
        // Predicated region
        $region37: #{tpu_custom_call.1} parent=35 // pred_check
          %p1500 = pneg %p61
        $region38: #{tpu_custom_call.1} parent=35 // pred_check_branch
          %1502 = sbr.rel (%p1500) target = $region40
        $region39: #{tpu_custom_call.1} parent=35 // pred_region
          %s1503 = sand.u32 %s46, 1
          %s1504 = scalar_lea.sflag [#allocation4], %s1503
          %s1505 = sand.u32 %s46, 1
          %s1506 = scalar_lea.vmem [#allocation5], %s1505
          %1507 = dma.done %s1504, 16
        $region40: #{tpu_custom_call.1} parent=35 // pred_fallthru
          _
      $region36: #{tpu_custom_call.1} parent=5 // pred_fallthru
        _
    $region6: #{tpu_custom_call.1} parent=1 // loop_footer
      %s15 = sadd.s32 1, %s11
    $region7: #{tpu_custom_call.1} parent=1 // loop_footer_branch
      %10 = sbr.rel target = $region3
    $region8: #{tpu_custom_call.1} parent=1 // loop_exit
      _
    %1508 = vsyncpa [#allocation3], 1
    %s1509 = scalar_lea.sflag [#allocation3], 1
    %1510 = vsyncpa %s1509, 1
    %1511 = vsyncpa [#allocation4], 1
    %s1512 = scalar_lea.sflag [#allocation4], 1
    %1513 = vsyncpa %s1512, 1

// kernel: tpu_custom_call.1
$region0: #{tpu_custom_call.1}
  #allocation0 [shape = 'u32[]', space=smem, size = 0x4, offset = 0x4, fixed_abs, tag = 'smem constant byte address 0x4 - core index']
  #allocation1 [shape = 'u32[144,128]{1,0:T(1,128)}', space=vmem, size = 0x12000, scoped, tag = 'internal scratch']
  %s0 = inlined_call_operand.hbm [shape: f32[256,512], index: 0, kind: input, shape index: {}]
  %s1 = inlined_call_operand.hbm [shape: f32[1,256], index: 1, kind: output, shape index: {}]
  %s2 = sld [smem:[#allocation0]]
  $region41: #{tpu_custom_call.1} parent=0
    _
  %s4 = ssub.s32 1, %s2
  %s5 = scalar_select 0, %s4, %s2
  $region1: #{tpu_custom_call.1} parent=0
    #allocation2 [shape = 'u8[524288]{0}', space=vmem, size = 0x80000, scoped, tag = 'input window, operand 0, single buffered']
    #allocation3 [shape = 's32[2]{0}', space=sflag, size = 0x8, scoped, tag = 'scoped memory for tpu_custom_call.1']
    #allocation4 [shape = 's32[2]{0}', space=sflag, size = 0x8, scoped, tag = 'scoped memory for tpu_custom_call.1']
    #allocation5 [shape = 'u8[1024]{0}', space=vmem, size = 0x400, scoped, tag = 'output window, operand 0']
    %6 = vsyncpa [#allocation3], 0
    %7 = vsyncpa [#allocation4], 0
    %s8 = scalar_lea.sflag [#allocation4], 1
    %9 = vsyncpa %s8, 0
    loop: start=0, step=1, limit=4
    $region2: #{tpu_custom_call.1} parent=1 // loop_pre_header
      _
    $region3: #{tpu_custom_call.1} parent=1 // loop_header
      %s11 = sphi 0, %s15
      %p12 = scmp.ge.s32.totalorder %s11, 4
      %s19 = sphi 0, %s19
      %s21 = sphi 0, %s19
      %s22 = sphi 0, %s21
      %s36 = sphi 0, %s22
      %s42 = sphi 0, %s44
      %s45 = sphi 0, %s42
      %s46 = sphi 0, %s45
      %s62 = sphi 0, %s46
    $region4: #{tpu_custom_call.1} parent=1 // loop_header_branch
      %14 = sbr.rel (%p12) target = $region8
    $region5: #{tpu_custom_call.1} parent=1 // loop_body
      %s16 = ssub.s32 %s11, 1
      %s17 = ssub.s32 %s11, 2
      %s18 = sadd.s32 %s11, 1
      %s20 = sadd.s32 %s19, 1
      %p23 = scmp.eq.s32.totalorder %s11, 1
      %p24 = scmp.ne.s32.totalorder %s19, %s21
      %p25 = scmp.eq.s32.totalorder %s11, 0
      %p26 = por %p24, %p25
      %p27 = scmp.ne.s32.totalorder %s19, %s21
      %p28 = scmp.eq.s32.totalorder %s16, 1
      %p29 = por %p27, %p28
      %p30 = scmp.ne.s32.totalorder %s21, %s22
      %p31 = scmp.eq.s32.totalorder %s16, 0
      %p32 = por %p30, %p31
      %p33 = scmp.ne.s32.totalorder %s21, %s22
      %p34 = scmp.eq.s32.totalorder %s17, 1
      %p35 = por %p33, %p34
      %p37 = scmp.ne.s32.totalorder %s22, %s36
      %p38 = scmp.eq.s32.totalorder %s17, 0
      %p39 = por %p37, %p38
      %s40 = ssub.s32 %s11, %s18
      %p41 = scmp.eq.s32.totalorder %s40, 0
      %s43 = sadd.s32 %s42, 1
      %s44 = scalar_select %p41, %s42, %s43
      %p47 = pneg %p41
      %p48 = scmp.eq.s32.totalorder %s11, 1
      %p49 = por %p47, %p48
      %p50 = scmp.ne.s32.totalorder %s42, %s45
      %p51 = scmp.eq.s32.totalorder %s11, 0
      %p52 = por %p50, %p51
      %p53 = scmp.ne.s32.totalorder %s42, %s45
      %p54 = scmp.eq.s32.totalorder %s16, 1
      %p55 = por %p53, %p54
      %p56 = scmp.ne.s32.totalorder %s45, %s46
      %p57 = scmp.eq.s32.totalorder %s16, 0
      %p58 = por %p56, %p57
      %p59 = scmp.ne.s32.totalorder %s45, %s46
      %p60 = scmp.eq.s32.totalorder %s17, 1
      %p61 = por %p59, %p60
      %p63 = scmp.ne.s32.totalorder %s46, %s62
      %p64 = scmp.eq.s32.totalorder %s17, 0
      %p65 = por %p63, %p64
      %p66 = scmp.le.s32.totalorder 1, %s11
      %p67 = scmp.lt.s32.totalorder %s11, 3
      %p68 = pnand %p66, %p67
      %p69 = pneg %p68
      // Predicated region
      $region9: #{tpu_custom_call.1} parent=5 // pred_check
        _
      $region10: #{tpu_custom_call.1} parent=5 // pred_check_branch
        %71 = sbr.rel (%p68) target = $region12
      $region11: #{tpu_custom_call.1} parent=5 // pred_region
        %s72 = ssub.s32 %s11, 1
        // Predicated region
        $region13: #{tpu_custom_call.1} parent=11 // pred_check
          %p73 = pneg %p32
        $region14: #{tpu_custom_call.1} parent=11 // pred_check_branch
          %75 = sbr.rel (%p73) target = $region16
        $region15: #{tpu_custom_call.1} parent=11 // pred_region
          %s77 = ssub.s32 16384, 16384
          %78 = vsyncadd [#allocation3], %s77
          %s79 = sshll.u32 [#allocation2], 4
          %s80 = int_to_ptr.vmem [resolvable:$true] %s79
          %85 = dma.hbm_to_vmem [thread:$0]  %s0, 16384, %s80, [#allocation3], 512, 512, 32
        $region16: #{tpu_custom_call.1} parent=11 // pred_fallthru
          _
      $region12: #{tpu_custom_call.1} parent=5 // pred_fallthru
        _
      %p86 = scmp.lt.s32.totalorder %s11, 2
      // Predicated region
      $region17: #{tpu_custom_call.1} parent=5 // pred_check
        %p87 = pneg %p86
      $region18: #{tpu_custom_call.1} parent=5 // pred_check_branch
        %89 = sbr.rel (%p87) target = $region20
      $region19: #{tpu_custom_call.1} parent=5 // pred_region
        _
      $region20: #{tpu_custom_call.1} parent=5 // pred_fallthru
        _
      %p90 = scmp.le.s32.totalorder 1, %s11
      %p91 = scmp.lt.s32.totalorder %s11, 3
      %p92 = pnand %p90, %p91
      %p93 = pneg %p92
      // Predicated region
      $region21: #{tpu_custom_call.1} parent=5 // pred_check
        _
      $region22: #{tpu_custom_call.1} parent=5 // pred_check_branch
        %95 = sbr.rel (%p92) target = $region24
      $region23: #{tpu_custom_call.1} parent=5 // pred_region
        %s96 = ssub.s32 %s11, 1
        // Predicated region
        $region25: #{tpu_custom_call.1} parent=23 // pred_check
          %p97 = pneg %p32
        $region26: #{tpu_custom_call.1} parent=23 // pred_check_branch
          %99 = sbr.rel (%p97) target = $region28
        $region27: #{tpu_custom_call.1} parent=23 // pred_region
          %100 = dma.done [#allocation3], 16384
        $region28: #{tpu_custom_call.1} parent=23 // pred_fallthru
          _
        %p101 = pneg %p32
        %p102 = pneg %p29
        %p103 = pneg %p58
        %p104 = pneg %p55
        %s105 = sand.u32 %s45, 1
        %s106 = scalar_lea.sflag [#allocation4], %s105
        %s107 = sand.u32 %s45, 1
        %s108 = scalar_lea.vmem [#allocation5], %s107
        %s109 = smul.u32 %s16, 128
        %s110 = sshra.s32 %s109, 3
        %s111 = sand.u32 %s109, 7
        %s112 = smul.u32 %s110, 4
        %s113 = smul.addr %s112, 8
        %s114 = scalar_lea.vmem [#allocation2], %s113
        %v115 = vld [vmem:[%s114] sm:$0xff]
        %v116 = vld [vmem:[%s114 + $0x8] sm:$0xff]
        %v117 = vld [vmem:[%s114 + $0x20] sm:$0xff]
        %v118 = vld [vmem:[%s114 + $0x28] sm:$0xff]
        %v119 = vld [vmem:[%s114 + $0x40] sm:$0xff]
        %v120 = vld [vmem:[%s114 + $0x48] sm:$0xff]
        %v121 = vld [vmem:[%s114 + $0x60] sm:$0xff]
        %v122 = vld [vmem:[%s114 + $0x68] sm:$0xff]
        %v123 = vld [vmem:[%s114 + $0x80] sm:$0xff]
        %v124 = vld [vmem:[%s114 + $0x88] sm:$0xff]
        %v125 = vld [vmem:[%s114 + $0xa0] sm:$0xff]
        %v126 = vld [vmem:[%s114 + $0xa8] sm:$0xff]
        %v127 = vld [vmem:[%s114 + $0xc0] sm:$0xff]
        %v128 = vld [vmem:[%s114 + $0xc8] sm:$0xff]
        %v129 = vld [vmem:[%s114 + $0xe0] sm:$0xff]
        %v130 = vld [vmem:[%s114 + $0xe8] sm:$0xff]
        %v131 = vld [vmem:[%s114 + $0x100] sm:$0xff]
        %v132 = vld [vmem:[%s114 + $0x108] sm:$0xff]
        %v133 = vld [vmem:[%s114 + $0x120] sm:$0xff]
        %v134 = vld [vmem:[%s114 + $0x128] sm:$0xff]
        %v135 = vld [vmem:[%s114 + $0x140] sm:$0xff]
        %v136 = vld [vmem:[%s114 + $0x148] sm:$0xff]
        %v137 = vld [vmem:[%s114 + $0x160] sm:$0xff]
        %v138 = vld [vmem:[%s114 + $0x168] sm:$0xff]
        %v139 = vld [vmem:[%s114 + $0x180] sm:$0xff]
        %v140 = vld [vmem:[%s114 + $0x188] sm:$0xff]
        %v141 = vld [vmem:[%s114 + $0x1a0] sm:$0xff]
        %v142 = vld [vmem:[%s114 + $0x1a8] sm:$0xff]
        %v143 = vld [vmem:[%s114 + $0x1c0] sm:$0xff]
        %v144 = vld [vmem:[%s114 + $0x1c8] sm:$0xff]
        %v145 = vld [vmem:[%s114 + $0x1e0] sm:$0xff]
        %v146 = vld [vmem:[%s114 + $0x1e8] sm:$0xff]
        %v147 = vld [vmem:[%s114 + $0x10] sm:$0xff]
        %v148 = vld [vmem:[%s114 + $0x18] sm:$0xff]
        %v149 = vld [vmem:[%s114 + $0x30] sm:$0xff]
        %v150 = vld [vmem:[%s114 + $0x38] sm:$0xff]
        %v151 = vld [vmem:[%s114 + $0x50] sm:$0xff]
        %v152 = vld [vmem:[%s114 + $0x58] sm:$0xff]
        %v153 = vld [vmem:[%s114 + $0x70] sm:$0xff]
        %v154 = vld [vmem:[%s114 + $0x78] sm:$0xff]
        %v155 = vld [vmem:[%s114 + $0x90] sm:$0xff]
        %v156 = vld [vmem:[%s114 + $0x98] sm:$0xff]
        %v157 = vld [vmem:[%s114 + $0xb0] sm:$0xff]
        %v158 = vld [vmem:[%s114 + $0xb8] sm:$0xff]
        %v159 = vld [vmem:[%s114 + $0xd0] sm:$0xff]
        %v160 = vld [vmem:[%s114 + $0xd8] sm:$0xff]
        %v161 = vld [vmem:[%s114 + $0xf0] sm:$0xff]
        %v162 = vld [vmem:[%s114 + $0xf8] sm:$0xff]
        %v163 = vld [vmem:[%s114 + $0x110] sm:$0xff]
        %v164 = vld [vmem:[%s114 + $0x118] sm:$0xff]
        %v165 = vld [vmem:[%s114 + $0x130] sm:$0xff]
        %v166 = vld [vmem:[%s114 + $0x138] sm:$0xff]
        %v167 = vld [vmem:[%s114 + $0x150] sm:$0xff]
        %v168 = vld [vmem:[%s114 + $0x158] sm:$0xff]
        %v169 = vld [vmem:[%s114 + $0x170] sm:$0xff]
        %v170 = vld [vmem:[%s114 + $0x178] sm:$0xff]
        %v171 = vld [vmem:[%s114 + $0x190] sm:$0xff]
        %v172 = vld [vmem:[%s114 + $0x198] sm:$0xff]
        %v173 = vld [vmem:[%s114 + $0x1b0] sm:$0xff]
        %v174 = vld [vmem:[%s114 + $0x1b8] sm:$0xff]
        %v175 = vld [vmem:[%s114 + $0x1d0] sm:$0xff]
        %v176 = vld [vmem:[%s114 + $0x1d8] sm:$0xff]
        %v177 = vld [vmem:[%s114 + $0x1f0] sm:$0xff]
        %v178 = vld [vmem:[%s114 + $0x1f8] sm:$0xff]
        %v179 = vld [vmem:[#allocation2] sm:$0xff]
        %v180 = vld [vmem:[#allocation2 + $0x8] sm:$0xff]
        %v181 = vld [vmem:[#allocation2 + $0x20] sm:$0xff]
        %v182 = vld [vmem:[#allocation2 + $0x28] sm:$0xff]
        %v183 = vld [vmem:[#allocation2 + $0x40] sm:$0xff]
        %v184 = vld [vmem:[#allocation2 + $0x48] sm:$0xff]
        %v185 = vld [vmem:[#allocation2 + $0x60] sm:$0xff]
        %v186 = vld [vmem:[#allocation2 + $0x68] sm:$0xff]
        %v187 = vld [vmem:[#allocation2 + $0x80] sm:$0xff]
        %v188 = vld [vmem:[#allocation2 + $0x88] sm:$0xff]
        %v189 = vld [vmem:[#allocation2 + $0xa0] sm:$0xff]
        %v190 = vld [vmem:[#allocation2 + $0xa8] sm:$0xff]
        %v191 = vld [vmem:[#allocation2 + $0xc0] sm:$0xff]
        %v192 = vld [vmem:[#allocation2 + $0xc8] sm:$0xff]
        %v193 = vld [vmem:[#allocation2 + $0xe0] sm:$0xff]
        %v194 = vld [vmem:[#allocation2 + $0xe8] sm:$0xff]
        %v195 = vld [vmem:[#allocation2 + $0x100] sm:$0xff]
        %v196 = vld [vmem:[#allocation2 + $0x108] sm:$0xff]
        %v197 = vld [vmem:[#allocation2 + $0x120] sm:$0xff]
        %v198 = vld [vmem:[#allocation2 + $0x128] sm:$0xff]
        %v199 = vld [vmem:[#allocation2 + $0x140] sm:$0xff]
        %v200 = vld [vmem:[#allocation2 + $0x148] sm:$0xff]
        %v201 = vld [vmem:[#allocation2 + $0x160] sm:$0xff]
        %v202 = vld [vmem:[#allocation2 + $0x168] sm:$0xff]
        %v203 = vld [vmem:[#allocation2 + $0x180] sm:$0xff]
        %v204 = vld [vmem:[#allocation2 + $0x188] sm:$0xff]
        %v205 = vld [vmem:[#allocation2 + $0x1a0] sm:$0xff]
        %v206 = vld [vmem:[#allocation2 + $0x1a8] sm:$0xff]
        %v207 = vld [vmem:[#allocation2 + $0x1c0] sm:$0xff]
        %v208 = vld [vmem:[#allocation2 + $0x1c8] sm:$0xff]
        %v209 = vld [vmem:[#allocation2 + $0x1e0] sm:$0xff]
        %v210 = vld [vmem:[#allocation2 + $0x1e8] sm:$0xff]
        %v211 = vld [vmem:[#allocation2 + $0x200] sm:$0xff]
        %v212 = vld [vmem:[#allocation2 + $0x208] sm:$0xff]
        %v213 = vld [vmem:[#allocation2 + $0x220] sm:$0xff]
        %v214 = vld [vmem:[#allocation2 + $0x228] sm:$0xff]
        %v215 = vld [vmem:[#allocation2 + $0x240] sm:$0xff]
        %v216 = vld [vmem:[#allocation2 + $0x248] sm:$0xff]
        %v217 = vld [vmem:[#allocation2 + $0x260] sm:$0xff]
        %v218 = vld [vmem:[#allocation2 + $0x268] sm:$0xff]
        %v219 = vld [vmem:[#allocation2 + $0x280] sm:$0xff]
        %v220 = vld [vmem:[#allocation2 + $0x288] sm:$0xff]
        %v221 = vld [vmem:[#allocation2 + $0x2a0] sm:$0xff]
        %v222 = vld [vmem:[#allocation2 + $0x2a8] sm:$0xff]
        %v223 = vld [vmem:[#allocation2 + $0x2c0] sm:$0xff]
        %v224 = vld [vmem:[#allocation2 + $0x2c8] sm:$0xff]
        %v225 = vld [vmem:[#allocation2 + $0x2e0] sm:$0xff]
        %v226 = vld [vmem:[#allocation2 + $0x2e8] sm:$0xff]
        %v227 = vld [vmem:[#allocation2 + $0x300] sm:$0xff]
        %v228 = vld [vmem:[#allocation2 + $0x308] sm:$0xff]
        %v229 = vld [vmem:[#allocation2 + $0x320] sm:$0xff]
        %v230 = vld [vmem:[#allocation2 + $0x328] sm:$0xff]
        %v231 = vld [vmem:[#allocation2 + $0x340] sm:$0xff]
        %v232 = vld [vmem:[#allocation2 + $0x348] sm:$0xff]
        %v233 = vld [vmem:[#allocation2 + $0x360] sm:$0xff]
        %v234 = vld [vmem:[#allocation2 + $0x368] sm:$0xff]
        %v235 = vld [vmem:[#allocation2 + $0x380] sm:$0xff]
        %v236 = vld [vmem:[#allocation2 + $0x388] sm:$0xff]
        %v237 = vld [vmem:[#allocation2 + $0x3a0] sm:$0xff]
        %v238 = vld [vmem:[#allocation2 + $0x3a8] sm:$0xff]
        %v239 = vld [vmem:[#allocation2 + $0x3c0] sm:$0xff]
        %v240 = vld [vmem:[#allocation2 + $0x3c8] sm:$0xff]
        %v241 = vld [vmem:[#allocation2 + $0x3e0] sm:$0xff]
        %v242 = vld [vmem:[#allocation2 + $0x3e8] sm:$0xff]
        %v243 = vld [vmem:[#allocation2 + $0x10] sm:$0xff]
        %v244 = vld [vmem:[#allocation2 + $0x18] sm:$0xff]
        %v245 = vld [vmem:[#allocation2 + $0x30] sm:$0xff]
        %v246 = vld [vmem:[#allocation2 + $0x38] sm:$0xff]
        %v247 = vld [vmem:[#allocation2 + $0x50] sm:$0xff]
        %v248 = vld [vmem:[#allocation2 + $0x58] sm:$0xff]
        %v249 = vld [vmem:[#allocation2 + $0x70] sm:$0xff]
        %v250 = vld [vmem:[#allocation2 + $0x78] sm:$0xff]
        %v251 = vld [vmem:[#allocation2 + $0x90] sm:$0xff]
        %v252 = vld [vmem:[#allocation2 + $0x98] sm:$0xff]
        %v253 = vld [vmem:[#allocation2 + $0xb0] sm:$0xff]
        %v254 = vld [vmem:[#allocation2 + $0xb8] sm:$0xff]
        %v255 = vld [vmem:[#allocation2 + $0xd0] sm:$0xff]
        %v256 = vld [vmem:[#allocation2 + $0xd8] sm:$0xff]
        %v257 = vld [vmem:[#allocation2 + $0xf0] sm:$0xff]
        %v258 = vld [vmem:[#allocation2 + $0xf8] sm:$0xff]
        %v259 = vld [vmem:[#allocation2 + $0x110] sm:$0xff]
        %v260 = vld [vmem:[#allocation2 + $0x118] sm:$0xff]
        %v261 = vld [vmem:[#allocation2 + $0x130] sm:$0xff]
        %v262 = vld [vmem:[#allocation2 + $0x138] sm:$0xff]
        %v263 = vld [vmem:[#allocation2 + $0x150] sm:$0xff]
        %v264 = vld [vmem:[#allocation2 + $0x158] sm:$0xff]
        %v265 = vld [vmem:[#allocation2 + $0x170] sm:$0xff]
        %v266 = vld [vmem:[#allocation2 + $0x178] sm:$0xff]
        %v267 = vld [vmem:[#allocation2 + $0x190] sm:$0xff]
        %v268 = vld [vmem:[#allocation2 + $0x198] sm:$0xff]
        %v269 = vld [vmem:[#allocation2 + $0x1b0] sm:$0xff]
        %v270 = vld [vmem:[#allocation2 + $0x1b8] sm:$0xff]
        %v271 = vld [vmem:[#allocation2 + $0x1d0] sm:$0xff]
        %v272 = vld [vmem:[#allocation2 + $0x1d8] sm:$0xff]
        %v273 = vld [vmem:[#allocation2 + $0x1f0] sm:$0xff]
        %v274 = vld [vmem:[#allocation2 + $0x1f8] sm:$0xff]
        %v275 = vld [vmem:[#allocation2 + $0x210] sm:$0xff]
        %v276 = vld [vmem:[#allocation2 + $0x218] sm:$0xff]
        %v277 = vld [vmem:[#allocation2 + $0x230] sm:$0xff]
        %v278 = vld [vmem:[#allocation2 + $0x238] sm:$0xff]
        %v279 = vld [vmem:[#allocation2 + $0x250] sm:$0xff]
        %v280 = vld [vmem:[#allocation2 + $0x258] sm:$0xff]
        %v281 = vld [vmem:[#allocation2 + $0x270] sm:$0xff]
        %v282 = vld [vmem:[#allocation2 + $0x278] sm:$0xff]
        %v283 = vld [vmem:[#allocation2 + $0x290] sm:$0xff]
        %v284 = vld [vmem:[#allocation2 + $0x298] sm:$0xff]
        %v285 = vld [vmem:[#allocation2 + $0x2b0] sm:$0xff]
        %v286 = vld [vmem:[#allocation2 + $0x2b8] sm:$0xff]
        %v287 = vld [vmem:[#allocation2 + $0x2d0] sm:$0xff]
        %v288 = vld [vmem:[#allocation2 + $0x2d8] sm:$0xff]
        %v289 = vld [vmem:[#allocation2 + $0x2f0] sm:$0xff]
        %v290 = vld [vmem:[#allocation2 + $0x2f8] sm:$0xff]
        %v291 = vld [vmem:[#allocation2 + $0x310] sm:$0xff]
        %v292 = vld [vmem:[#allocation2 + $0x318] sm:$0xff]
        %v293 = vld [vmem:[#allocation2 + $0x330] sm:$0xff]
        %v294 = vld [vmem:[#allocation2 + $0x338] sm:$0xff]
        %v295 = vld [vmem:[#allocation2 + $0x350] sm:$0xff]
        %v296 = vld [vmem:[#allocation2 + $0x358] sm:$0xff]
        %v297 = vld [vmem:[#allocation2 + $0x370] sm:$0xff]
        %v298 = vld [vmem:[#allocation2 + $0x378] sm:$0xff]
        %v299 = vld [vmem:[#allocation2 + $0x390] sm:$0xff]
        %v300 = vld [vmem:[#allocation2 + $0x398] sm:$0xff]
        %v301 = vld [vmem:[#allocation2 + $0x3b0] sm:$0xff]
        %v302 = vld [vmem:[#allocation2 + $0x3b8] sm:$0xff]
        %v303 = vld [vmem:[#allocation2 + $0x3d0] sm:$0xff]
        %v304 = vld [vmem:[#allocation2 + $0x3d8] sm:$0xff]
        %v305 = vld [vmem:[#allocation2 + $0x3f0] sm:$0xff]
        %v306 = vld [vmem:[#allocation2 + $0x3f8] sm:$0xff]
        %v307 = vmul.f32 %v115, 2.0
        %v308 = vmul.f32 %v116, 2.0
        %v309 = vmul.f32 %v117, 2.0
        %v310 = vmul.f32 %v118, 2.0
        %v311 = vmul.f32 %v119, 2.0
        %v312 = vmul.f32 %v120, 2.0
        %v313 = vmul.f32 %v121, 2.0
        %v314 = vmul.f32 %v122, 2.0
        %v315 = vmul.f32 %v123, 2.0
        %v316 = vmul.f32 %v124, 2.0
        %v317 = vmul.f32 %v125, 2.0
        %v318 = vmul.f32 %v126, 2.0
        %v319 = vmul.f32 %v127, 2.0
        %v320 = vmul.f32 %v128, 2.0
        %v321 = vmul.f32 %v129, 2.0
        %v322 = vmul.f32 %v130, 2.0
        %v323 = vmul.f32 %v131, 2.0
        %v324 = vmul.f32 %v132, 2.0
        %v325 = vmul.f32 %v133, 2.0
        %v326 = vmul.f32 %v134, 2.0
        %v327 = vmul.f32 %v135, 2.0
        %v328 = vmul.f32 %v136, 2.0
        %v329 = vmul.f32 %v137, 2.0
        %v330 = vmul.f32 %v138, 2.0
        %v331 = vmul.f32 %v139, 2.0
        %v332 = vmul.f32 %v140, 2.0
        %v333 = vmul.f32 %v141, 2.0
        %v334 = vmul.f32 %v142, 2.0
        %v335 = vmul.f32 %v143, 2.0
        %v336 = vmul.f32 %v144, 2.0
        %v337 = vmul.f32 %v145, 2.0
        %v338 = vmul.f32 %v146, 2.0
        %339 = vmatprep.subr.mxu0 %v210
        %340 = vmatpush1.xpose.msra.mxu0 %v209
        %341 = vmatprep.subr.mxu0 %v208
        %342 = vmatpush1.xpose.msra.mxu0 %v207
        %343 = vmatprep.subr.mxu0 %v206
        %344 = vmatpush1.xpose.msra.mxu0 %v205
        %345 = vmatprep.subr.mxu0 %v204
        %346 = vmatpush1.xpose.msra.mxu0 %v203
        %347 = vmatprep.subr.mxu0 %v202
        %348 = vmatpush1.xpose.msra.mxu0 %v201
        %349 = vmatprep.subr.mxu0 %v200
        %350 = vmatpush1.xpose.msra.mxu0 %v199
        %351 = vmatprep.subr.mxu0 %v198
        %352 = vmatpush1.xpose.msra.mxu0 %v197
        %353 = vmatprep.subr.mxu0 %v196
        %354 = vmatpush1.xpose.msra.mxu0 %v195
        %355 = vmatprep.subr.mxu0 %v194
        %356 = vmatpush1.xpose.msra.mxu0 %v193
        %357 = vmatprep.subr.mxu0 %v192
        %358 = vmatpush1.xpose.msra.mxu0 %v191
        %359 = vmatprep.subr.mxu0 %v190
        %360 = vmatpush1.xpose.msra.mxu0 %v189
        %361 = vmatprep.subr.mxu0 %v188
        %362 = vmatpush1.xpose.msra.mxu0 %v187
        %363 = vmatprep.subr.mxu0 %v186
        %364 = vmatpush1.xpose.msra.mxu0 %v185
        %365 = vmatprep.subr.mxu0 %v184
        %366 = vmatpush1.xpose.msra.mxu0 %v183
        %367 = vmatprep.subr.mxu0 %v182
        %368 = vmatpush1.xpose.msra.mxu0 %v181
        %369 = vmatprep.subr.mxu0 %v180
        %370 = vmatpush1.xpose.msra.mxu0 %v179
        %371 = vmatprep.subr.mxu0 %v242
        %372 = vmatpush2.xpose.msra.mxu0 %v241
        %373 = vmatprep.subr.mxu0 %v240
        %374 = vmatpush2.xpose.msra.mxu0 %v239
        %375 = vmatprep.subr.mxu0 %v238
        %376 = vmatpush2.xpose.msra.mxu0 %v237
        %377 = vmatprep.subr.mxu0 %v236
        %378 = vmatpush2.xpose.msra.mxu0 %v235
        %379 = vmatprep.subr.mxu0 %v234
        %380 = vmatpush2.xpose.msra.mxu0 %v233
        %381 = vmatprep.subr.mxu0 %v232
        %382 = vmatpush2.xpose.msra.mxu0 %v231
        %383 = vmatprep.subr.mxu0 %v230
        %384 = vmatpush2.xpose.msra.mxu0 %v229
        %385 = vmatprep.subr.mxu0 %v228
        %386 = vmatpush2.xpose.msra.mxu0 %v227
        %387 = vmatprep.subr.mxu0 %v226
        %388 = vmatpush2.xpose.msra.mxu0 %v225
        %389 = vmatprep.subr.mxu0 %v224
        %390 = vmatpush2.xpose.msra.mxu0 %v223
        %391 = vmatprep.subr.mxu0 %v222
        %392 = vmatpush2.xpose.msra.mxu0 %v221
        %393 = vmatprep.subr.mxu0 %v220
        %394 = vmatpush2.xpose.msra.mxu0 %v219
        %395 = vmatprep.subr.mxu0 %v218
        %396 = vmatpush2.xpose.msra.mxu0 %v217
        %397 = vmatprep.subr.mxu0 %v216
        %398 = vmatpush2.xpose.msra.mxu0 %v215
        %399 = vmatprep.subr.mxu0 %v214
        %400 = vmatpush2.xpose.msra.mxu0 %v213
        %401 = vmatprep.subr.mxu0 %v212
        %402 = vmatpush2.xpose.msra.mxu0 %v211
        %403 = vmatprep.mubr.f32.mxu0 %v308
        %404 = vmatmul.mubr.f32.gmra.mxu0 %v307
        %v405 = vpop.f32.mrf.mxu0
        %v406 = vadd.f32 0.0, %v405
        %v407 = vpop.f32.mrf.mxu0
        %v408 = vadd.f32 0.0, %v407
        %409 = vmatprep.mubr.f32.mxu0 %v310
        %410 = vmatmul.mubr.f32.gmra.mxu0 %v309
        %v411 = vpop.f32.mrf.mxu0
        %v412 = vadd.f32 0.0, %v411
        %v413 = vpop.f32.mrf.mxu0
        %v414 = vadd.f32 0.0, %v413
        %415 = vmatprep.mubr.f32.mxu0 %v312
        %416 = vmatmul.mubr.f32.gmra.mxu0 %v311
        %v417 = vpop.f32.mrf.mxu0
        %v418 = vadd.f32 0.0, %v417
        %v419 = vpop.f32.mrf.mxu0
        %v420 = vadd.f32 0.0, %v419
        %421 = vmatprep.mubr.f32.mxu0 %v314
        %422 = vmatmul.mubr.f32.gmra.mxu0 %v313
        %v423 = vpop.f32.mrf.mxu0
        %v424 = vadd.f32 0.0, %v423
        %v425 = vpop.f32.mrf.mxu0
        %v426 = vadd.f32 0.0, %v425
        %427 = vmatprep.mubr.f32.mxu0 %v316
        %428 = vmatmul.mubr.f32.gmra.mxu0 %v315
        %v429 = vpop.f32.mrf.mxu0
        %v430 = vadd.f32 0.0, %v429
        %v431 = vpop.f32.mrf.mxu0
        %v432 = vadd.f32 0.0, %v431
        %433 = vmatprep.mubr.f32.mxu0 %v318
        %434 = vmatmul.mubr.f32.gmra.mxu0 %v317
        %v435 = vpop.f32.mrf.mxu0
        %v436 = vadd.f32 0.0, %v435
        %v437 = vpop.f32.mrf.mxu0
        %v438 = vadd.f32 0.0, %v437
        %439 = vmatprep.mubr.f32.mxu0 %v320
        %440 = vmatmul.mubr.f32.gmra.mxu0 %v319
        %v441 = vpop.f32.mrf.mxu0
        %v442 = vadd.f32 0.0, %v441
        %v443 = vpop.f32.mrf.mxu0
        %v444 = vadd.f32 0.0, %v443
        %445 = vmatprep.mubr.f32.mxu0 %v322
        %446 = vmatmul.mubr.f32.gmra.mxu0 %v321
        %v447 = vpop.f32.mrf.mxu0
        %v448 = vadd.f32 0.0, %v447
        %v449 = vpop.f32.mrf.mxu0
        %v450 = vadd.f32 0.0, %v449
        %451 = vmatprep.mubr.f32.mxu0 %v324
        %452 = vmatmul.mubr.f32.gmra.mxu0 %v323
        %v453 = vpop.f32.mrf.mxu0
        %v454 = vadd.f32 0.0, %v453
        %v455 = vpop.f32.mrf.mxu0
        %v456 = vadd.f32 0.0, %v455
        %457 = vmatprep.mubr.f32.mxu0 %v326
        %458 = vmatmul.mubr.f32.gmra.mxu0 %v325
        %v459 = vpop.f32.mrf.mxu0
        %v460 = vadd.f32 0.0, %v459
        %v461 = vpop.f32.mrf.mxu0
        %v462 = vadd.f32 0.0, %v461
        %463 = vmatprep.mubr.f32.mxu0 %v328
        %464 = vmatmul.mubr.f32.gmra.mxu0 %v327
        %v465 = vpop.f32.mrf.mxu0
        %v466 = vadd.f32 0.0, %v465
        %v467 = vpop.f32.mrf.mxu0
        %v468 = vadd.f32 0.0, %v467
        %469 = vmatprep.mubr.f32.mxu0 %v330
        %470 = vmatmul.mubr.f32.gmra.mxu0 %v329
        %v471 = vpop.f32.mrf.mxu0
        %v472 = vadd.f32 0.0, %v471
        %v473 = vpop.f32.mrf.mxu0
        %v474 = vadd.f32 0.0, %v473
        %475 = vmatprep.mubr.f32.mxu0 %v332
        %476 = vmatmul.mubr.f32.gmra.mxu0 %v331
        %v477 = vpop.f32.mrf.mxu0
        %v478 = vadd.f32 0.0, %v477
        %v479 = vpop.f32.mrf.mxu0
        %v480 = vadd.f32 0.0, %v479
        %481 = vmatprep.mubr.f32.mxu0 %v334
        %482 = vmatmul.mubr.f32.gmra.mxu0 %v333
        %v483 = vpop.f32.mrf.mxu0
        %v484 = vadd.f32 0.0, %v483
        %v485 = vpop.f32.mrf.mxu0
        %v486 = vadd.f32 0.0, %v485
        %487 = vmatprep.mubr.f32.mxu0 %v336
        %488 = vmatmul.mubr.f32.gmra.mxu0 %v335
        %v489 = vpop.f32.mrf.mxu0
        %v490 = vadd.f32 0.0, %v489
        %v491 = vpop.f32.mrf.mxu0
        %v492 = vadd.f32 0.0, %v491
        %493 = vmatprep.mubr.f32.mxu0 %v338
        %494 = vmatmul.mubr.f32.gmra.mxu0 %v337
        %v495 = vpop.f32.mrf.mxu0
        %v496 = vadd.f32 0.0, %v495
        %v497 = vpop.f32.mrf.mxu0
        %v498 = vadd.f32 0.0, %v497
        %499 = vdwg.mxu0
        %500 = vmatprep.subr.mxu0 %v274
        %501 = vmatpush1.xpose.msra.mxu0 %v273
        %502 = vmatprep.subr.mxu0 %v272
        %503 = vmatpush1.xpose.msra.mxu0 %v271
        %504 = vmatprep.subr.mxu0 %v270
        %505 = vmatpush1.xpose.msra.mxu0 %v269
        %506 = vmatprep.subr.mxu0 %v268
        %507 = vmatpush1.xpose.msra.mxu0 %v267
        %508 = vmatprep.subr.mxu0 %v266
        %509 = vmatpush1.xpose.msra.mxu0 %v265
        %510 = vmatprep.subr.mxu0 %v264
        %511 = vmatpush1.xpose.msra.mxu0 %v263
        %512 = vmatprep.subr.mxu0 %v262
        %513 = vmatpush1.xpose.msra.mxu0 %v261
        %514 = vmatprep.subr.mxu0 %v260
        %515 = vmatpush1.xpose.msra.mxu0 %v259
        %516 = vmatprep.subr.mxu0 %v258
        %517 = vmatpush1.xpose.msra.mxu0 %v257
        %518 = vmatprep.subr.mxu0 %v256
        %519 = vmatpush1.xpose.msra.mxu0 %v255
        %520 = vmatprep.subr.mxu0 %v254
        %521 = vmatpush1.xpose.msra.mxu0 %v253
        %522 = vmatprep.subr.mxu0 %v252
        %523 = vmatpush1.xpose.msra.mxu0 %v251
        %524 = vmatprep.subr.mxu0 %v250
        %525 = vmatpush1.xpose.msra.mxu0 %v249
        %526 = vmatprep.subr.mxu0 %v248
        %527 = vmatpush1.xpose.msra.mxu0 %v247
        %528 = vmatprep.subr.mxu0 %v246
        %529 = vmatpush1.xpose.msra.mxu0 %v245
        %530 = vmatprep.subr.mxu0 %v244
        %531 = vmatpush1.xpose.msra.mxu0 %v243
        %532 = vmatprep.subr.mxu0 %v306
        %533 = vmatpush2.xpose.msra.mxu0 %v305
        %534 = vmatprep.subr.mxu0 %v304
        %535 = vmatpush2.xpose.msra.mxu0 %v303
        %536 = vmatprep.subr.mxu0 %v302
        %537 = vmatpush2.xpose.msra.mxu0 %v301
        %538 = vmatprep.subr.mxu0 %v300
        %539 = vmatpush2.xpose.msra.mxu0 %v299
        %540 = vmatprep.subr.mxu0 %v298
        %541 = vmatpush2.xpose.msra.mxu0 %v297
        %542 = vmatprep.subr.mxu0 %v296
        %543 = vmatpush2.xpose.msra.mxu0 %v295
        %544 = vmatprep.subr.mxu0 %v294
        %545 = vmatpush2.xpose.msra.mxu0 %v293
        %546 = vmatprep.subr.mxu0 %v292
        %547 = vmatpush2.xpose.msra.mxu0 %v291
        %548 = vmatprep.subr.mxu0 %v290
        %549 = vmatpush2.xpose.msra.mxu0 %v289
        %550 = vmatprep.subr.mxu0 %v288
        %551 = vmatpush2.xpose.msra.mxu0 %v287
        %552 = vmatprep.subr.mxu0 %v286
        %553 = vmatpush2.xpose.msra.mxu0 %v285
        %554 = vmatprep.subr.mxu0 %v284
        %555 = vmatpush2.xpose.msra.mxu0 %v283
        %556 = vmatprep.subr.mxu0 %v282
        %557 = vmatpush2.xpose.msra.mxu0 %v281
        %558 = vmatprep.subr.mxu0 %v280
        %559 = vmatpush2.xpose.msra.mxu0 %v279
        %560 = vmatprep.subr.mxu0 %v278
        %561 = vmatpush2.xpose.msra.mxu0 %v277
        %562 = vmatprep.subr.mxu0 %v276
        %563 = vmatpush2.xpose.msra.mxu0 %v275
        %564 = vmatprep.mubr.f32.mxu0 %v308
        %565 = vmatmul.mubr.f32.gmra.mxu0 %v307
        %v566 = vpop.f32.mrf.mxu0
        %v567 = vadd.f32 0.0, %v566
        %v568 = vpop.f32.mrf.mxu0
        %v569 = vadd.f32 0.0, %v568
        %570 = vmatprep.mubr.f32.mxu0 %v310
        %571 = vmatmul.mubr.f32.gmra.mxu0 %v309
        %v572 = vpop.f32.mrf.mxu0
        %v573 = vadd.f32 0.0, %v572
        %v574 = vpop.f32.mrf.mxu0
        %v575 = vadd.f32 0.0, %v574
        %576 = vmatprep.mubr.f32.mxu0 %v312
        %577 = vmatmul.mubr.f32.gmra.mxu0 %v311
        %v578 = vpop.f32.mrf.mxu0
        %v579 = vadd.f32 0.0, %v578
        %v580 = vpop.f32.mrf.mxu0
        %v581 = vadd.f32 0.0, %v580
        %582 = vmatprep.mubr.f32.mxu0 %v314
        %583 = vmatmul.mubr.f32.gmra.mxu0 %v313
        %v584 = vpop.f32.mrf.mxu0
        %v585 = vadd.f32 0.0, %v584
        %v586 = vpop.f32.mrf.mxu0
        %v587 = vadd.f32 0.0, %v586
        %588 = vmatprep.mubr.f32.mxu0 %v316
        %589 = vmatmul.mubr.f32.gmra.mxu0 %v315
        %v590 = vpop.f32.mrf.mxu0
        %v591 = vadd.f32 0.0, %v590
        %v592 = vpop.f32.mrf.mxu0
        %v593 = vadd.f32 0.0, %v592
        %594 = vmatprep.mubr.f32.mxu0 %v318
        %595 = vmatmul.mubr.f32.gmra.mxu0 %v317
        %v596 = vpop.f32.mrf.mxu0
        %v597 = vadd.f32 0.0, %v596
        %v598 = vpop.f32.mrf.mxu0
        %v599 = vadd.f32 0.0, %v598
        %600 = vmatprep.mubr.f32.mxu0 %v320
        %601 = vmatmul.mubr.f32.gmra.mxu0 %v319
        %v602 = vpop.f32.mrf.mxu0
        %v603 = vadd.f32 0.0, %v602
        %v604 = vpop.f32.mrf.mxu0
        %v605 = vadd.f32 0.0, %v604
        %606 = vmatprep.mubr.f32.mxu0 %v322
        %607 = vmatmul.mubr.f32.gmra.mxu0 %v321
        %v608 = vpop.f32.mrf.mxu0
        %v609 = vadd.f32 0.0, %v608
        %v610 = vpop.f32.mrf.mxu0
        %v611 = vadd.f32 0.0, %v610
        %612 = vmatprep.mubr.f32.mxu0 %v324
        %613 = vmatmul.mubr.f32.gmra.mxu0 %v323
        %v614 = vpop.f32.mrf.mxu0
        %v615 = vadd.f32 0.0, %v614
        %v616 = vpop.f32.mrf.mxu0
        %v617 = vadd.f32 0.0, %v616
        %618 = vmatprep.mubr.f32.mxu0 %v326
        %619 = vmatmul.mubr.f32.gmra.mxu0 %v325
        %v620 = vpop.f32.mrf.mxu0
        %v621 = vadd.f32 0.0, %v620
        %v622 = vpop.f32.mrf.mxu0
        %v623 = vadd.f32 0.0, %v622
        %624 = vmatprep.mubr.f32.mxu0 %v328
        %625 = vmatmul.mubr.f32.gmra.mxu0 %v327
        %v626 = vpop.f32.mrf.mxu0
        %v627 = vadd.f32 0.0, %v626
        %v628 = vpop.f32.mrf.mxu0
        %v629 = vadd.f32 0.0, %v628
        %630 = vmatprep.mubr.f32.mxu0 %v330
        %631 = vmatmul.mubr.f32.gmra.mxu0 %v329
        %v632 = vpop.f32.mrf.mxu0
        %v633 = vadd.f32 0.0, %v632
        %v634 = vpop.f32.mrf.mxu0
        %v635 = vadd.f32 0.0, %v634
        %636 = vmatprep.mubr.f32.mxu0 %v332
        %637 = vmatmul.mubr.f32.gmra.mxu0 %v331
        %v638 = vpop.f32.mrf.mxu0
        %v639 = vadd.f32 0.0, %v638
        %v640 = vpop.f32.mrf.mxu0
        %v641 = vadd.f32 0.0, %v640
        %642 = vmatprep.mubr.f32.mxu0 %v334
        %643 = vmatmul.mubr.f32.gmra.mxu0 %v333
        %v644 = vpop.f32.mrf.mxu0
        %v645 = vadd.f32 0.0, %v644
        %v646 = vpop.f32.mrf.mxu0
        %v647 = vadd.f32 0.0, %v646
        %648 = vmatprep.mubr.f32.mxu0 %v336
        %649 = vmatmul.mubr.f32.gmra.mxu0 %v335
        %v650 = vpop.f32.mrf.mxu0
        %v651 = vadd.f32 0.0, %v650
        %v652 = vpop.f32.mrf.mxu0
        %v653 = vadd.f32 0.0, %v652
        %654 = vmatprep.mubr.f32.mxu0 %v338
        %655 = vmatmul.mubr.f32.gmra.mxu0 %v337
        %v656 = vpop.f32.mrf.mxu0
        %v657 = vadd.f32 0.0, %v656
        %v658 = vpop.f32.mrf.mxu0
        %v659 = vadd.f32 0.0, %v658
        %660 = vdwg.mxu0
        %v661 = vmax.f32 %v406, %v567
        %v662 = vmax.f32 %v408, %v569
        %v663 = vmax.f32 %v412, %v573
        %v664 = vmax.f32 %v414, %v575
        %v665 = vmax.f32 %v418, %v579
        %v666 = vmax.f32 %v420, %v581
        %v667 = vmax.f32 %v424, %v585
        %v668 = vmax.f32 %v426, %v587
        %v669 = vmax.f32 %v430, %v591
        %v670 = vmax.f32 %v432, %v593
        %v671 = vmax.f32 %v436, %v597
        %v672 = vmax.f32 %v438, %v599
        %v673 = vmax.f32 %v442, %v603
        %v674 = vmax.f32 %v444, %v605
        %v675 = vmax.f32 %v448, %v609
        %v676 = vmax.f32 %v450, %v611
        %v677 = vmax.f32 %v454, %v615
        %v678 = vmax.f32 %v456, %v617
        %v679 = vmax.f32 %v460, %v621
        %v680 = vmax.f32 %v462, %v623
        %v681 = vmax.f32 %v466, %v627
        %v682 = vmax.f32 %v468, %v629
        %v683 = vmax.f32 %v472, %v633
        %v684 = vmax.f32 %v474, %v635
        %v685 = vmax.f32 %v478, %v639
        %v686 = vmax.f32 %v480, %v641
        %v687 = vmax.f32 %v484, %v645
        %v688 = vmax.f32 %v486, %v647
        %v689 = vmax.f32 %v490, %v651
        %v690 = vmax.f32 %v492, %v653
        %v691 = vmax.f32 %v496, %v657
        %v692 = vmax.f32 %v498, %v659
        %v693 = vmax.f32 %v661, %v662
        %694 = vmax.xlane.f32.xlu0 %v693
        %v695 = vpop.xlane.xlu0 %694
        %v696 = vmax.f32 %v663, %v664
        %697 = vmax.xlane.f32.xlu0 %v696
        %v698 = vpop.xlane.xlu0 %697
        %v699 = vmax.f32 %v665, %v666
        %700 = vmax.xlane.f32.xlu0 %v699
        %v701 = vpop.xlane.xlu0 %700
        %v702 = vmax.f32 %v667, %v668
        %703 = vmax.xlane.f32.xlu0 %v702
        %v704 = vpop.xlane.xlu0 %703
        %v705 = vmax.f32 %v669, %v670
        %706 = vmax.xlane.f32.xlu0 %v705
        %v707 = vpop.xlane.xlu0 %706
        %v708 = vmax.f32 %v671, %v672
        %709 = vmax.xlane.f32.xlu0 %v708
        %v710 = vpop.xlane.xlu0 %709
        %v711 = vmax.f32 %v673, %v674
        %712 = vmax.xlane.f32.xlu0 %v711
        %v713 = vpop.xlane.xlu0 %712
        %v714 = vmax.f32 %v675, %v676
        %715 = vmax.xlane.f32.xlu0 %v714
        %v716 = vpop.xlane.xlu0 %715
        %v717 = vmax.f32 %v677, %v678
        %718 = vmax.xlane.f32.xlu0 %v717
        %v719 = vpop.xlane.xlu0 %718
        %v720 = vmax.f32 %v679, %v680
        %721 = vmax.xlane.f32.xlu0 %v720
        %v722 = vpop.xlane.xlu0 %721
        %v723 = vmax.f32 %v681, %v682
        %724 = vmax.xlane.f32.xlu0 %v723
        %v725 = vpop.xlane.xlu0 %724
        %v726 = vmax.f32 %v683, %v684
        %727 = vmax.xlane.f32.xlu0 %v726
        %v728 = vpop.xlane.xlu0 %727
        %v729 = vmax.f32 %v685, %v686
        %730 = vmax.xlane.f32.xlu0 %v729
        %v731 = vpop.xlane.xlu0 %730
        %v732 = vmax.f32 %v687, %v688
        %733 = vmax.xlane.f32.xlu0 %v732
        %v734 = vpop.xlane.xlu0 %733
        %v735 = vmax.f32 %v689, %v690
        %736 = vmax.xlane.f32.xlu0 %v735
        %v737 = vpop.xlane.xlu0 %736
        %v738 = vmax.f32 %v691, %v692
        %739 = vmax.xlane.f32.xlu0 %v738
        %v740 = vpop.xlane.xlu0 %739
        %v741 = vmul.f32 %v115, %v147
        %v742 = vmul.f32 %v116, %v148
        %v743 = vmul.f32 %v117, %v149
        %v744 = vmul.f32 %v118, %v150
        %v745 = vmul.f32 %v119, %v151
        %v746 = vmul.f32 %v120, %v152
        %v747 = vmul.f32 %v121, %v153
        %v748 = vmul.f32 %v122, %v154
        %v749 = vmul.f32 %v123, %v155
        %v750 = vmul.f32 %v124, %v156
        %v751 = vmul.f32 %v125, %v157
        %v752 = vmul.f32 %v126, %v158
        %v753 = vmul.f32 %v127, %v159
        %v754 = vmul.f32 %v128, %v160
        %v755 = vmul.f32 %v129, %v161
        %v756 = vmul.f32 %v130, %v162
        %v757 = vmul.f32 %v131, %v163
        %v758 = vmul.f32 %v132, %v164
        %v759 = vmul.f32 %v133, %v165
        %v760 = vmul.f32 %v134, %v166
        %v761 = vmul.f32 %v135, %v167
        %v762 = vmul.f32 %v136, %v168
        %v763 = vmul.f32 %v137, %v169
        %v764 = vmul.f32 %v138, %v170
        %v765 = vmul.f32 %v139, %v171
        %v766 = vmul.f32 %v140, %v172
        %v767 = vmul.f32 %v141, %v173
        %v768 = vmul.f32 %v142, %v174
        %v769 = vmul.f32 %v143, %v175
        %v770 = vmul.f32 %v144, %v176
        %v771 = vmul.f32 %v145, %v177
        %v772 = vmul.f32 %v146, %v178
        %v773 = vadd.f32 %v741, %v742
        %774 = vadd.xlane.f32.xlu0 %v773
        %v775 = vpop.xlane.xlu0 %774
        %v776 = vadd.f32 %v743, %v744
        %777 = vadd.xlane.f32.xlu0 %v776
        %v778 = vpop.xlane.xlu0 %777
        %v779 = vadd.f32 %v745, %v746
        %780 = vadd.xlane.f32.xlu0 %v779
        %v781 = vpop.xlane.xlu0 %780
        %v782 = vadd.f32 %v747, %v748
        %783 = vadd.xlane.f32.xlu0 %v782
        %v784 = vpop.xlane.xlu0 %783
        %v785 = vadd.f32 %v749, %v750
        %786 = vadd.xlane.f32.xlu0 %v785
        %v787 = vpop.xlane.xlu0 %786
        %v788 = vadd.f32 %v751, %v752
        %789 = vadd.xlane.f32.xlu0 %v788
        %v790 = vpop.xlane.xlu0 %789
        %v791 = vadd.f32 %v753, %v754
        %792 = vadd.xlane.f32.xlu0 %v791
        %v793 = vpop.xlane.xlu0 %792
        %v794 = vadd.f32 %v755, %v756
        %795 = vadd.xlane.f32.xlu0 %v794
        %v796 = vpop.xlane.xlu0 %795
        %v797 = vadd.f32 %v757, %v758
        %798 = vadd.xlane.f32.xlu0 %v797
        %v799 = vpop.xlane.xlu0 %798
        %v800 = vadd.f32 %v759, %v760
        %801 = vadd.xlane.f32.xlu0 %v800
        %v802 = vpop.xlane.xlu0 %801
        %v803 = vadd.f32 %v761, %v762
        %804 = vadd.xlane.f32.xlu0 %v803
        %v805 = vpop.xlane.xlu0 %804
        %v806 = vadd.f32 %v763, %v764
        %807 = vadd.xlane.f32.xlu0 %v806
        %v808 = vpop.xlane.xlu0 %807
        %v809 = vadd.f32 %v765, %v766
        %810 = vadd.xlane.f32.xlu0 %v809
        %v811 = vpop.xlane.xlu0 %810
        %v812 = vadd.f32 %v767, %v768
        %813 = vadd.xlane.f32.xlu0 %v812
        %v814 = vpop.xlane.xlu0 %813
        %v815 = vadd.f32 %v769, %v770
        %816 = vadd.xlane.f32.xlu0 %v815
        %v817 = vpop.xlane.xlu0 %816
        %v818 = vadd.f32 %v771, %v772
        %819 = vadd.xlane.f32.xlu0 %v818
        %v820 = vpop.xlane.xlu0 %819
        %v821 = vmul.f32 %v775, 2.0
        %v822 = vmul.f32 %v778, 2.0
        %v823 = vmul.f32 %v781, 2.0
        %v824 = vmul.f32 %v784, 2.0
        %v825 = vmul.f32 %v787, 2.0
        %v826 = vmul.f32 %v790, 2.0
        %v827 = vmul.f32 %v793, 2.0
        %v828 = vmul.f32 %v796, 2.0
        %v829 = vmul.f32 %v799, 2.0
        %v830 = vmul.f32 %v802, 2.0
        %v831 = vmul.f32 %v805, 2.0
        %v832 = vmul.f32 %v808, 2.0
        %v833 = vmul.f32 %v811, 2.0
        %v834 = vmul.f32 %v814, 2.0
        %v835 = vmul.f32 %v817, 2.0
        %v836 = vmul.f32 %v820, 2.0
        %v837 = vmul.f32 %v115, %v115
        %v838 = vmul.f32 %v116, %v116
        %v839 = vmul.f32 %v117, %v117
        %v840 = vmul.f32 %v118, %v118
        %v841 = vmul.f32 %v119, %v119
        %v842 = vmul.f32 %v120, %v120
        %v843 = vmul.f32 %v121, %v121
        %v844 = vmul.f32 %v122, %v122
        %v845 = vmul.f32 %v123, %v123
        %v846 = vmul.f32 %v124, %v124
        %v847 = vmul.f32 %v125, %v125
        %v848 = vmul.f32 %v126, %v126
        %v849 = vmul.f32 %v127, %v127
        %v850 = vmul.f32 %v128, %v128
        %v851 = vmul.f32 %v129, %v129
        %v852 = vmul.f32 %v130, %v130
        %v853 = vmul.f32 %v131, %v131
        %v854 = vmul.f32 %v132, %v132
        %v855 = vmul.f32 %v133, %v133
        %v856 = vmul.f32 %v134, %v134
        %v857 = vmul.f32 %v135, %v135
        %v858 = vmul.f32 %v136, %v136
        %v859 = vmul.f32 %v137, %v137
        %v860 = vmul.f32 %v138, %v138
        %v861 = vmul.f32 %v139, %v139
        %v862 = vmul.f32 %v140, %v140
        %v863 = vmul.f32 %v141, %v141
        %v864 = vmul.f32 %v142, %v142
        %v865 = vmul.f32 %v143, %v143
        %v866 = vmul.f32 %v144, %v144
        %v867 = vmul.f32 %v145, %v145
        %v868 = vmul.f32 %v146, %v146
        %v869 = vadd.f32 %v837, %v838
        %870 = vadd.xlane.f32.xlu0 %v869
        %v871 = vpop.xlane.xlu0 %870
        %v872 = vadd.f32 %v839, %v840
        %873 = vadd.xlane.f32.xlu0 %v872
        %v874 = vpop.xlane.xlu0 %873
        %v875 = vadd.f32 %v841, %v842
        %876 = vadd.xlane.f32.xlu0 %v875
        %v877 = vpop.xlane.xlu0 %876
        %v878 = vadd.f32 %v843, %v844
        %879 = vadd.xlane.f32.xlu0 %v878
        %v880 = vpop.xlane.xlu0 %879
        %v881 = vadd.f32 %v845, %v846
        %882 = vadd.xlane.f32.xlu0 %v881
        %v883 = vpop.xlane.xlu0 %882
        %v884 = vadd.f32 %v847, %v848
        %885 = vadd.xlane.f32.xlu0 %v884
        %v886 = vpop.xlane.xlu0 %885
        %v887 = vadd.f32 %v849, %v850
        %888 = vadd.xlane.f32.xlu0 %v887
        %v889 = vpop.xlane.xlu0 %888
        %v890 = vadd.f32 %v851, %v852
        %891 = vadd.xlane.f32.xlu0 %v890
        %v892 = vpop.xlane.xlu0 %891
        %v893 = vadd.f32 %v853, %v854
        %894 = vadd.xlane.f32.xlu0 %v893
        %v895 = vpop.xlane.xlu0 %894
        %v896 = vadd.f32 %v855, %v856
        %897 = vadd.xlane.f32.xlu0 %v896
        %v898 = vpop.xlane.xlu0 %897
        %v899 = vadd.f32 %v857, %v858
        %900 = vadd.xlane.f32.xlu0 %v899
        %v901 = vpop.xlane.xlu0 %900
        %v902 = vadd.f32 %v859, %v860
        %903 = vadd.xlane.f32.xlu0 %v902
        %v904 = vpop.xlane.xlu0 %903
        %v905 = vadd.f32 %v861, %v862
        %906 = vadd.xlane.f32.xlu0 %v905
        %v907 = vpop.xlane.xlu0 %906
        %v908 = vadd.f32 %v863, %v864
        %909 = vadd.xlane.f32.xlu0 %v908
        %v910 = vpop.xlane.xlu0 %909
        %v911 = vadd.f32 %v865, %v866
        %912 = vadd.xlane.f32.xlu0 %v911
        %v913 = vpop.xlane.xlu0 %912
        %v914 = vadd.f32 %v867, %v868
        %915 = vadd.xlane.f32.xlu0 %v914
        %v916 = vpop.xlane.xlu0 %915
        %v917 = vmul.f32 %v871, 2.0
        %v918 = vmul.f32 %v874, 2.0
        %v919 = vmul.f32 %v877, 2.0
        %v920 = vmul.f32 %v880, 2.0
        %v921 = vmul.f32 %v883, 2.0
        %v922 = vmul.f32 %v886, 2.0
        %v923 = vmul.f32 %v889, 2.0
        %v924 = vmul.f32 %v892, 2.0
        %v925 = vmul.f32 %v895, 2.0
        %v926 = vmul.f32 %v898, 2.0
        %v927 = vmul.f32 %v901, 2.0
        %v928 = vmul.f32 %v904, 2.0
        %v929 = vmul.f32 %v907, 2.0
        %v930 = vmul.f32 %v910, 2.0
        %v931 = vmul.f32 %v913, 2.0
        %v932 = vmul.f32 %v916, 2.0
        %v933 = vsub.f32 %v406, %v695
        %v934 = vsub.f32 %v408, %v695
        %v935 = vsub.f32 %v412, %v698
        %v936 = vsub.f32 %v414, %v698
        %v937 = vsub.f32 %v418, %v701
        %v938 = vsub.f32 %v420, %v701
        %v939 = vsub.f32 %v424, %v704
        %v940 = vsub.f32 %v426, %v704
        %v941 = vsub.f32 %v430, %v707
        %v942 = vsub.f32 %v432, %v707
        %v943 = vsub.f32 %v436, %v710
        %v944 = vsub.f32 %v438, %v710
        %v945 = vsub.f32 %v442, %v713
        %v946 = vsub.f32 %v444, %v713
        %v947 = vsub.f32 %v448, %v716
        %v948 = vsub.f32 %v450, %v716
        %v949 = vsub.f32 %v454, %v719
        %v950 = vsub.f32 %v456, %v719
        %v951 = vsub.f32 %v460, %v722
        %v952 = vsub.f32 %v462, %v722
        %v953 = vsub.f32 %v466, %v725
        %v954 = vsub.f32 %v468, %v725
        %v955 = vsub.f32 %v472, %v728
        %v956 = vsub.f32 %v474, %v728
        %v957 = vsub.f32 %v478, %v731
        %v958 = vsub.f32 %v480, %v731
        %v959 = vsub.f32 %v484, %v734
        %v960 = vsub.f32 %v486, %v734
        %v961 = vsub.f32 %v490, %v737
        %v962 = vsub.f32 %v492, %v737
        %v963 = vsub.f32 %v496, %v740
        %v964 = vsub.f32 %v498, %v740
        %v965 = vmul.f32 %v933, 1.442695
        %v966 = vpow.pop %v965
        %v967 = vmul.f32 %v934, 1.442695
        %v968 = vpow.pop %v967
        %v969 = vmul.f32 %v935, 1.442695
        %v970 = vpow.pop %v969
        %v971 = vmul.f32 %v936, 1.442695
        %v972 = vpow.pop %v971
        %v973 = vmul.f32 %v937, 1.442695
        %v974 = vpow.pop %v973
        %v975 = vmul.f32 %v938, 1.442695
        %v976 = vpow.pop %v975
        %v977 = vmul.f32 %v939, 1.442695
        %v978 = vpow.pop %v977
        %v979 = vmul.f32 %v940, 1.442695
        %v980 = vpow.pop %v979
        %v981 = vmul.f32 %v941, 1.442695
        %v982 = vpow.pop %v981
        %v983 = vmul.f32 %v942, 1.442695
        %v984 = vpow.pop %v983
        %v985 = vmul.f32 %v943, 1.442695
        %v986 = vpow.pop %v985
        %v987 = vmul.f32 %v944, 1.442695
        %v988 = vpow.pop %v987
        %v989 = vmul.f32 %v945, 1.442695
        %v990 = vpow.pop %v989
        %v991 = vmul.f32 %v946, 1.442695
        %v992 = vpow.pop %v991
        %v993 = vmul.f32 %v947, 1.442695
        %v994 = vpow.pop %v993
        %v995 = vmul.f32 %v948, 1.442695
        %v996 = vpow.pop %v995
        %v997 = vmul.f32 %v949, 1.442695
        %v998 = vpow.pop %v997
        %v999 = vmul.f32 %v950, 1.442695
        %v1000 = vpow.pop %v999
        %v1001 = vmul.f32 %v951, 1.442695
        %v1002 = vpow.pop %v1001
        %v1003 = vmul.f32 %v952, 1.442695
        %v1004 = vpow.pop %v1003
        %v1005 = vmul.f32 %v953, 1.442695
        %v1006 = vpow.pop %v1005
        %v1007 = vmul.f32 %v954, 1.442695
        %v1008 = vpow.pop %v1007
        %v1009 = vmul.f32 %v955, 1.442695
        %v1010 = vpow.pop %v1009
        %v1011 = vmul.f32 %v956, 1.442695
        %v1012 = vpow.pop %v1011
        %v1013 = vmul.f32 %v957, 1.442695
        %v1014 = vpow.pop %v1013
        %v1015 = vmul.f32 %v958, 1.442695
        %v1016 = vpow.pop %v1015
        %v1017 = vmul.f32 %v959, 1.442695
        %v1018 = vpow.pop %v1017
        %v1019 = vmul.f32 %v960, 1.442695
        %v1020 = vpow.pop %v1019
        %v1021 = vmul.f32 %v961, 1.442695
        %v1022 = vpow.pop %v1021
        %v1023 = vmul.f32 %v962, 1.442695
        %v1024 = vpow.pop %v1023
        %v1025 = vmul.f32 %v963, 1.442695
        %v1026 = vpow.pop %v1025
        %v1027 = vmul.f32 %v964, 1.442695
        %v1028 = vpow.pop %v1027
        %v1029 = vsub.f32 %v567, %v695
        %v1030 = vsub.f32 %v569, %v695
        %v1031 = vsub.f32 %v573, %v698
        %v1032 = vsub.f32 %v575, %v698
        %v1033 = vsub.f32 %v579, %v701
        %v1034 = vsub.f32 %v581, %v701
        %v1035 = vsub.f32 %v585, %v704
        %v1036 = vsub.f32 %v587, %v704
        %v1037 = vsub.f32 %v591, %v707
        %v1038 = vsub.f32 %v593, %v707
        %v1039 = vsub.f32 %v597, %v710
        %v1040 = vsub.f32 %v599, %v710
        %v1041 = vsub.f32 %v603, %v713
        %v1042 = vsub.f32 %v605, %v713
        %v1043 = vsub.f32 %v609, %v716
        %v1044 = vsub.f32 %v611, %v716
        %v1045 = vsub.f32 %v615, %v719
        %v1046 = vsub.f32 %v617, %v719
        %v1047 = vsub.f32 %v621, %v722
        %v1048 = vsub.f32 %v623, %v722
        %v1049 = vsub.f32 %v627, %v725
        %v1050 = vsub.f32 %v629, %v725
        %v1051 = vsub.f32 %v633, %v728
        %v1052 = vsub.f32 %v635, %v728
        %v1053 = vsub.f32 %v639, %v731
        %v1054 = vsub.f32 %v641, %v731
        %v1055 = vsub.f32 %v645, %v734
        %v1056 = vsub.f32 %v647, %v734
        %v1057 = vsub.f32 %v651, %v737
        %v1058 = vsub.f32 %v653, %v737
        %v1059 = vsub.f32 %v657, %v740
        %v1060 = vsub.f32 %v659, %v740
        %v1061 = vmul.f32 %v1029, 1.442695
        %v1062 = vpow.pop %v1061
        %v1063 = vmul.f32 %v1030, 1.442695
        %v1064 = vpow.pop %v1063
        %v1065 = vmul.f32 %v1031, 1.442695
        %v1066 = vpow.pop %v1065
        %v1067 = vmul.f32 %v1032, 1.442695
        %v1068 = vpow.pop %v1067
        %v1069 = vmul.f32 %v1033, 1.442695
        %v1070 = vpow.pop %v1069
        %v1071 = vmul.f32 %v1034, 1.442695
        %v1072 = vpow.pop %v1071
        %v1073 = vmul.f32 %v1035, 1.442695
        %v1074 = vpow.pop %v1073
        %v1075 = vmul.f32 %v1036, 1.442695
        %v1076 = vpow.pop %v1075
        %v1077 = vmul.f32 %v1037, 1.442695
        %v1078 = vpow.pop %v1077
        %v1079 = vmul.f32 %v1038, 1.442695
        %v1080 = vpow.pop %v1079
        %v1081 = vmul.f32 %v1039, 1.442695
        %v1082 = vpow.pop %v1081
        %v1083 = vmul.f32 %v1040, 1.442695
        %v1084 = vpow.pop %v1083
        %v1085 = vmul.f32 %v1041, 1.442695
        %v1086 = vpow.pop %v1085
        %v1087 = vmul.f32 %v1042, 1.442695
        %v1088 = vpow.pop %v1087
        %v1089 = vmul.f32 %v1043, 1.442695
        %v1090 = vpow.pop %v1089
        %v1091 = vmul.f32 %v1044, 1.442695
        %v1092 = vpow.pop %v1091
        %v1093 = vmul.f32 %v1045, 1.442695
        %v1094 = vpow.pop %v1093
        %v1095 = vmul.f32 %v1046, 1.442695
        %v1096 = vpow.pop %v1095
        %v1097 = vmul.f32 %v1047, 1.442695
        %v1098 = vpow.pop %v1097
        %v1099 = vmul.f32 %v1048, 1.442695
        %v1100 = vpow.pop %v1099
        %v1101 = vmul.f32 %v1049, 1.442695
        %v1102 = vpow.pop %v1101
        %v1103 = vmul.f32 %v1050, 1.442695
        %v1104 = vpow.pop %v1103
        %v1105 = vmul.f32 %v1051, 1.442695
        %v1106 = vpow.pop %v1105
        %v1107 = vmul.f32 %v1052, 1.442695
        %v1108 = vpow.pop %v1107
        %v1109 = vmul.f32 %v1053, 1.442695
        %v1110 = vpow.pop %v1109
        %v1111 = vmul.f32 %v1054, 1.442695
        %v1112 = vpow.pop %v1111
        %v1113 = vmul.f32 %v1055, 1.442695
        %v1114 = vpow.pop %v1113
        %v1115 = vmul.f32 %v1056, 1.442695
        %v1116 = vpow.pop %v1115
        %v1117 = vmul.f32 %v1057, 1.442695
        %v1118 = vpow.pop %v1117
        %v1119 = vmul.f32 %v1058, 1.442695
        %v1120 = vpow.pop %v1119
        %v1121 = vmul.f32 %v1059, 1.442695
        %v1122 = vpow.pop %v1121
        %v1123 = vmul.f32 %v1060, 1.442695
        %v1124 = vpow.pop %v1123
        %v1125 = vadd.f32 %v966, %v1062
        %v1126 = vadd.f32 %v968, %v1064
        %v1127 = vadd.f32 %v970, %v1066
        %v1128 = vadd.f32 %v972, %v1068
        %v1129 = vadd.f32 %v974, %v1070
        %v1130 = vadd.f32 %v976, %v1072
        %v1131 = vadd.f32 %v978, %v1074
        %v1132 = vadd.f32 %v980, %v1076
        %v1133 = vadd.f32 %v982, %v1078
        %v1134 = vadd.f32 %v984, %v1080
        %v1135 = vadd.f32 %v986, %v1082
        %v1136 = vadd.f32 %v988, %v1084
        %v1137 = vadd.f32 %v990, %v1086
        %v1138 = vadd.f32 %v992, %v1088
        %v1139 = vadd.f32 %v994, %v1090
        %v1140 = vadd.f32 %v996, %v1092
        %v1141 = vadd.f32 %v998, %v1094
        %v1142 = vadd.f32 %v1000, %v1096
        %v1143 = vadd.f32 %v1002, %v1098
        %v1144 = vadd.f32 %v1004, %v1100
        %v1145 = vadd.f32 %v1006, %v1102
        %v1146 = vadd.f32 %v1008, %v1104
        %v1147 = vadd.f32 %v1010, %v1106
        %v1148 = vadd.f32 %v1012, %v1108
        %v1149 = vadd.f32 %v1014, %v1110
        %v1150 = vadd.f32 %v1016, %v1112
        %v1151 = vadd.f32 %v1018, %v1114
        %v1152 = vadd.f32 %v1020, %v1116
        %v1153 = vadd.f32 %v1022, %v1118
        %v1154 = vadd.f32 %v1024, %v1120
        %v1155 = vadd.f32 %v1026, %v1122
        %v1156 = vadd.f32 %v1028, %v1124
        %v1157 = vadd.f32 %v1125, %v1126
        %1158 = vadd.xlane.f32.xlu0 %v1157
        %v1159 = vpop.xlane.xlu0 %1158
        %v1160 = vadd.f32 %v1127, %v1128
        %1161 = vadd.xlane.f32.xlu0 %v1160
        %v1162 = vpop.xlane.xlu0 %1161
        %v1163 = vadd.f32 %v1129, %v1130
        %1164 = vadd.xlane.f32.xlu0 %v1163
        %v1165 = vpop.xlane.xlu0 %1164
        %v1166 = vadd.f32 %v1131, %v1132
        %1167 = vadd.xlane.f32.xlu0 %v1166
        %v1168 = vpop.xlane.xlu0 %1167
        %v1169 = vadd.f32 %v1133, %v1134
        %1170 = vadd.xlane.f32.xlu0 %v1169
        %v1171 = vpop.xlane.xlu0 %1170
        %v1172 = vadd.f32 %v1135, %v1136
        %1173 = vadd.xlane.f32.xlu0 %v1172
        %v1174 = vpop.xlane.xlu0 %1173
        %v1175 = vadd.f32 %v1137, %v1138
        %1176 = vadd.xlane.f32.xlu0 %v1175
        %v1177 = vpop.xlane.xlu0 %1176
        %v1178 = vadd.f32 %v1139, %v1140
        %1179 = vadd.xlane.f32.xlu0 %v1178
        %v1180 = vpop.xlane.xlu0 %1179
        %v1181 = vadd.f32 %v1141, %v1142
        %1182 = vadd.xlane.f32.xlu0 %v1181
        %v1183 = vpop.xlane.xlu0 %1182
        %v1184 = vadd.f32 %v1143, %v1144
        %1185 = vadd.xlane.f32.xlu0 %v1184
        %v1186 = vpop.xlane.xlu0 %1185
        %v1187 = vadd.f32 %v1145, %v1146
        %1188 = vadd.xlane.f32.xlu0 %v1187
        %v1189 = vpop.xlane.xlu0 %1188
        %v1190 = vadd.f32 %v1147, %v1148
        %1191 = vadd.xlane.f32.xlu0 %v1190
        %v1192 = vpop.xlane.xlu0 %1191
        %v1193 = vadd.f32 %v1149, %v1150
        %1194 = vadd.xlane.f32.xlu0 %v1193
        %v1195 = vpop.xlane.xlu0 %1194
        %v1196 = vadd.f32 %v1151, %v1152
        %1197 = vadd.xlane.f32.xlu0 %v1196
        %v1198 = vpop.xlane.xlu0 %1197
        %v1199 = vadd.f32 %v1153, %v1154
        %1200 = vadd.xlane.f32.xlu0 %v1199
        %v1201 = vpop.xlane.xlu0 %1200
        %v1202 = vadd.f32 %v1155, %v1156
        %1203 = vadd.xlane.f32.xlu0 %v1202
        %v1204 = vpop.xlane.xlu0 %1203
        %v1205 = vsub.f32 %v917, %v695
        %v1206 = vsub.f32 %v918, %v698
        %v1207 = vsub.f32 %v919, %v701
        %v1208 = vsub.f32 %v920, %v704
        %v1209 = vsub.f32 %v921, %v707
        %v1210 = vsub.f32 %v922, %v710
        %v1211 = vsub.f32 %v923, %v713
        %v1212 = vsub.f32 %v924, %v716
        %v1213 = vsub.f32 %v925, %v719
        %v1214 = vsub.f32 %v926, %v722
        %v1215 = vsub.f32 %v927, %v725
        %v1216 = vsub.f32 %v928, %v728
        %v1217 = vsub.f32 %v929, %v731
        %v1218 = vsub.f32 %v930, %v734
        %v1219 = vsub.f32 %v931, %v737
        %v1220 = vsub.f32 %v932, %v740
        %v1221 = vmul.f32 %v1205, 1.442695
        %v1222 = vpow.pop %v1221
        %v1223 = vmul.f32 %v1206, 1.442695
        %v1224 = vpow.pop %v1223
        %v1225 = vmul.f32 %v1207, 1.442695
        %v1226 = vpow.pop %v1225
        %v1227 = vmul.f32 %v1208, 1.442695
        %v1228 = vpow.pop %v1227
        %v1229 = vmul.f32 %v1209, 1.442695
        %v1230 = vpow.pop %v1229
        %v1231 = vmul.f32 %v1210, 1.442695
        %v1232 = vpow.pop %v1231
        %v1233 = vmul.f32 %v1211, 1.442695
        %v1234 = vpow.pop %v1233
        %v1235 = vmul.f32 %v1212, 1.442695
        %v1236 = vpow.pop %v1235
        %v1237 = vmul.f32 %v1213, 1.442695
        %v1238 = vpow.pop %v1237
        %v1239 = vmul.f32 %v1214, 1.442695
        %v1240 = vpow.pop %v1239
        %v1241 = vmul.f32 %v1215, 1.442695
        %v1242 = vpow.pop %v1241
        %v1243 = vmul.f32 %v1216, 1.442695
        %v1244 = vpow.pop %v1243
        %v1245 = vmul.f32 %v1217, 1.442695
        %v1246 = vpow.pop %v1245
        %v1247 = vmul.f32 %v1218, 1.442695
        %v1248 = vpow.pop %v1247
        %v1249 = vmul.f32 %v1219, 1.442695
        %v1250 = vpow.pop %v1249
        %v1251 = vmul.f32 %v1220, 1.442695
        %v1252 = vpow.pop %v1251
        %v1253 = vsub.f32 %v1159, %v1222
        %v1254 = vsub.f32 %v1162, %v1224
        %v1255 = vsub.f32 %v1165, %v1226
        %v1256 = vsub.f32 %v1168, %v1228
        %v1257 = vsub.f32 %v1171, %v1230
        %v1258 = vsub.f32 %v1174, %v1232
        %v1259 = vsub.f32 %v1177, %v1234
        %v1260 = vsub.f32 %v1180, %v1236
        %v1261 = vsub.f32 %v1183, %v1238
        %v1262 = vsub.f32 %v1186, %v1240
        %v1263 = vsub.f32 %v1189, %v1242
        %v1264 = vsub.f32 %v1192, %v1244
        %v1265 = vsub.f32 %v1195, %v1246
        %v1266 = vsub.f32 %v1198, %v1248
        %v1267 = vsub.f32 %v1201, %v1250
        %v1268 = vsub.f32 %v1204, %v1252
        %v1269 = vsub.f32 %v821, %v695
        %v1270 = vsub.f32 %v822, %v698
        %v1271 = vsub.f32 %v823, %v701
        %v1272 = vsub.f32 %v824, %v704
        %v1273 = vsub.f32 %v825, %v707
        %v1274 = vsub.f32 %v826, %v710
        %v1275 = vsub.f32 %v827, %v713
        %v1276 = vsub.f32 %v828, %v716
        %v1277 = vsub.f32 %v829, %v719
        %v1278 = vsub.f32 %v830, %v722
        %v1279 = vsub.f32 %v831, %v725
        %v1280 = vsub.f32 %v832, %v728
        %v1281 = vsub.f32 %v833, %v731
        %v1282 = vsub.f32 %v834, %v734
        %v1283 = vsub.f32 %v835, %v737
        %v1284 = vsub.f32 %v836, %v740
        %v1285 = vlog2.pop %v1253
        %v1286 = vmul.f32 %v1285, 0.6931472
        %v1287 = vlog2.pop %v1254
        %v1288 = vmul.f32 %v1287, 0.6931472
        %v1289 = vlog2.pop %v1255
        %v1290 = vmul.f32 %v1289, 0.6931472
        %v1291 = vlog2.pop %v1256
        %v1292 = vmul.f32 %v1291, 0.6931472
        %v1293 = vlog2.pop %v1257
        %v1294 = vmul.f32 %v1293, 0.6931472
        %v1295 = vlog2.pop %v1258
        %v1296 = vmul.f32 %v1295, 0.6931472
        %v1297 = vlog2.pop %v1259
        %v1298 = vmul.f32 %v1297, 0.6931472
        %v1299 = vlog2.pop %v1260
        %v1300 = vmul.f32 %v1299, 0.6931472
        %v1301 = vlog2.pop %v1261
        %v1302 = vmul.f32 %v1301, 0.6931472
        %v1303 = vlog2.pop %v1262
        %v1304 = vmul.f32 %v1303, 0.6931472
        %v1305 = vlog2.pop %v1263
        %v1306 = vmul.f32 %v1305, 0.6931472
        %v1307 = vlog2.pop %v1264
        %v1308 = vmul.f32 %v1307, 0.6931472
        %v1309 = vlog2.pop %v1265
        %v1310 = vmul.f32 %v1309, 0.6931472
        %v1311 = vlog2.pop %v1266
        %v1312 = vmul.f32 %v1311, 0.6931472
        %v1313 = vlog2.pop %v1267
        %v1314 = vmul.f32 %v1313, 0.6931472
        %v1315 = vlog2.pop %v1268
        %v1316 = vmul.f32 %v1315, 0.6931472
        %v1317 = vsub.f32 %v1269, %v1286
        %v1318 = vsub.f32 %v1270, %v1288
        %v1319 = vsub.f32 %v1271, %v1290
        %v1320 = vsub.f32 %v1272, %v1292
        %v1321 = vsub.f32 %v1273, %v1294
        %v1322 = vsub.f32 %v1274, %v1296
        %v1323 = vsub.f32 %v1275, %v1298
        %v1324 = vsub.f32 %v1276, %v1300
        %v1325 = vsub.f32 %v1277, %v1302
        %v1326 = vsub.f32 %v1278, %v1304
        %v1327 = vsub.f32 %v1279, %v1306
        %v1328 = vsub.f32 %v1280, %v1308
        %v1329 = vsub.f32 %v1281, %v1310
        %v1330 = vsub.f32 %v1282, %v1312
        %v1331 = vsub.f32 %v1283, %v1314
        %v1332 = vsub.f32 %v1284, %v1316
        %v1333 = vsub.f32 0.0, %v1317
        %v1334 = vsub.f32 0.0, %v1318
        %v1335 = vsub.f32 0.0, %v1319
        %v1336 = vsub.f32 0.0, %v1320
        %v1337 = vsub.f32 0.0, %v1321
        %v1338 = vsub.f32 0.0, %v1322
        %v1339 = vsub.f32 0.0, %v1323
        %v1340 = vsub.f32 0.0, %v1324
        %v1341 = vsub.f32 0.0, %v1325
        %v1342 = vsub.f32 0.0, %v1326
        %v1343 = vsub.f32 0.0, %v1327
        %v1344 = vsub.f32 0.0, %v1328
        %v1345 = vsub.f32 0.0, %v1329
        %v1346 = vsub.f32 0.0, %v1330
        %v1347 = vsub.f32 0.0, %v1331
        %v1348 = vsub.f32 0.0, %v1332
        %v1365 = vlaneseq
        %v1366 = vand.u32 %v1365, 127
        %v1367 = vlaneseq
        %v1368 = vshrl.u32 %v1367, 7
        %v1369 = vsub.s32 %v1366, %v1368
        %v1370 = vrot.slane %v1333, %v1369
        %v1371 = vadd.s32 %v1366, 4294967288
        %v1372 = vlaneseq
        %v1373 = vshrl.u32 %v1372, 7
        %v1374 = vsub.s32 %v1371, %v1373
        %v1375 = vrot.slane %v1334, %v1374
        %vm1376 = vcmask 130112
        %v1377 = vsel %vm1376, %v1375, %v1370
        %v1378 = vadd.s32 %v1366, 4294967280
        %v1379 = vlaneseq
        %v1380 = vshrl.u32 %v1379, 7
        %v1381 = vsub.s32 %v1378, %v1380
        %v1382 = vrot.slane %v1335, %v1381
        %vm1383 = vcmask 195712
        %v1384 = vsel %vm1383, %v1382, %v1377
        %v1385 = vadd.s32 %v1366, 4294967272
        %v1386 = vlaneseq
        %v1387 = vshrl.u32 %v1386, 7
        %v1388 = vsub.s32 %v1385, %v1387
        %v1389 = vrot.slane %v1336, %v1388
        %vm1390 = vcmask 261312
        %v1391 = vsel %vm1390, %v1389, %v1384
        %v1392 = vadd.s32 %v1366, 4294967264
        %v1393 = vlaneseq
        %v1394 = vshrl.u32 %v1393, 7
        %v1395 = vsub.s32 %v1392, %v1394
        %v1396 = vrot.slane %v1337, %v1395
        %vm1397 = vcmask 326912
        %v1398 = vsel %vm1397, %v1396, %v1391
        %v1399 = vadd.s32 %v1366, 4294967256
        %v1400 = vlaneseq
        %v1401 = vshrl.u32 %v1400, 7
        %v1402 = vsub.s32 %v1399, %v1401
        %v1403 = vrot.slane %v1338, %v1402
        %vm1404 = vcmask 392512
        %v1405 = vsel %vm1404, %v1403, %v1398
        %v1406 = vadd.s32 %v1366, 4294967248
        %v1407 = vlaneseq
        %v1408 = vshrl.u32 %v1407, 7
        %v1409 = vsub.s32 %v1406, %v1408
        %v1410 = vrot.slane %v1339, %v1409
        %vm1411 = vcmask 458112
        %v1412 = vsel %vm1411, %v1410, %v1405
        %v1413 = vadd.s32 %v1366, 4294967240
        %v1414 = vlaneseq
        %v1415 = vshrl.u32 %v1414, 7
        %v1416 = vsub.s32 %v1413, %v1415
        %v1417 = vrot.slane %v1340, %v1416
        %vm1418 = vcmask 523712
        %v1419 = vsel %vm1418, %v1417, %v1412
        %v1420 = vadd.s32 %v1366, 4294967232
        %v1421 = vlaneseq
        %v1422 = vshrl.u32 %v1421, 7
        %v1423 = vsub.s32 %v1420, %v1422
        %v1424 = vrot.slane %v1341, %v1423
        %vm1425 = vcmask 589312
        %v1426 = vsel %vm1425, %v1424, %v1419
        %v1427 = vadd.s32 %v1366, 4294967224
        %v1428 = vlaneseq
        %v1429 = vshrl.u32 %v1428, 7
        %v1430 = vsub.s32 %v1427, %v1429
        %v1431 = vrot.slane %v1342, %v1430
        %vm1432 = vcmask 654912
        %v1433 = vsel %vm1432, %v1431, %v1426
        %v1434 = vadd.s32 %v1366, 4294967216
        %v1435 = vlaneseq
        %v1436 = vshrl.u32 %v1435, 7
        %v1437 = vsub.s32 %v1434, %v1436
        %v1438 = vrot.slane %v1343, %v1437
        %vm1439 = vcmask 720512
        %v1440 = vsel %vm1439, %v1438, %v1433
        %v1441 = vadd.s32 %v1366, 4294967208
        %v1442 = vlaneseq
        %v1443 = vshrl.u32 %v1442, 7
        %v1444 = vsub.s32 %v1441, %v1443
        %v1445 = vrot.slane %v1344, %v1444
        %vm1446 = vcmask 786112
        %v1447 = vsel %vm1446, %v1445, %v1440
        %v1448 = vadd.s32 %v1366, 4294967200
        %v1449 = vlaneseq
        %v1450 = vshrl.u32 %v1449, 7
        %v1451 = vsub.s32 %v1448, %v1450
        %v1452 = vrot.slane %v1345, %v1451
        %vm1453 = vcmask 851712
        %v1454 = vsel %vm1453, %v1452, %v1447
        %v1455 = vadd.s32 %v1366, 4294967192
        %v1456 = vlaneseq
        %v1457 = vshrl.u32 %v1456, 7
        %v1458 = vsub.s32 %v1455, %v1457
        %v1459 = vrot.slane %v1346, %v1458
        %vm1460 = vcmask 917312
        %v1461 = vsel %vm1460, %v1459, %v1454
        %v1462 = vadd.s32 %v1366, 4294967184
        %v1463 = vlaneseq
        %v1464 = vshrl.u32 %v1463, 7
        %v1465 = vsub.s32 %v1462, %v1464
        %v1466 = vrot.slane %v1347, %v1465
        %vm1467 = vcmask 982912
        %v1468 = vsel %vm1467, %v1466, %v1461
        %v1469 = vadd.s32 %v1366, 4294967176
        %v1470 = vlaneseq
        %v1471 = vshrl.u32 %v1470, 7
        %v1472 = vsub.s32 %v1469, %v1471
        %v1473 = vrot.slane %v1348, %v1472
        %vm1474 = vcmask 1048512
        %v1475 = vsel %vm1474, %v1473, %v1468
        %1477 = vst [vmem:[%s108] sm:$0x1] %v1475
        %s1478 = sand.u32 %s45, 1
        %s1479 = scalar_lea.sflag [#allocation4], %s1478
        %s1480 = sand.u32 %s45, 1
        %s1481 = scalar_lea.vmem [#allocation5], %s1480
        // Predicated region
        $region29: #{tpu_custom_call.1} parent=23 // pred_check
          %p1482 = pneg %p55
        $region30: #{tpu_custom_call.1} parent=23 // pred_check_branch
          %1484 = sbr.rel (%p1482) target = $region32
        $region31: #{tpu_custom_call.1} parent=23 // pred_region
          %s1486 = ssub.s32 16, 16
          %1487 = vsyncadd %s1479, %s1486
          %s1488 = smul.addr %s16, 16
          %s1489 = scalar_lea.hbm %s1, %s1488
          %s1491 = sshll.u32 %s1481, 4
          %s1492 = int_to_ptr.vmem [resolvable:$true] %s1491
          %1494 = dma.vmem_to_hbm [thread:$0]  %s1492, 16, %s1489, %s1479
        $region32: #{tpu_custom_call.1} parent=23 // pred_fallthru
          _
      $region24: #{tpu_custom_call.1} parent=5 // pred_fallthru
        _
      %p1495 = scmp.le.s32.totalorder 2, %s11
      // Predicated region
      $region33: #{tpu_custom_call.1} parent=5 // pred_check
        %p1496 = pneg %p1495
      $region34: #{tpu_custom_call.1} parent=5 // pred_check_branch
        %1498 = sbr.rel (%p1496) target = $region36
      $region35: #{tpu_custom_call.1} parent=5 // pred_region
        %s1499 = ssub.s32 %s11, 2
        // Predicated region
        $region37: #{tpu_custom_call.1} parent=35 // pred_check
          %p1500 = pneg %p61
        $region38: #{tpu_custom_call.1} parent=35 // pred_check_branch
          %1502 = sbr.rel (%p1500) target = $region40
        $region39: #{tpu_custom_call.1} parent=35 // pred_region
          %s1503 = sand.u32 %s46, 1
          %s1504 = scalar_lea.sflag [#allocation4], %s1503
          %s1505 = sand.u32 %s46, 1
          %s1506 = scalar_lea.vmem [#allocation5], %s1505
          %1507 = dma.done %s1504, 16
        $region40: #{tpu_custom_call.1} parent=35 // pred_fallthru
          _
      $region36: #{tpu_custom_call.1} parent=5 // pred_fallthru
        _
    $region6: #{tpu_custom_call.1} parent=1 // loop_footer
      %s15 = sadd.s32 1, %s11
    $region7: #{tpu_custom_call.1} parent=1 // loop_footer_branch
      %10 = sbr.rel target = $region3
    $region8: #{tpu_custom_call.1} parent=1 // loop_exit
      _
    %1508 = vsyncpa [#allocation3], 1
    %s1509 = scalar_lea.sflag [#allocation3], 1
    %1510 = vsyncpa %s1509, 1
    %1511 = vsyncpa [#allocation4], 1
    %s1512 = scalar_lea.sflag [#allocation4], 1
    %1513 = vsyncpa %s1512, 1

</llo_original>
